<compile_context>
chip_gen: v7x
topology: tpu7x:2x2x1
jax: 0.10.0
libtpu: 0.0.40
codegen_flags: <defaults>
</compile_context>

<pallas_src>
import functools

import jax
import jax.numpy as jnp
from jax.experimental import pallas as pl
from jax.experimental.pallas import tpu as pltpu

EMBED_DIM = 16
HEAD = 4
HEAD_DIM = EMBED_DIM // HEAD
LN_EPS = 1e-5

# contract the last dim of both operands (x @ W^T) -- same pattern as the
# reference flash-attention kernel's einsum('bqd,bkd->bqk').
_DN_NT = (((1,), (1,)), ((), ()))


# --------------------------- fused Pallas kernel -----------------------------

def _fused_kernel(q_ref, k_ref, v_ref, wc_ref, bc_ref, g_ref, beta_ref,
                  wo_ref, bo_ref, st_ref, hm_ref, gsum_ref, xm_ref,
                  o_ref, qpad, apad, kn_scr, vc_scr,
                  *, hq, wq, hp, wp, mn, head, scale):
    C = wc_ref.shape[0]
    hwq = hq * wq
    ph, pw = hp // 2, wp // 2
    nhm = head * mn
    base = (ph + 1) * wq                      # row offset of real data in pads

    wc = wc_ref[...]

    def in_conv(x):                            # 1x1 conv == rows @ W^T + b
        return jax.lax.dot_general(x, wc, _DN_NT,
                                   preferred_element_type=jnp.float32) + bc_ref[...]

    def layer_norm(y):
        mu = jnp.mean(y, axis=-1, keepdims=True)
        var = jnp.mean((y - mu) ** 2, axis=-1, keepdims=True)
        return (y - mu) * jax.lax.rsqrt(var + LN_EPS) * g_ref[...] + beta_ref[...]

    # in_conv (+LN) on query / keys / values -- all in one kernel invocation.
    q_n = layer_norm(in_conv(q_ref[...]))                 # (HWq, C)
    kn_scr[...] = layer_norm(in_conv(k_ref[...]))         # (hp*wp*mn, C)
    vc_scr[...] = in_conv(v_ref[...])                     # (hp*wp*mn, C)

    st = st_ref[...]           # (head*mn, mn)   row-replication selector
    hm = hm_ref[...]           # (head*mn, C)    head/channel match mask

    # ---- padded query in VMEM (pixel rows; explicit y-pad, x-pad via mask) ---
    qpad[...] = jnp.zeros_like(qpad)
    qpad[pl.ds(base, hwq), :] = q_n

    # ---- similarity: accumulate one lane-dense (HWq, head*mn) matmul/shift ---
    attn = jnp.zeros((hwq, nhm), jnp.float32)
    for ky in range(hp):
        for kx in range(wp):
            start = (ky + 1) * wq + kx - pw
            qs = qpad[pl.ds(start, hwq), :] * xm_ref[:, pl.ds(kx, 1)]
            s = ky * wp + kx
            kb = jnp.dot(st, kn_scr[pl.ds(s * mn, mn), :],
                         preferred_element_type=jnp.float32) * hm      # (nhm, C)
            attn += jax.lax.dot_general(qs, kb, _DN_NT,
                                        preferred_element_type=jnp.float32)

    # ---- exp + sn/en normalization (reciprocals go to the EUP) --------------
    e = jnp.exp(attn * scale)                                          # (HWq, nhm)
    sn = e * pl.reciprocal(jnp.max(e, axis=0, keepdims=True), approx=True)
    en = e * pl.reciprocal(
        jnp.dot(e, gsum_ref[...], preferred_element_type=jnp.float32), approx=True)
    w = sn * en
    # TODO(synk): nn.Dropout is the identity in eval mode; training-mode dropout omitted.

    # ---- flipped-window aggregation: (HWq, head*head_dim) merged-head rows ---
    apad[...] = jnp.zeros_like(apad)
    apad[pl.ds(base, hwq), :] = w

    feat = jnp.zeros((hwq, C), jnp.float32)
    for ky in range(hp):
        for kx in range(wp):
            start = (ky + 1) * wq + kx - pw
            a_s = apad[pl.ds(start, hwq), :] * xm_ref[:, pl.ds(kx, 1)]
            sf = (hp - 1 - ky) * wp + (wp - 1 - kx)                    # flipped tap
            vb = jnp.dot(st, vc_scr[pl.ds(sf * mn, mn), :],
                         preferred_element_type=jnp.float32) * hm      # (nhm, C)
            feat += jnp.dot(a_s, vb, preferred_element_type=jnp.float32)

    # ---- out_conv ------------------------------------------------------------
    o_ref[...] = jax.lax.dot_general(feat, wo_ref[...], _DN_NT,
                                     preferred_element_type=jnp.float32) + bo_ref[...]


def _full_spec(shape):
    return pl.BlockSpec(shape, lambda i: (0,) * len(shape))


# --------------------------- forward (thin wrapper) ---------------------------

def similarity_weighted_aggregation(query, keys, values, params):
    """query: (1, C, Hq, Wq); keys/values: (MN, C, Hp, Wp) -- NCHW like torch.
    Hp, Wp must be odd (same implicit requirement as the torch module)."""
    Wc, bc, Wo, bo, gamma, beta = params
    C = Wc.shape[0]
    hd = C // HEAD
    _, _, hq, wq = query.shape
    mn, _, hp, wp = keys.shape
    ph, pw = hp // 2, wp // 2
    hwq = hq * wq
    kp = hp * wp * mn
    nhm = HEAD * mn

    # layout plumbing only: NCHW -> channels-last rows.
    # keys/values row order = (ky, kx, m) so each (ky,kx) tap is a contiguous slice.
    q_rows = jnp.transpose(query, (0, 2, 3, 1)).reshape(hwq, C)
    k_rows = jnp.transpose(keys, (2, 3, 0, 1)).reshape(kp, C)
    v_rows = jnp.transpose(values, (2, 3, 0, 1)).reshape(kp, C)

    # tiny constant matrices (built from compile-time constants -> folded by XLA)
    row_h = jnp.arange(nhm) // mn
    row_m = jnp.arange(nhm) % mn
    st = (row_m[:, None] == jnp.arange(mn)[None, :]).astype(jnp.float32)          # (nhm, mn)
    hm = (row_h[:, None] == (jnp.arange(C) // hd)[None, :]).astype(jnp.float32)   # (nhm, C)
    gsum = (row_h[:, None] == row_h[None, :]).astype(jnp.float32)                 # (nhm, nhm)
    xcoord = jnp.arange(hwq) % wq
    xm = jnp.stack(
        [((xcoord + kx - pw >= 0) & (xcoord + kx - pw <= wq - 1)).astype(jnp.float32)
         for kx in range(wp)], axis=1)                                            # (hwq, wp)

    scale = float(C * hp * wp) ** (-0.5)
    pad_rows = (hq + 2 * ph + 2) * wq

    kernel = functools.partial(_fused_kernel, hq=hq, wq=wq, hp=hp, wp=wp,
                               mn=mn, head=HEAD, scale=scale)

    out_rows = pl.pallas_call(
        kernel,
        out_shape=jax.ShapeDtypeStruct((hwq, C), jnp.float32),
        grid=(1,),
        in_specs=[_full_spec((hwq, C)),        # query rows
                  _full_spec((kp, C)),         # key rows
                  _full_spec((kp, C)),         # value rows
                  _full_spec((C, C)),          # Wc
                  _full_spec((1, C)),          # bc
                  _full_spec((1, C)),          # gamma
                  _full_spec((1, C)),          # beta
                  _full_spec((C, C)),          # Wo
                  _full_spec((1, C)),          # bo
                  _full_spec((nhm, mn)),       # st
                  _full_spec((nhm, C)),        # head mask
                  _full_spec((nhm, nhm)),      # head-group sum matrix
                  _full_spec((hwq, wp))],      # x-edge masks
        out_specs=_full_spec((hwq, C)),
        scratch_shapes=[pltpu.VMEM((pad_rows, C), jnp.float32),    # padded query
                        pltpu.VMEM((pad_rows, nhm), jnp.float32),  # padded attention
                        pltpu.VMEM((kp, C), jnp.float32),          # keys after conv+LN
                        pltpu.VMEM((kp, C), jnp.float32)],         # values after conv
    )(q_rows, k_rows, v_rows, Wc, bc.reshape(1, C), gamma.reshape(1, C),
      beta.reshape(1, C), Wo, bo.reshape(1, C), st, hm, gsum, xm)

    return out_rows.reshape(hq, wq, C).transpose(2, 0, 1)[None]


# --------------------------- pure-JAX reference ------------------------------

def reference_forward(query, keys, values, params):
    Wc, bc, Wo, bo, gamma, beta = params
    C = EMBED_DIM
    _, _, hq, wq = query.shape
    mn, _, hp, wp = keys.shape
    ph, pw = hp // 2, wp // 2

    def in_conv(x):
        return jnp.einsum('oc,nchw->nohw', Wc, x) + bc[None, :, None, None]

    def ln(x):
        xh = jnp.transpose(x, (0, 2, 3, 1))
        mu = jnp.mean(xh, -1, keepdims=True)
        var = jnp.mean((xh - mu) ** 2, -1, keepdims=True)
        xn = (xh - mu) / jnp.sqrt(var + LN_EPS) * gamma + beta
        return jnp.transpose(xn, (0, 3, 1, 2))

    q = ln(in_conv(query)).reshape(HEAD, HEAD_DIM, hq, wq)
    k = ln(in_conv(keys)).reshape(mn, HEAD, HEAD_DIM, hp, wp)
    v = in_conv(values).reshape(mn, HEAD, HEAD_DIM, hp, wp)

    q_pad = jnp.pad(q, ((0, 0), (0, 0), (ph, ph), (pw, pw)))
    dn = ('NCHW', 'OIHW', 'NCHW')
    attns = jnp.stack([
        jax.lax.conv_general_dilated(q_pad[h][None], k[:, h], (1, 1), 'VALID',
                                     dimension_numbers=dn)[0]
        for h in range(HEAD)], axis=0)                      # (head, mn, hq, wq)
    attns = jnp.exp(attns * float(C * hp * wp) ** (-0.5))
    sn = attns / jnp.max(attns, axis=(2, 3), keepdims=True)
    en = attns / jnp.sum(attns, axis=1, keepdims=True)
    attns = sn * en
    feats = jnp.stack([
        jax.lax.conv_general_dilated(
            attns[h][None],
            jnp.flip(jnp.transpose(v[:, h], (1, 0, 2, 3)), axis=(2, 3)),
            (1, 1), [(ph, ph), (pw, pw)], dimension_numbers=dn)[0]
        for h in range(HEAD)], axis=0)                      # (head, head_dim, hq, wq)
    feats = feats.reshape(1, C, hq, wq)
    return jnp.einsum('oc,nchw->nohw', Wo, feats) + bo[None, :, None, None]


# --------------------------- main --------------------------------------------

if __name__ == "__main__":
    key = jax.random.PRNGKey(0)
    ks = jax.random.split(key, 9)
    C = EMBED_DIM
    hq, wq = 8, 8
    mn, hp, wp = 3, 3, 3   # exemplar spatial size must be odd (module's shape assert)

    # deterministic synthetic parameters (Conv2d 1x1 weights, biases, LayerNorm affine)
    Wc = 0.2 * jax.random.normal(ks[0], (C, C), jnp.float32)     # in_conv weight (out,in)
    bc = 0.1 * jax.random.normal(ks[1], (C,), jnp.float32)
    Wo = 0.2 * jax.random.normal(ks[2], (C, C), jnp.float32)     # out_conv weight
    bo = 0.1 * jax.random.normal(ks[3], (C,), jnp.float32)
    gamma = 1.0 + 0.1 * jax.random.normal(ks[4], (C,), jnp.float32)
    beta = 0.1 * jax.random.normal(ks[5], (C,), jnp.float32)
    params = (Wc, bc, Wo, bo, gamma, beta)

    query = jax.random.normal(ks[6], (1, C, hq, wq), jnp.float32)
    keys = jax.random.normal(ks[7], (mn, C, hp, wp), jnp.float32)
    values = jax.random.normal(ks[8], (mn, C, hp, wp), jnp.float32)

    out = jax.jit(similarity_weighted_aggregation)(query, keys, values, params)
    out = jax.block_until_ready(out)

    assert out.shape == (1, C, hq, wq)
    assert bool(jnp.all(jnp.isfinite(out)))

    ref = reference_forward(query, keys, values, params)
    rel_err = float(jnp.max(jnp.abs(out - ref)) / (jnp.max(jnp.abs(ref)) + 1e-6))
    assert rel_err < 5e-2, f"Pallas vs reference mismatch, rel_err={rel_err}"

    print("KERNEL_OK")
</pallas_src>

<mosaic_0001>
module attributes {stable_mosaic.version = 11 : i64} {
  func.func @_fused_kernel(%arg0: i32, %arg1: memref<64x16xf32, #tpu.memory_space<vmem>>, %arg2: memref<27x16xf32, #tpu.memory_space<vmem>>, %arg3: memref<27x16xf32, #tpu.memory_space<vmem>>, %arg4: memref<16x16xf32, #tpu.memory_space<vmem>>, %arg5: memref<1x16xf32, #tpu.memory_space<vmem>>, %arg6: memref<1x16xf32, #tpu.memory_space<vmem>>, %arg7: memref<1x16xf32, #tpu.memory_space<vmem>>, %arg8: memref<16x16xf32, #tpu.memory_space<vmem>>, %arg9: memref<1x16xf32, #tpu.memory_space<vmem>>, %arg10: memref<12x3xf32, #tpu.memory_space<vmem>>, %arg11: memref<12x16xf32, #tpu.memory_space<vmem>>, %arg12: memref<12x12xf32, #tpu.memory_space<vmem>>, %arg13: memref<64x3xf32, #tpu.memory_space<vmem>>, %arg14: memref<64x16xf32, #tpu.memory_space<vmem>>, %arg15: memref<96x16xf32, #tpu.memory_space<vmem>>, %arg16: memref<96x12xf32, #tpu.memory_space<vmem>>, %arg17: memref<27x16xf32, #tpu.memory_space<vmem>>, %arg18: memref<27x16xf32, #tpu.memory_space<vmem>>) attributes {dimension_semantics = [#tpu.dimension_semantics<arbitrary>], iteration_bounds = array<i64: 1>, scalar_prefetch = 0 : i64, scratch_operands = 4 : i64, tpu.core_type = #tpu.core_type<tc>, window_params = [{pipeline_mode = #tpu.pipeline_mode<synchronous>, transform_indices = @transform_0, window_bounds = array<i64: 64, 16>}, {pipeline_mode = #tpu.pipeline_mode<synchronous>, transform_indices = @transform_1, window_bounds = array<i64: 27, 16>}, {pipeline_mode = #tpu.pipeline_mode<synchronous>, transform_indices = @transform_2, window_bounds = array<i64: 27, 16>}, {pipeline_mode = #tpu.pipeline_mode<synchronous>, transform_indices = @transform_3, window_bounds = array<i64: 16, 16>}, {pipeline_mode = #tpu.pipeline_mode<synchronous>, transform_indices = @transform_4, window_bounds = array<i64: 1, 16>}, {pipeline_mode = #tpu.pipeline_mode<synchronous>, transform_indices = @transform_5, window_bounds = array<i64: 1, 16>}, {pipeline_mode = #tpu.pipeline_mode<synchronous>, transform_indices = @transform_6, window_bounds = array<i64: 1, 16>}, {pipeline_mode = #tpu.pipeline_mode<synchronous>, transform_indices = @transform_7, window_bounds = array<i64: 16, 16>}, {pipeline_mode = #tpu.pipeline_mode<synchronous>, transform_indices = @transform_8, window_bounds = array<i64: 1, 16>}, {pipeline_mode = #tpu.pipeline_mode<synchronous>, transform_indices = @transform_9, window_bounds = array<i64: 12, 3>}, {pipeline_mode = #tpu.pipeline_mode<synchronous>, transform_indices = @transform_10, window_bounds = array<i64: 12, 16>}, {pipeline_mode = #tpu.pipeline_mode<synchronous>, transform_indices = @transform_11, window_bounds = array<i64: 12, 12>}, {pipeline_mode = #tpu.pipeline_mode<synchronous>, transform_indices = @transform_12, window_bounds = array<i64: 64, 3>}, {pipeline_mode = #tpu.pipeline_mode<synchronous>, transform_indices = @transform_13, window_bounds = array<i64: 64, 16>}]} {
    %c0 = arith.constant 0 : index
    %c0_0 = arith.constant 0 : index
    %0 = vector.load %arg4[%c0, %c0_0] : memref<16x16xf32, #tpu.memory_space<vmem>>, vector<16x16xf32>
    %c0_1 = arith.constant 0 : index
    %c0_2 = arith.constant 0 : index
    %1 = vector.load %arg1[%c0_1, %c0_2] : memref<64x16xf32, #tpu.memory_space<vmem>>, vector<64x16xf32>
    %cst = arith.constant dense<0.000000e+00> : vector<64x16xf32>
    %2 = tpu.matmul %1, %0, %cst {dimension_numbers = #tpu.dot_dimension_numbers<[1], [1], [0], [0], [0, 0, 1, 0], [], []>} : vector<64x16xf32>, vector<16x16xf32>, vector<64x16xf32> -> vector<64x16xf32>
    %c0_3 = arith.constant 0 : index
    %c0_4 = arith.constant 0 : index
    %3 = vector.load %arg5[%c0_3, %c0_4] : memref<1x16xf32, #tpu.memory_space<vmem>>, vector<1x16xf32>
    %4 = vector.broadcast %3 : vector<1x16xf32> to vector<64x16xf32>
    %5 = arith.addf %2, %4 : vector<64x16xf32>
    %cst_5 = arith.constant dense<0.000000e+00> : vector<64xf32>
    %6 = vector.multi_reduction <add>, %5, %cst_5 [1] : vector<64x16xf32> to vector<64xf32>
    %7 = vector.shape_cast %6 : vector<64xf32> to vector<64x1xf32>
    %cst_6 = arith.constant 1.600000e+01 : f32
    %8 = vector.broadcast %cst_6 : f32 to vector<64x1xf32>
    %9 = arith.divf %7, %8 : vector<64x1xf32>
    %10 = vector.broadcast %9 : vector<64x1xf32> to vector<64x16xf32>
    %11 = arith.subf %5, %10 : vector<64x16xf32>
    %12 = arith.mulf %11, %11 : vector<64x16xf32>
    %cst_7 = arith.constant dense<0.000000e+00> : vector<64xf32>
    %13 = vector.multi_reduction <add>, %12, %cst_7 [1] : vector<64x16xf32> to vector<64xf32>
    %14 = vector.shape_cast %13 : vector<64xf32> to vector<64x1xf32>
    %cst_8 = arith.constant 1.600000e+01 : f32
    %15 = vector.broadcast %cst_8 : f32 to vector<64x1xf32>
    %16 = arith.divf %14, %15 : vector<64x1xf32>
    %17 = vector.broadcast %9 : vector<64x1xf32> to vector<64x16xf32>
    %18 = arith.subf %5, %17 : vector<64x16xf32>
    %cst_9 = arith.constant 9.99999974E-6 : f32
    %19 = vector.broadcast %cst_9 : f32 to vector<64x1xf32>
    %20 = arith.addf %16, %19 : vector<64x1xf32>
    %21 = math.rsqrt %20 : vector<64x1xf32>
    %22 = vector.broadcast %21 : vector<64x1xf32> to vector<64x16xf32>
    %23 = arith.mulf %18, %22 : vector<64x16xf32>
    %c0_10 = arith.constant 0 : index
    %c0_11 = arith.constant 0 : index
    %24 = vector.load %arg6[%c0_10, %c0_11] : memref<1x16xf32, #tpu.memory_space<vmem>>, vector<1x16xf32>
    %25 = vector.broadcast %24 : vector<1x16xf32> to vector<64x16xf32>
    %26 = arith.mulf %23, %25 : vector<64x16xf32>
    %c0_12 = arith.constant 0 : index
    %c0_13 = arith.constant 0 : index
    %27 = vector.load %arg7[%c0_12, %c0_13] : memref<1x16xf32, #tpu.memory_space<vmem>>, vector<1x16xf32>
    %28 = vector.broadcast %27 : vector<1x16xf32> to vector<64x16xf32>
    %29 = arith.addf %26, %28 : vector<64x16xf32>
    %c0_14 = arith.constant 0 : index
    %c0_15 = arith.constant 0 : index
    %30 = vector.load %arg2[%c0_14, %c0_15] : memref<27x16xf32, #tpu.memory_space<vmem>>, vector<27x16xf32>
    %cst_16 = arith.constant dense<0.000000e+00> : vector<27x16xf32>
    %31 = tpu.matmul %30, %0, %cst_16 {dimension_numbers = #tpu.dot_dimension_numbers<[1], [1], [0], [0], [0, 0, 1, 0], [], []>} : vector<27x16xf32>, vector<16x16xf32>, vector<27x16xf32> -> vector<27x16xf32>
    %c0_17 = arith.constant 0 : index
    %c0_18 = arith.constant 0 : index
    %32 = vector.load %arg5[%c0_17, %c0_18] : memref<1x16xf32, #tpu.memory_space<vmem>>, vector<1x16xf32>
    %33 = vector.broadcast %32 : vector<1x16xf32> to vector<27x16xf32>
    %34 = arith.addf %31, %33 : vector<27x16xf32>
    %cst_19 = arith.constant dense<0.000000e+00> : vector<27xf32>
    %35 = vector.multi_reduction <add>, %34, %cst_19 [1] : vector<27x16xf32> to vector<27xf32>
    %36 = vector.shape_cast %35 : vector<27xf32> to vector<27x1xf32>
    %cst_20 = arith.constant 1.600000e+01 : f32
    %37 = vector.broadcast %cst_20 : f32 to vector<27x1xf32>
    %38 = arith.divf %36, %37 : vector<27x1xf32>
    %39 = vector.broadcast %38 : vector<27x1xf32> to vector<27x16xf32>
    %40 = arith.subf %34, %39 : vector<27x16xf32>
    %41 = arith.mulf %40, %40 : vector<27x16xf32>
    %cst_21 = arith.constant dense<0.000000e+00> : vector<27xf32>
    %42 = vector.multi_reduction <add>, %41, %cst_21 [1] : vector<27x16xf32> to vector<27xf32>
    %43 = vector.shape_cast %42 : vector<27xf32> to vector<27x1xf32>
    %cst_22 = arith.constant 1.600000e+01 : f32
    %44 = vector.broadcast %cst_22 : f32 to vector<27x1xf32>
    %45 = arith.divf %43, %44 : vector<27x1xf32>
    %46 = vector.broadcast %38 : vector<27x1xf32> to vector<27x16xf32>
    %47 = arith.subf %34, %46 : vector<27x16xf32>
    %cst_23 = arith.constant 9.99999974E-6 : f32
    %48 = vector.broadcast %cst_23 : f32 to vector<27x1xf32>
    %49 = arith.addf %45, %48 : vector<27x1xf32>
    %50 = math.rsqrt %49 : vector<27x1xf32>
    %51 = vector.broadcast %50 : vector<27x1xf32> to vector<27x16xf32>
    %52 = arith.mulf %47, %51 : vector<27x16xf32>
    %c0_24 = arith.constant 0 : index
    %c0_25 = arith.constant 0 : index
    %53 = vector.load %arg6[%c0_24, %c0_25] : memref<1x16xf32, #tpu.memory_space<vmem>>, vector<1x16xf32>
    %54 = vector.broadcast %53 : vector<1x16xf32> to vector<27x16xf32>
    %55 = arith.mulf %52, %54 : vector<27x16xf32>
    %c0_26 = arith.constant 0 : index
    %c0_27 = arith.constant 0 : index
    %56 = vector.load %arg7[%c0_26, %c0_27] : memref<1x16xf32, #tpu.memory_space<vmem>>, vector<1x16xf32>
    %57 = vector.broadcast %56 : vector<1x16xf32> to vector<27x16xf32>
    %58 = arith.addf %55, %57 : vector<27x16xf32>
    %c0_28 = arith.constant 0 : index
    %c0_29 = arith.constant 0 : index
    %59 = vector.load %arg17[%c0_28, %c0_29] : memref<27x16xf32, #tpu.memory_space<vmem>>, vector<27x16xf32>
    tpu.vector_store %arg17[%c0_28, %c0_29], %58 {strides = array<i32>} : memref<27x16xf32, #tpu.memory_space<vmem>>, vector<27x16xf32>,
    %c0_30 = arith.constant 0 : index
    %c0_31 = arith.constant 0 : index
    %60 = vector.load %arg3[%c0_30, %c0_31] : memref<27x16xf32, #tpu.memory_space<vmem>>, vector<27x16xf32>
    %cst_32 = arith.constant dense<0.000000e+00> : vector<27x16xf32>
    %61 = tpu.matmul %60, %0, %cst_32 {dimension_numbers = #tpu.dot_dimension_numbers<[1], [1], [0], [0], [0, 0, 1, 0], [], []>} : vector<27x16xf32>, vector<16x16xf32>, vector<27x16xf32> -> vector<27x16xf32>
    %c0_33 = arith.constant 0 : index
    %c0_34 = arith.constant 0 : index
    %62 = vector.load %arg5[%c0_33, %c0_34] : memref<1x16xf32, #tpu.memory_space<vmem>>, vector<1x16xf32>
    %63 = vector.broadcast %62 : vector<1x16xf32> to vector<27x16xf32>
    %64 = arith.addf %61, %63 : vector<27x16xf32>
    %c0_35 = arith.constant 0 : index
    %c0_36 = arith.constant 0 : index
    %65 = vector.load %arg18[%c0_35, %c0_36] : memref<27x16xf32, #tpu.memory_space<vmem>>, vector<27x16xf32>
    tpu.vector_store %arg18[%c0_35, %c0_36], %64 {strides = array<i32>} : memref<27x16xf32, #tpu.memory_space<vmem>>, vector<27x16xf32>,
    %c0_37 = arith.constant 0 : index
    %c0_38 = arith.constant 0 : index
    %66 = vector.load %arg10[%c0_37, %c0_38] : memref<12x3xf32, #tpu.memory_space<vmem>>, vector<12x3xf32>
    %c0_39 = arith.constant 0 : index
    %c0_40 = arith.constant 0 : index
    %67 = vector.load %arg11[%c0_39, %c0_40] : memref<12x16xf32, #tpu.memory_space<vmem>>, vector<12x16xf32>
    %cst_41 = arith.constant 0.000000e+00 : f32
    %68 = vector.broadcast %cst_41 : f32 to vector<96x16xf32>
    %c0_42 = arith.constant 0 : index
    %c0_43 = arith.constant 0 : index
    %69 = vector.load %arg15[%c0_42, %c0_43] : memref<96x16xf32, #tpu.memory_space<vmem>>, vector<96x16xf32>
    tpu.vector_store %arg15[%c0_42, %c0_43], %68 {strides = array<i32>} : memref<96x16xf32, #tpu.memory_space<vmem>>, vector<96x16xf32>,
    %c16 = arith.constant 16 : index
    %c0_44 = arith.constant 0 : index
    %70 = vector.load %arg15[%c16, %c0_44] : memref<96x16xf32, #tpu.memory_space<vmem>>, vector<64x16xf32>
    tpu.vector_store %arg15[%c16, %c0_44], %29 {strides = array<i32>} : memref<96x16xf32, #tpu.memory_space<vmem>>, vector<64x16xf32>,
    %cst_45 = arith.constant 0.000000e+00 : f32
    %71 = vector.broadcast %cst_45 : f32 to vector<64x12xf32>
    %c7 = arith.constant 7 : index
    %c0_46 = arith.constant 0 : index
    %72 = vector.load %arg15[%c7, %c0_46] : memref<96x16xf32, #tpu.memory_space<vmem>>, vector<64x16xf32>
    %c0_47 = arith.constant 0 : index
    %c0_48 = arith.constant 0 : index
    %73 = vector.load %arg13[%c0_47, %c0_48] : memref<64x3xf32, #tpu.memory_space<vmem>>, vector<64x1xf32>
    %74 = vector.broadcast %73 : vector<64x1xf32> to vector<64x16xf32>
    %75 = arith.mulf %72, %74 : vector<64x16xf32>
    %c0_49 = arith.constant 0 : index
    %c0_50 = arith.constant 0 : index
    %76 = vector.load %arg17[%c0_49, %c0_50] : memref<27x16xf32, #tpu.memory_space<vmem>>, vector<3x16xf32>
    %cst_51 = arith.constant dense<0.000000e+00> : vector<12x16xf32>
    %77 = tpu.matmul %66, %76, %cst_51 {dimension_numbers = #tpu.dot_dimension_numbers<[1], [0], [0], [1], [0, 0, 1, 1], [], []>} : vector<12x3xf32>, vector<3x16xf32>, vector<12x16xf32> -> vector<12x16xf32>
    %78 = arith.mulf %77, %67 : vector<12x16xf32>
    %cst_52 = arith.constant dense<0.000000e+00> : vector<64x12xf32>
    %79 = tpu.matmul %75, %78, %cst_52 {dimension_numbers = #tpu.dot_dimension_numbers<[1], [1], [0], [0], [0, 0, 1, 0], [], []>} : vector<64x16xf32>, vector<12x16xf32>, vector<64x12xf32> -> vector<64x12xf32>
    %80 = arith.addf %71, %79 : vector<64x12xf32>
    %c8 = arith.constant 8 : index
    %c0_53 = arith.constant 0 : index
    %81 = vector.load %arg15[%c8, %c0_53] : memref<96x16xf32, #tpu.memory_space<vmem>>, vector<64x16xf32>
    %c0_54 = arith.constant 0 : index
    %c1 = arith.constant 1 : index
    %82 = vector.load %arg13[%c0_54, %c1] : memref<64x3xf32, #tpu.memory_space<vmem>>, vector<64x1xf32>
    %83 = vector.broadcast %82 : vector<64x1xf32> to vector<64x16xf32>
    %84 = arith.mulf %81, %83 : vector<64x16xf32>
    %c3 = arith.constant 3 : index
    %c0_55 = arith.constant 0 : index
    %85 = vector.load %arg17[%c3, %c0_55] : memref<27x16xf32, #tpu.memory_space<vmem>>, vector<3x16xf32>
    %cst_56 = arith.constant dense<0.000000e+00> : vector<12x16xf32>
    %86 = tpu.matmul %66, %85, %cst_56 {dimension_numbers = #tpu.dot_dimension_numbers<[1], [0], [0], [1], [0, 0, 1, 1], [], []>} : vector<12x3xf32>, vector<3x16xf32>, vector<12x16xf32> -> vector<12x16xf32>
    %87 = arith.mulf %86, %67 : vector<12x16xf32>
    %cst_57 = arith.constant dense<0.000000e+00> : vector<64x12xf32>
    %88 = tpu.matmul %84, %87, %cst_57 {dimension_numbers = #tpu.dot_dimension_numbers<[1], [1], [0], [0], [0, 0, 1, 0], [], []>} : vector<64x16xf32>, vector<12x16xf32>, vector<64x12xf32> -> vector<64x12xf32>
    %89 = arith.addf %80, %88 : vector<64x12xf32>
    %c9 = arith.constant 9 : index
    %c0_58 = arith.constant 0 : index
    %90 = vector.load %arg15[%c9, %c0_58] : memref<96x16xf32, #tpu.memory_space<vmem>>, vector<64x16xf32>
    %c0_59 = arith.constant 0 : index
    %c2 = arith.constant 2 : index
    %91 = vector.load %arg13[%c0_59, %c2] : memref<64x3xf32, #tpu.memory_space<vmem>>, vector<64x1xf32>
    %92 = vector.broadcast %91 : vector<64x1xf32> to vector<64x16xf32>
    %93 = arith.mulf %90, %92 : vector<64x16xf32>
    %c6 = arith.constant 6 : index
    %c0_60 = arith.constant 0 : index
    %94 = vector.load %arg17[%c6, %c0_60] : memref<27x16xf32, #tpu.memory_space<vmem>>, vector<3x16xf32>
    %cst_61 = arith.constant dense<0.000000e+00> : vector<12x16xf32>
    %95 = tpu.matmul %66, %94, %cst_61 {dimension_numbers = #tpu.dot_dimension_numbers<[1], [0], [0], [1], [0, 0, 1, 1], [], []>} : vector<12x3xf32>, vector<3x16xf32>, vector<12x16xf32> -> vector<12x16xf32>
    %96 = arith.mulf %95, %67 : vector<12x16xf32>
    %cst_62 = arith.constant dense<0.000000e+00> : vector<64x12xf32>
    %97 = tpu.matmul %93, %96, %cst_62 {dimension_numbers = #tpu.dot_dimension_numbers<[1], [1], [0], [0], [0, 0, 1, 0], [], []>} : vector<64x16xf32>, vector<12x16xf32>, vector<64x12xf32> -> vector<64x12xf32>
    %98 = arith.addf %89, %97 : vector<64x12xf32>
    %c15 = arith.constant 15 : index
    %c0_63 = arith.constant 0 : index
    %99 = vector.load %arg15[%c15, %c0_63] : memref<96x16xf32, #tpu.memory_space<vmem>>, vector<64x16xf32>
    %c0_64 = arith.constant 0 : index
    %c0_65 = arith.constant 0 : index
    %100 = vector.load %arg13[%c0_64, %c0_65] : memref<64x3xf32, #tpu.memory_space<vmem>>, vector<64x1xf32>
    %101 = vector.broadcast %100 : vector<64x1xf32> to vector<64x16xf32>
    %102 = arith.mulf %99, %101 : vector<64x16xf32>
    %c9_66 = arith.constant 9 : index
    %c0_67 = arith.constant 0 : index
    %103 = vector.load %arg17[%c9_66, %c0_67] : memref<27x16xf32, #tpu.memory_space<vmem>>, vector<3x16xf32>
    %cst_68 = arith.constant dense<0.000000e+00> : vector<12x16xf32>
    %104 = tpu.matmul %66, %103, %cst_68 {dimension_numbers = #tpu.dot_dimension_numbers<[1], [0], [0], [1], [0, 0, 1, 1], [], []>} : vector<12x3xf32>, vector<3x16xf32>, vector<12x16xf32> -> vector<12x16xf32>
    %105 = arith.mulf %104, %67 : vector<12x16xf32>
    %cst_69 = arith.constant dense<0.000000e+00> : vector<64x12xf32>
    %106 = tpu.matmul %102, %105, %cst_69 {dimension_numbers = #tpu.dot_dimension_numbers<[1], [1], [0], [0], [0, 0, 1, 0], [], []>} : vector<64x16xf32>, vector<12x16xf32>, vector<64x12xf32> -> vector<64x12xf32>
    %107 = arith.addf %98, %106 : vector<64x12xf32>
    %c16_70 = arith.constant 16 : index
    %c0_71 = arith.constant 0 : index
    %108 = vector.load %arg15[%c16_70, %c0_71] : memref<96x16xf32, #tpu.memory_space<vmem>>, vector<64x16xf32>
    %c0_72 = arith.constant 0 : index
    %c1_73 = arith.constant 1 : index
    %109 = vector.load %arg13[%c0_72, %c1_73] : memref<64x3xf32, #tpu.memory_space<vmem>>, vector<64x1xf32>
    %110 = vector.broadcast %109 : vector<64x1xf32> to vector<64x16xf32>
    %111 = arith.mulf %108, %110 : vector<64x16xf32>
    %c12 = arith.constant 12 : index
    %c0_74 = arith.constant 0 : index
    %112 = vector.load %arg17[%c12, %c0_74] : memref<27x16xf32, #tpu.memory_space<vmem>>, vector<3x16xf32>
    %cst_75 = arith.constant dense<0.000000e+00> : vector<12x16xf32>
    %113 = tpu.matmul %66, %112, %cst_75 {dimension_numbers = #tpu.dot_dimension_numbers<[1], [0], [0], [1], [0, 0, 1, 1], [], []>} : vector<12x3xf32>, vector<3x16xf32>, vector<12x16xf32> -> vector<12x16xf32>
    %114 = arith.mulf %113, %67 : vector<12x16xf32>
    %cst_76 = arith.constant dense<0.000000e+00> : vector<64x12xf32>
    %115 = tpu.matmul %111, %114, %cst_76 {dimension_numbers = #tpu.dot_dimension_numbers<[1], [1], [0], [0], [0, 0, 1, 0], [], []>} : vector<64x16xf32>, vector<12x16xf32>, vector<64x12xf32> -> vector<64x12xf32>
    %116 = arith.addf %107, %115 : vector<64x12xf32>
    %c17 = arith.constant 17 : index
    %c0_77 = arith.constant 0 : index
    %117 = vector.load %arg15[%c17, %c0_77] : memref<96x16xf32, #tpu.memory_space<vmem>>, vector<64x16xf32>
    %c0_78 = arith.constant 0 : index
    %c2_79 = arith.constant 2 : index
    %118 = vector.load %arg13[%c0_78, %c2_79] : memref<64x3xf32, #tpu.memory_space<vmem>>, vector<64x1xf32>
    %119 = vector.broadcast %118 : vector<64x1xf32> to vector<64x16xf32>
    %120 = arith.mulf %117, %119 : vector<64x16xf32>
    %c15_80 = arith.constant 15 : index
    %c0_81 = arith.constant 0 : index
    %121 = vector.load %arg17[%c15_80, %c0_81] : memref<27x16xf32, #tpu.memory_space<vmem>>, vector<3x16xf32>
    %cst_82 = arith.constant dense<0.000000e+00> : vector<12x16xf32>
    %122 = tpu.matmul %66, %121, %cst_82 {dimension_numbers = #tpu.dot_dimension_numbers<[1], [0], [0], [1], [0, 0, 1, 1], [], []>} : vector<12x3xf32>, vector<3x16xf32>, vector<12x16xf32> -> vector<12x16xf32>
    %123 = arith.mulf %122, %67 : vector<12x16xf32>
    %cst_83 = arith.constant dense<0.000000e+00> : vector<64x12xf32>
    %124 = tpu.matmul %120, %123, %cst_83 {dimension_numbers = #tpu.dot_dimension_numbers<[1], [1], [0], [0], [0, 0, 1, 0], [], []>} : vector<64x16xf32>, vector<12x16xf32>, vector<64x12xf32> -> vector<64x12xf32>
    %125 = arith.addf %116, %124 : vector<64x12xf32>
    %c23 = arith.constant 23 : index
    %c0_84 = arith.constant 0 : index
    %126 = vector.load %arg15[%c23, %c0_84] : memref<96x16xf32, #tpu.memory_space<vmem>>, vector<64x16xf32>
    %c0_85 = arith.constant 0 : index
    %c0_86 = arith.constant 0 : index
    %127 = vector.load %arg13[%c0_85, %c0_86] : memref<64x3xf32, #tpu.memory_space<vmem>>, vector<64x1xf32>
    %128 = vector.broadcast %127 : vector<64x1xf32> to vector<64x16xf32>
    %129 = arith.mulf %126, %128 : vector<64x16xf32>
    %c18 = arith.constant 18 : index
    %c0_87 = arith.constant 0 : index
    %130 = vector.load %arg17[%c18, %c0_87] : memref<27x16xf32, #tpu.memory_space<vmem>>, vector<3x16xf32>
    %cst_88 = arith.constant dense<0.000000e+00> : vector<12x16xf32>
    %131 = tpu.matmul %66, %130, %cst_88 {dimension_numbers = #tpu.dot_dimension_numbers<[1], [0], [0], [1], [0, 0, 1, 1], [], []>} : vector<12x3xf32>, vector<3x16xf32>, vector<12x16xf32> -> vector<12x16xf32>
    %132 = arith.mulf %131, %67 : vector<12x16xf32>
    %cst_89 = arith.constant dense<0.000000e+00> : vector<64x12xf32>
    %133 = tpu.matmul %129, %132, %cst_89 {dimension_numbers = #tpu.dot_dimension_numbers<[1], [1], [0], [0], [0, 0, 1, 0], [], []>} : vector<64x16xf32>, vector<12x16xf32>, vector<64x12xf32> -> vector<64x12xf32>
    %134 = arith.addf %125, %133 : vector<64x12xf32>
    %c24 = arith.constant 24 : index
    %c0_90 = arith.constant 0 : index
    %135 = vector.load %arg15[%c24, %c0_90] : memref<96x16xf32, #tpu.memory_space<vmem>>, vector<64x16xf32>
    %c0_91 = arith.constant 0 : index
    %c1_92 = arith.constant 1 : index
    %136 = vector.load %arg13[%c0_91, %c1_92] : memref<64x3xf32, #tpu.memory_space<vmem>>, vector<64x1xf32>
    %137 = vector.broadcast %136 : vector<64x1xf32> to vector<64x16xf32>
    %138 = arith.mulf %135, %137 : vector<64x16xf32>
    %c21 = arith.constant 21 : index
    %c0_93 = arith.constant 0 : index
    %139 = vector.load %arg17[%c21, %c0_93] : memref<27x16xf32, #tpu.memory_space<vmem>>, vector<3x16xf32>
    %cst_94 = arith.constant dense<0.000000e+00> : vector<12x16xf32>
    %140 = tpu.matmul %66, %139, %cst_94 {dimension_numbers = #tpu.dot_dimension_numbers<[1], [0], [0], [1], [0, 0, 1, 1], [], []>} : vector<12x3xf32>, vector<3x16xf32>, vector<12x16xf32> -> vector<12x16xf32>
    %141 = arith.mulf %140, %67 : vector<12x16xf32>
    %cst_95 = arith.constant dense<0.000000e+00> : vector<64x12xf32>
    %142 = tpu.matmul %138, %141, %cst_95 {dimension_numbers = #tpu.dot_dimension_numbers<[1], [1], [0], [0], [0, 0, 1, 0], [], []>} : vector<64x16xf32>, vector<12x16xf32>, vector<64x12xf32> -> vector<64x12xf32>
    %143 = arith.addf %134, %142 : vector<64x12xf32>
    %c25 = arith.constant 25 : index
    %c0_96 = arith.constant 0 : index
    %144 = vector.load %arg15[%c25, %c0_96] : memref<96x16xf32, #tpu.memory_space<vmem>>, vector<64x16xf32>
    %c0_97 = arith.constant 0 : index
    %c2_98 = arith.constant 2 : index
    %145 = vector.load %arg13[%c0_97, %c2_98] : memref<64x3xf32, #tpu.memory_space<vmem>>, vector<64x1xf32>
    %146 = vector.broadcast %145 : vector<64x1xf32> to vector<64x16xf32>
    %147 = arith.mulf %144, %146 : vector<64x16xf32>
    %c24_99 = arith.constant 24 : index
    %c0_100 = arith.constant 0 : index
    %148 = vector.load %arg17[%c24_99, %c0_100] : memref<27x16xf32, #tpu.memory_space<vmem>>, vector<3x16xf32>
    %cst_101 = arith.constant dense<0.000000e+00> : vector<12x16xf32>
    %149 = tpu.matmul %66, %148, %cst_101 {dimension_numbers = #tpu.dot_dimension_numbers<[1], [0], [0], [1], [0, 0, 1, 1], [], []>} : vector<12x3xf32>, vector<3x16xf32>, vector<12x16xf32> -> vector<12x16xf32>
    %150 = arith.mulf %149, %67 : vector<12x16xf32>
    %cst_102 = arith.constant dense<0.000000e+00> : vector<64x12xf32>
    %151 = tpu.matmul %147, %150, %cst_102 {dimension_numbers = #tpu.dot_dimension_numbers<[1], [1], [0], [0], [0, 0, 1, 0], [], []>} : vector<64x16xf32>, vector<12x16xf32>, vector<64x12xf32> -> vector<64x12xf32>
    %152 = arith.addf %143, %151 : vector<64x12xf32>
    %cst_103 = arith.constant 0.0833333358 : f32
    %153 = vector.broadcast %cst_103 : f32 to vector<64x12xf32>
    %154 = arith.mulf %152, %153 : vector<64x12xf32>
    %155 = math.exp %154 : vector<64x12xf32>
    %cst_104 = arith.constant dense<0xFF800000> : vector<12xf32>
    %156 = vector.multi_reduction <maximumf>, %155, %cst_104 [0] : vector<64x12xf32> to vector<12xf32>
    %157 = vector.shape_cast %156 : vector<12xf32> to vector<1x12xf32>
    %158 = tpu.reciprocal %157 {approx = true} : vector<1x12xf32> -> vector<1x12xf32>
    %159 = vector.broadcast %158 : vector<1x12xf32> to vector<64x12xf32>
    %160 = arith.mulf %155, %159 : vector<64x12xf32>
    %c0_105 = arith.constant 0 : index
    %c0_106 = arith.constant 0 : index
    %161 = vector.load %arg12[%c0_105, %c0_106] : memref<12x12xf32, #tpu.memory_space<vmem>>, vector<12x12xf32>
    %cst_107 = arith.constant dense<0.000000e+00> : vector<64x12xf32>
    %162 = tpu.matmul %155, %161, %cst_107 {dimension_numbers = #tpu.dot_dimension_numbers<[1], [0], [0], [1], [0, 0, 1, 1], [], []>} : vector<64x12xf32>, vector<12x12xf32>, vector<64x12xf32> -> vector<64x12xf32>
    %163 = tpu.reciprocal %162 {approx = true} : vector<64x12xf32> -> vector<64x12xf32>
    %164 = arith.mulf %155, %163 : vector<64x12xf32>
    %165 = arith.mulf %160, %164 : vector<64x12xf32>
    %cst_108 = arith.constant 0.000000e+00 : f32
    %166 = vector.broadcast %cst_108 : f32 to vector<96x12xf32>
    %c0_109 = arith.constant 0 : index
    %c0_110 = arith.constant 0 : index
    %167 = vector.load %arg16[%c0_109, %c0_110] : memref<96x12xf32, #tpu.memory_space<vmem>>, vector<96x12xf32>
    tpu.vector_store %arg16[%c0_109, %c0_110], %166 {strides = array<i32>} : memref<96x12xf32, #tpu.memory_space<vmem>>, vector<96x12xf32>,
    %c16_111 = arith.constant 16 : index
    %c0_112 = arith.constant 0 : index
    %168 = vector.load %arg16[%c16_111, %c0_112] : memref<96x12xf32, #tpu.memory_space<vmem>>, vector<64x12xf32>
    tpu.vector_store %arg16[%c16_111, %c0_112], %165 {strides = array<i32>} : memref<96x12xf32, #tpu.memory_space<vmem>>, vector<64x12xf32>,
    %cst_113 = arith.constant 0.000000e+00 : f32
    %169 = vector.broadcast %cst_113 : f32 to vector<64x16xf32>
    %c7_114 = arith.constant 7 : index
    %c0_115 = arith.constant 0 : index
    %170 = vector.load %arg16[%c7_114, %c0_115] : memref<96x12xf32, #tpu.memory_space<vmem>>, vector<64x12xf32>
    %c0_116 = arith.constant 0 : index
    %c0_117 = arith.constant 0 : index
    %171 = vector.load %arg13[%c0_116, %c0_117] : memref<64x3xf32, #tpu.memory_space<vmem>>, vector<64x1xf32>
    %172 = vector.broadcast %171 : vector<64x1xf32> to vector<64x12xf32>
    %173 = arith.mulf %170, %172 : vector<64x12xf32>
    %c24_118 = arith.constant 24 : index
    %c0_119 = arith.constant 0 : index
    %174 = vector.load %arg18[%c24_118, %c0_119] : memref<27x16xf32, #tpu.memory_space<vmem>>, vector<3x16xf32>
    %cst_120 = arith.constant dense<0.000000e+00> : vector<12x16xf32>
    %175 = tpu.matmul %66, %174, %cst_120 {dimension_numbers = #tpu.dot_dimension_numbers<[1], [0], [0], [1], [0, 0, 1, 1], [], []>} : vector<12x3xf32>, vector<3x16xf32>, vector<12x16xf32> -> vector<12x16xf32>
    %176 = arith.mulf %175, %67 : vector<12x16xf32>
    %cst_121 = arith.constant dense<0.000000e+00> : vector<64x16xf32>
    %177 = tpu.matmul %173, %176, %cst_121 {dimension_numbers = #tpu.dot_dimension_numbers<[1], [0], [0], [1], [0, 0, 1, 1], [], []>} : vector<64x12xf32>, vector<12x16xf32>, vector<64x16xf32> -> vector<64x16xf32>
    %178 = arith.addf %169, %177 : vector<64x16xf32>
    %c8_122 = arith.constant 8 : index
    %c0_123 = arith.constant 0 : index
    %179 = vector.load %arg16[%c8_122, %c0_123] : memref<96x12xf32, #tpu.memory_space<vmem>>, vector<64x12xf32>
    %c0_124 = arith.constant 0 : index
    %c1_125 = arith.constant 1 : index
    %180 = vector.load %arg13[%c0_124, %c1_125] : memref<64x3xf32, #tpu.memory_space<vmem>>, vector<64x1xf32>
    %181 = vector.broadcast %180 : vector<64x1xf32> to vector<64x12xf32>
    %182 = arith.mulf %179, %181 : vector<64x12xf32>
    %c21_126 = arith.constant 21 : index
    %c0_127 = arith.constant 0 : index
    %183 = vector.load %arg18[%c21_126, %c0_127] : memref<27x16xf32, #tpu.memory_space<vmem>>, vector<3x16xf32>
    %cst_128 = arith.constant dense<0.000000e+00> : vector<12x16xf32>
    %184 = tpu.matmul %66, %183, %cst_128 {dimension_numbers = #tpu.dot_dimension_numbers<[1], [0], [0], [1], [0, 0, 1, 1], [], []>} : vector<12x3xf32>, vector<3x16xf32>, vector<12x16xf32> -> vector<12x16xf32>
    %185 = arith.mulf %184, %67 : vector<12x16xf32>
    %cst_129 = arith.constant dense<0.000000e+00> : vector<64x16xf32>
    %186 = tpu.matmul %182, %185, %cst_129 {dimension_numbers = #tpu.dot_dimension_numbers<[1], [0], [0], [1], [0, 0, 1, 1], [], []>} : vector<64x12xf32>, vector<12x16xf32>, vector<64x16xf32> -> vector<64x16xf32>
    %187 = arith.addf %178, %186 : vector<64x16xf32>
    %c9_130 = arith.constant 9 : index
    %c0_131 = arith.constant 0 : index
    %188 = vector.load %arg16[%c9_130, %c0_131] : memref<96x12xf32, #tpu.memory_space<vmem>>, vector<64x12xf32>
    %c0_132 = arith.constant 0 : index
    %c2_133 = arith.constant 2 : index
    %189 = vector.load %arg13[%c0_132, %c2_133] : memref<64x3xf32, #tpu.memory_space<vmem>>, vector<64x1xf32>
    %190 = vector.broadcast %189 : vector<64x1xf32> to vector<64x12xf32>
    %191 = arith.mulf %188, %190 : vector<64x12xf32>
    %c18_134 = arith.constant 18 : index
    %c0_135 = arith.constant 0 : index
    %192 = vector.load %arg18[%c18_134, %c0_135] : memref<27x16xf32, #tpu.memory_space<vmem>>, vector<3x16xf32>
    %cst_136 = arith.constant dense<0.000000e+00> : vector<12x16xf32>
    %193 = tpu.matmul %66, %192, %cst_136 {dimension_numbers = #tpu.dot_dimension_numbers<[1], [0], [0], [1], [0, 0, 1, 1], [], []>} : vector<12x3xf32>, vector<3x16xf32>, vector<12x16xf32> -> vector<12x16xf32>
    %194 = arith.mulf %193, %67 : vector<12x16xf32>
    %cst_137 = arith.constant dense<0.000000e+00> : vector<64x16xf32>
    %195 = tpu.matmul %191, %194, %cst_137 {dimension_numbers = #tpu.dot_dimension_numbers<[1], [0], [0], [1], [0, 0, 1, 1], [], []>} : vector<64x12xf32>, vector<12x16xf32>, vector<64x16xf32> -> vector<64x16xf32>
    %196 = arith.addf %187, %195 : vector<64x16xf32>
    %c15_138 = arith.constant 15 : index
    %c0_139 = arith.constant 0 : index
    %197 = vector.load %arg16[%c15_138, %c0_139] : memref<96x12xf32, #tpu.memory_space<vmem>>, vector<64x12xf32>
    %c0_140 = arith.constant 0 : index
    %c0_141 = arith.constant 0 : index
    %198 = vector.load %arg13[%c0_140, %c0_141] : memref<64x3xf32, #tpu.memory_space<vmem>>, vector<64x1xf32>
    %199 = vector.broadcast %198 : vector<64x1xf32> to vector<64x12xf32>
    %200 = arith.mulf %197, %199 : vector<64x12xf32>
    %c15_142 = arith.constant 15 : index
    %c0_143 = arith.constant 0 : index
    %201 = vector.load %arg18[%c15_142, %c0_143] : memref<27x16xf32, #tpu.memory_space<vmem>>, vector<3x16xf32>
    %cst_144 = arith.constant dense<0.000000e+00> : vector<12x16xf32>
    %202 = tpu.matmul %66, %201, %cst_144 {dimension_numbers = #tpu.dot_dimension_numbers<[1], [0], [0], [1], [0, 0, 1, 1], [], []>} : vector<12x3xf32>, vector<3x16xf32>, vector<12x16xf32> -> vector<12x16xf32>
    %203 = arith.mulf %202, %67 : vector<12x16xf32>
    %cst_145 = arith.constant dense<0.000000e+00> : vector<64x16xf32>
    %204 = tpu.matmul %200, %203, %cst_145 {dimension_numbers = #tpu.dot_dimension_numbers<[1], [0], [0], [1], [0, 0, 1, 1], [], []>} : vector<64x12xf32>, vector<12x16xf32>, vector<64x16xf32> -> vector<64x16xf32>
    %205 = arith.addf %196, %204 : vector<64x16xf32>
    %c16_146 = arith.constant 16 : index
    %c0_147 = arith.constant 0 : index
    %206 = vector.load %arg16[%c16_146, %c0_147] : memref<96x12xf32, #tpu.memory_space<vmem>>, vector<64x12xf32>
    %c0_148 = arith.constant 0 : index
    %c1_149 = arith.constant 1 : index
    %207 = vector.load %arg13[%c0_148, %c1_149] : memref<64x3xf32, #tpu.memory_space<vmem>>, vector<64x1xf32>
    %208 = vector.broadcast %207 : vector<64x1xf32> to vector<64x12xf32>
    %209 = arith.mulf %206, %208 : vector<64x12xf32>
    %c12_150 = arith.constant 12 : index
    %c0_151 = arith.constant 0 : index
    %210 = vector.load %arg18[%c12_150, %c0_151] : memref<27x16xf32, #tpu.memory_space<vmem>>, vector<3x16xf32>
    %cst_152 = arith.constant dense<0.000000e+00> : vector<12x16xf32>
    %211 = tpu.matmul %66, %210, %cst_152 {dimension_numbers = #tpu.dot_dimension_numbers<[1], [0], [0], [1], [0, 0, 1, 1], [], []>} : vector<12x3xf32>, vector<3x16xf32>, vector<12x16xf32> -> vector<12x16xf32>
    %212 = arith.mulf %211, %67 : vector<12x16xf32>
    %cst_153 = arith.constant dense<0.000000e+00> : vector<64x16xf32>
    %213 = tpu.matmul %209, %212, %cst_153 {dimension_numbers = #tpu.dot_dimension_numbers<[1], [0], [0], [1], [0, 0, 1, 1], [], []>} : vector<64x12xf32>, vector<12x16xf32>, vector<64x16xf32> -> vector<64x16xf32>
    %214 = arith.addf %205, %213 : vector<64x16xf32>
    %c17_154 = arith.constant 17 : index
    %c0_155 = arith.constant 0 : index
    %215 = vector.load %arg16[%c17_154, %c0_155] : memref<96x12xf32, #tpu.memory_space<vmem>>, vector<64x12xf32>
    %c0_156 = arith.constant 0 : index
    %c2_157 = arith.constant 2 : index
    %216 = vector.load %arg13[%c0_156, %c2_157] : memref<64x3xf32, #tpu.memory_space<vmem>>, vector<64x1xf32>
    %217 = vector.broadcast %216 : vector<64x1xf32> to vector<64x12xf32>
    %218 = arith.mulf %215, %217 : vector<64x12xf32>
    %c9_158 = arith.constant 9 : index
    %c0_159 = arith.constant 0 : index
    %219 = vector.load %arg18[%c9_158, %c0_159] : memref<27x16xf32, #tpu.memory_space<vmem>>, vector<3x16xf32>
    %cst_160 = arith.constant dense<0.000000e+00> : vector<12x16xf32>
    %220 = tpu.matmul %66, %219, %cst_160 {dimension_numbers = #tpu.dot_dimension_numbers<[1], [0], [0], [1], [0, 0, 1, 1], [], []>} : vector<12x3xf32>, vector<3x16xf32>, vector<12x16xf32> -> vector<12x16xf32>
    %221 = arith.mulf %220, %67 : vector<12x16xf32>
    %cst_161 = arith.constant dense<0.000000e+00> : vector<64x16xf32>
    %222 = tpu.matmul %218, %221, %cst_161 {dimension_numbers = #tpu.dot_dimension_numbers<[1], [0], [0], [1], [0, 0, 1, 1], [], []>} : vector<64x12xf32>, vector<12x16xf32>, vector<64x16xf32> -> vector<64x16xf32>
    %223 = arith.addf %214, %222 : vector<64x16xf32>
    %c23_162 = arith.constant 23 : index
    %c0_163 = arith.constant 0 : index
    %224 = vector.load %arg16[%c23_162, %c0_163] : memref<96x12xf32, #tpu.memory_space<vmem>>, vector<64x12xf32>
    %c0_164 = arith.constant 0 : index
    %c0_165 = arith.constant 0 : index
    %225 = vector.load %arg13[%c0_164, %c0_165] : memref<64x3xf32, #tpu.memory_space<vmem>>, vector<64x1xf32>
    %226 = vector.broadcast %225 : vector<64x1xf32> to vector<64x12xf32>
    %227 = arith.mulf %224, %226 : vector<64x12xf32>
    %c6_166 = arith.constant 6 : index
    %c0_167 = arith.constant 0 : index
    %228 = vector.load %arg18[%c6_166, %c0_167] : memref<27x16xf32, #tpu.memory_space<vmem>>, vector<3x16xf32>
    %cst_168 = arith.constant dense<0.000000e+00> : vector<12x16xf32>
    %229 = tpu.matmul %66, %228, %cst_168 {dimension_numbers = #tpu.dot_dimension_numbers<[1], [0], [0], [1], [0, 0, 1, 1], [], []>} : vector<12x3xf32>, vector<3x16xf32>, vector<12x16xf32> -> vector<12x16xf32>
    %230 = arith.mulf %229, %67 : vector<12x16xf32>
    %cst_169 = arith.constant dense<0.000000e+00> : vector<64x16xf32>
    %231 = tpu.matmul %227, %230, %cst_169 {dimension_numbers = #tpu.dot_dimension_numbers<[1], [0], [0], [1], [0, 0, 1, 1], [], []>} : vector<64x12xf32>, vector<12x16xf32>, vector<64x16xf32> -> vector<64x16xf32>
    %232 = arith.addf %223, %231 : vector<64x16xf32>
    %c24_170 = arith.constant 24 : index
    %c0_171 = arith.constant 0 : index
    %233 = vector.load %arg16[%c24_170, %c0_171] : memref<96x12xf32, #tpu.memory_space<vmem>>, vector<64x12xf32>
    %c0_172 = arith.constant 0 : index
    %c1_173 = arith.constant 1 : index
    %234 = vector.load %arg13[%c0_172, %c1_173] : memref<64x3xf32, #tpu.memory_space<vmem>>, vector<64x1xf32>
    %235 = vector.broadcast %234 : vector<64x1xf32> to vector<64x12xf32>
    %236 = arith.mulf %233, %235 : vector<64x12xf32>
    %c3_174 = arith.constant 3 : index
    %c0_175 = arith.constant 0 : index
    %237 = vector.load %arg18[%c3_174, %c0_175] : memref<27x16xf32, #tpu.memory_space<vmem>>, vector<3x16xf32>
    %cst_176 = arith.constant dense<0.000000e+00> : vector<12x16xf32>
    %238 = tpu.matmul %66, %237, %cst_176 {dimension_numbers = #tpu.dot_dimension_numbers<[1], [0], [0], [1], [0, 0, 1, 1], [], []>} : vector<12x3xf32>, vector<3x16xf32>, vector<12x16xf32> -> vector<12x16xf32>
    %239 = arith.mulf %238, %67 : vector<12x16xf32>
    %cst_177 = arith.constant dense<0.000000e+00> : vector<64x16xf32>
    %240 = tpu.matmul %236, %239, %cst_177 {dimension_numbers = #tpu.dot_dimension_numbers<[1], [0], [0], [1], [0, 0, 1, 1], [], []>} : vector<64x12xf32>, vector<12x16xf32>, vector<64x16xf32> -> vector<64x16xf32>
    %241 = arith.addf %232, %240 : vector<64x16xf32>
    %c25_178 = arith.constant 25 : index
    %c0_179 = arith.constant 0 : index
    %242 = vector.load %arg16[%c25_178, %c0_179] : memref<96x12xf32, #tpu.memory_space<vmem>>, vector<64x12xf32>
    %c0_180 = arith.constant 0 : index
    %c2_181 = arith.constant 2 : index
    %243 = vector.load %arg13[%c0_180, %c2_181] : memref<64x3xf32, #tpu.memory_space<vmem>>, vector<64x1xf32>
    %244 = vector.broadcast %243 : vector<64x1xf32> to vector<64x12xf32>
    %245 = arith.mulf %242, %244 : vector<64x12xf32>
    %c0_182 = arith.constant 0 : index
    %c0_183 = arith.constant 0 : index
    %246 = vector.load %arg18[%c0_182, %c0_183] : memref<27x16xf32, #tpu.memory_space<vmem>>, vector<3x16xf32>
    %cst_184 = arith.constant dense<0.000000e+00> : vector<12x16xf32>
    %247 = tpu.matmul %66, %246, %cst_184 {dimension_numbers = #tpu.dot_dimension_numbers<[1], [0], [0], [1], [0, 0, 1, 1], [], []>} : vector<12x3xf32>, vector<3x16xf32>, vector<12x16xf32> -> vector<12x16xf32>
    %248 = arith.mulf %247, %67 : vector<12x16xf32>
    %cst_185 = arith.constant dense<0.000000e+00> : vector<64x16xf32>
    %249 = tpu.matmul %245, %248, %cst_185 {dimension_numbers = #tpu.dot_dimension_numbers<[1], [0], [0], [1], [0, 0, 1, 1], [], []>} : vector<64x12xf32>, vector<12x16xf32>, vector<64x16xf32> -> vector<64x16xf32>
    %250 = arith.addf %241, %249 : vector<64x16xf32>
    %c0_186 = arith.constant 0 : index
    %c0_187 = arith.constant 0 : index
    %251 = vector.load %arg8[%c0_186, %c0_187] : memref<16x16xf32, #tpu.memory_space<vmem>>, vector<16x16xf32>
    %cst_188 = arith.constant dense<0.000000e+00> : vector<64x16xf32>
    %252 = tpu.matmul %250, %251, %cst_188 {dimension_numbers = #tpu.dot_dimension_numbers<[1], [1], [0], [0], [0, 0, 1, 0], [], []>} : vector<64x16xf32>, vector<16x16xf32>, vector<64x16xf32> -> vector<64x16xf32>
    %c0_189 = arith.constant 0 : index
    %c0_190 = arith.constant 0 : index
    %253 = vector.load %arg9[%c0_189, %c0_190] : memref<1x16xf32, #tpu.memory_space<vmem>>, vector<1x16xf32>
    %254 = vector.broadcast %253 : vector<1x16xf32> to vector<64x16xf32>
    %255 = arith.addf %252, %254 : vector<64x16xf32>
    %c0_191 = arith.constant 0 : index
    %c0_192 = arith.constant 0 : index
    %256 = vector.load %arg14[%c0_191, %c0_192] : memref<64x16xf32, #tpu.memory_space<vmem>>, vector<64x16xf32>
    tpu.vector_store %arg14[%c0_191, %c0_192], %255 {strides = array<i32>} : memref<64x16xf32, #tpu.memory_space<vmem>>, vector<64x16xf32>,
    return
  }
  func.func @transform_0(%arg0: i32) -> (i32, i32) {
    %c0_i32 = arith.constant 0 : i32
    %c0_i32_0 = arith.constant 0 : i32
    %c0_i32_1 = arith.constant 0 : i32
    return %c0_i32, %c0_i32_0 : i32, i32
  }
  func.func @transform_1(%arg0: i32) -> (i32, i32) {
    %c0_i32 = arith.constant 0 : i32
    %c0_i32_0 = arith.constant 0 : i32
    %c0_i32_1 = arith.constant 0 : i32
    return %c0_i32, %c0_i32_0 : i32, i32
  }
  func.func @transform_2(%arg0: i32) -> (i32, i32) {
    %c0_i32 = arith.constant 0 : i32
    %c0_i32_0 = arith.constant 0 : i32
    %c0_i32_1 = arith.constant 0 : i32
    return %c0_i32, %c0_i32_0 : i32, i32
  }
  func.func @transform_3(%arg0: i32) -> (i32, i32) {
    %c0_i32 = arith.constant 0 : i32
    %c0_i32_0 = arith.constant 0 : i32
    %c0_i32_1 = arith.constant 0 : i32
    return %c0_i32, %c0_i32_0 : i32, i32
  }
  func.func @transform_4(%arg0: i32) -> (i32, i32) {
    %c0_i32 = arith.constant 0 : i32
    %c0_i32_0 = arith.constant 0 : i32
    %c0_i32_1 = arith.constant 0 : i32
    return %c0_i32, %c0_i32_0 : i32, i32
  }
  func.func @transform_5(%arg0: i32) -> (i32, i32) {
    %c0_i32 = arith.constant 0 : i32
    %c0_i32_0 = arith.constant 0 : i32
    %c0_i32_1 = arith.constant 0 : i32
    return %c0_i32, %c0_i32_0 : i32, i32
  }
  func.func @transform_6(%arg0: i32) -> (i32, i32) {
    %c0_i32 = arith.constant 0 : i32
    %c0_i32_0 = arith.constant 0 : i32
    %c0_i32_1 = arith.constant 0 : i32
    return %c0_i32, %c0_i32_0 : i32, i32
  }
  func.func @transform_7(%arg0: i32) -> (i32, i32) {
    %c0_i32 = arith.constant 0 : i32
    %c0_i32_0 = arith.constant 0 : i32
    %c0_i32_1 = arith.constant 0 : i32
    return %c0_i32, %c0_i32_0 : i32, i32
  }
  func.func @transform_8(%arg0: i32) -> (i32, i32) {
    %c0_i32 = arith.constant 0 : i32
    %c0_i32_0 = arith.constant 0 : i32
    %c0_i32_1 = arith.constant 0 : i32
    return %c0_i32, %c0_i32_0 : i32, i32
  }
  func.func @transform_9(%arg0: i32) -> (i32, i32) {
    %c0_i32 = arith.constant 0 : i32
    %c0_i32_0 = arith.constant 0 : i32
    %c0_i32_1 = arith.constant 0 : i32
    return %c0_i32, %c0_i32_0 : i32, i32
  }
  func.func @transform_10(%arg0: i32) -> (i32, i32) {
    %c0_i32 = arith.constant 0 : i32
    %c0_i32_0 = arith.constant 0 : i32
    %c0_i32_1 = arith.constant 0 : i32
    return %c0_i32, %c0_i32_0 : i32, i32
  }
  func.func @transform_11(%arg0: i32) -> (i32, i32) {
    %c0_i32 = arith.constant 0 : i32
    %c0_i32_0 = arith.constant 0 : i32
    %c0_i32_1 = arith.constant 0 : i32
    return %c0_i32, %c0_i32_0 : i32, i32
  }
  func.func @transform_12(%arg0: i32) -> (i32, i32) {
    %c0_i32 = arith.constant 0 : i32
    %c0_i32_0 = arith.constant 0 : i32
    %c0_i32_1 = arith.constant 0 : i32
    return %c0_i32, %c0_i32_0 : i32, i32
  }
  func.func @transform_13(%arg0: i32) -> (i32, i32) {
    %c0_i32 = arith.constant 0 : i32
    %c0_i32_0 = arith.constant 0 : i32
    %c0_i32_1 = arith.constant 0 : i32
    return %c0_i32, %c0_i32_0 : i32, i32
  }
}

</mosaic_0001>

<llo_original>
// kernel: similarity_weighted_aggregation.1
$region0: #{similarity_weighted_aggregation.1}
  #allocation0 [shape = 'u32[]', space=smem, size = 0x4, offset = 0x4, fixed_abs, tag = 'smem constant byte address 0x4 - core index']
  #allocation1 [shape = 'u32[144,128]{1,0:T(1,128)}', space=vmem, size = 0x12000, scoped, tag = 'internal scratch']
  #allocation2 [shape = 'f32[96,16]{1,0:T(8,128)}', space=vmem, size = 0xc000, scoped, tag = 'scratch operand']
  #allocation3 [shape = 'f32[96,12]{1,0:T(8,128)}', space=vmem, size = 0xc000, scoped, tag = 'scratch operand']
  #allocation4 [shape = 'f32[27,16]{1,0:T(8,128)}', space=vmem, size = 0x4000, scoped, tag = 'scratch operand']
  #allocation5 [shape = 'f32[27,16]{1,0:T(8,128)}', space=vmem, size = 0x4000, scoped, tag = 'scratch operand']
  %s0 = inlined_call_operand.vmem [shape: f32[64,16], index: 0, kind: input, shape index: {}]
  %s1 = inlined_call_operand.vmem [shape: f32[27,16], index: 1, kind: input, shape index: {}]
  %s2 = inlined_call_operand.vmem [shape: f32[27,16], index: 2, kind: input, shape index: {}]
  %s3 = inlined_call_operand.vmem [shape: f32[16,16], index: 3, kind: input, shape index: {}]
  %s4 = inlined_call_operand.vmem [shape: f32[1,16], index: 4, kind: input, shape index: {}]
  %s5 = inlined_call_operand.vmem [shape: f32[1,16], index: 5, kind: input, shape index: {}]
  %s6 = inlined_call_operand.vmem [shape: f32[1,16], index: 6, kind: input, shape index: {}]
  %s7 = inlined_call_operand.vmem [shape: f32[16,16], index: 7, kind: input, shape index: {}]
  %s8 = inlined_call_operand.vmem [shape: f32[1,16], index: 8, kind: input, shape index: {}]
  %s9 = inlined_call_operand.vmem [shape: f32[12,3], index: 9, kind: input, shape index: {}]
  %s10 = inlined_call_operand.vmem [shape: f32[12,16], index: 10, kind: input, shape index: {}]
  %s11 = inlined_call_operand.vmem [shape: f32[12,12], index: 11, kind: input, shape index: {}]
  %s12 = inlined_call_operand.vmem [shape: f32[64,3], index: 12, kind: input, shape index: {}]
  %s13 = inlined_call_operand.hbm [shape: f32[64,16], index: 13, kind: output, shape index: {}]
  %s14 = sld [smem:[#allocation0]]
  $region62: #{similarity_weighted_aggregation.1} parent=0
    _
  %s16 = ssub.s32 1, %s14
  %s17 = scalar_select 0, %s16, %s14
  $region1: #{similarity_weighted_aggregation.1} parent=0
    #allocation6 [shape = 'u8[32768]{0}', space=vmem, size = 0x8000, scoped, tag = 'output window, operand 0, single buffered']
    #allocation7 [shape = 's32[1]{0}', space=sflag, size = 0x4, scoped, tag = 'scoped memory for similarity_weighted_aggregation.1']
    %18 = vsyncpa [#allocation7], 0
    // Predicated region
    $region2: #{similarity_weighted_aggregation.1} parent=1 // pred_check
      _
    $region3: #{similarity_weighted_aggregation.1} parent=1 // pred_check_branch
      %20 = sbr.rel (0) target = $region5
    $region4: #{similarity_weighted_aggregation.1} parent=1 // pred_region
      _
    $region5: #{similarity_weighted_aggregation.1} parent=1 // pred_fallthru
      _
    // Predicated region
    $region6: #{similarity_weighted_aggregation.1} parent=1 // pred_check
      _
    $region7: #{similarity_weighted_aggregation.1} parent=1 // pred_check_branch
      %22 = sbr.rel (0) target = $region9
    $region8: #{similarity_weighted_aggregation.1} parent=1 // pred_region
      _
    $region9: #{similarity_weighted_aggregation.1} parent=1 // pred_fallthru
      _
    // Predicated region
    $region10: #{similarity_weighted_aggregation.1} parent=1 // pred_check
      _
    $region11: #{similarity_weighted_aggregation.1} parent=1 // pred_check_branch
      %24 = sbr.rel (0) target = $region13
    $region12: #{similarity_weighted_aggregation.1} parent=1 // pred_region
      _
    $region13: #{similarity_weighted_aggregation.1} parent=1 // pred_fallthru
      _
    // Predicated region
    $region14: #{similarity_weighted_aggregation.1} parent=1 // pred_check
      _
    $region15: #{similarity_weighted_aggregation.1} parent=1 // pred_check_branch
      %26 = sbr.rel (0) target = $region17
    $region16: #{similarity_weighted_aggregation.1} parent=1 // pred_region
      _
    $region17: #{similarity_weighted_aggregation.1} parent=1 // pred_fallthru
      _
    // Predicated region
    $region18: #{similarity_weighted_aggregation.1} parent=1 // pred_check
      _
    $region19: #{similarity_weighted_aggregation.1} parent=1 // pred_check_branch
      %28 = sbr.rel (0) target = $region21
    $region20: #{similarity_weighted_aggregation.1} parent=1 // pred_region
      _
    $region21: #{similarity_weighted_aggregation.1} parent=1 // pred_fallthru
      _
    // Predicated region
    $region22: #{similarity_weighted_aggregation.1} parent=1 // pred_check
      _
    $region23: #{similarity_weighted_aggregation.1} parent=1 // pred_check_branch
      %30 = sbr.rel (0) target = $region25
    $region24: #{similarity_weighted_aggregation.1} parent=1 // pred_region
      _
    $region25: #{similarity_weighted_aggregation.1} parent=1 // pred_fallthru
      _
    // Predicated region
    $region26: #{similarity_weighted_aggregation.1} parent=1 // pred_check
      _
    $region27: #{similarity_weighted_aggregation.1} parent=1 // pred_check_branch
      %32 = sbr.rel (0) target = $region29
    $region28: #{similarity_weighted_aggregation.1} parent=1 // pred_region
      _
    $region29: #{similarity_weighted_aggregation.1} parent=1 // pred_fallthru
      _
    // Predicated region
    $region30: #{similarity_weighted_aggregation.1} parent=1 // pred_check
      _
    $region31: #{similarity_weighted_aggregation.1} parent=1 // pred_check_branch
      %34 = sbr.rel (0) target = $region33
    $region32: #{similarity_weighted_aggregation.1} parent=1 // pred_region
      _
    $region33: #{similarity_weighted_aggregation.1} parent=1 // pred_fallthru
      _
    // Predicated region
    $region34: #{similarity_weighted_aggregation.1} parent=1 // pred_check
      _
    $region35: #{similarity_weighted_aggregation.1} parent=1 // pred_check_branch
      %36 = sbr.rel (0) target = $region37
    $region36: #{similarity_weighted_aggregation.1} parent=1 // pred_region
      _
    $region37: #{similarity_weighted_aggregation.1} parent=1 // pred_fallthru
      _
    // Predicated region
    $region38: #{similarity_weighted_aggregation.1} parent=1 // pred_check
      _
    $region39: #{similarity_weighted_aggregation.1} parent=1 // pred_check_branch
      %38 = sbr.rel (0) target = $region41
    $region40: #{similarity_weighted_aggregation.1} parent=1 // pred_region
      _
    $region41: #{similarity_weighted_aggregation.1} parent=1 // pred_fallthru
      _
    // Predicated region
    $region42: #{similarity_weighted_aggregation.1} parent=1 // pred_check
      _
    $region43: #{similarity_weighted_aggregation.1} parent=1 // pred_check_branch
      %40 = sbr.rel (0) target = $region45
    $region44: #{similarity_weighted_aggregation.1} parent=1 // pred_region
      _
    $region45: #{similarity_weighted_aggregation.1} parent=1 // pred_fallthru
      _
    // Predicated region
    $region46: #{similarity_weighted_aggregation.1} parent=1 // pred_check
      _
    $region47: #{similarity_weighted_aggregation.1} parent=1 // pred_check_branch
      %42 = sbr.rel (0) target = $region49
    $region48: #{similarity_weighted_aggregation.1} parent=1 // pred_region
      _
    $region49: #{similarity_weighted_aggregation.1} parent=1 // pred_fallthru
      _
    // Predicated region
    $region50: #{similarity_weighted_aggregation.1} parent=1 // pred_check
      _
    $region51: #{similarity_weighted_aggregation.1} parent=1 // pred_check_branch
      %44 = sbr.rel (0) target = $region53
    $region52: #{similarity_weighted_aggregation.1} parent=1 // pred_region
      _
    $region53: #{similarity_weighted_aggregation.1} parent=1 // pred_fallthru
      _
    %v45 = vld [vmem:[%s3] sm:$0xff]
    %v46 = vld [vmem:[%s3 + $0x8] sm:$0xff]
    %v47 = vld [vmem:[%s0] sm:$0xff]
    %v48 = vld [vmem:[%s0 + $0x8] sm:$0xff]
    %v49 = vld [vmem:[%s0 + $0x10] sm:$0xff]
    %v50 = vld [vmem:[%s0 + $0x18] sm:$0xff]
    %v51 = vld [vmem:[%s0 + $0x20] sm:$0xff]
    %v52 = vld [vmem:[%s0 + $0x28] sm:$0xff]
    %v53 = vld [vmem:[%s0 + $0x30] sm:$0xff]
    %v54 = vld [vmem:[%s0 + $0x38] sm:$0xff]
    %v55 = vld [vmem:[%s4] sm:$0x1]
    %v57 = vlaneseq
    %v58 = vshrl.u32 %v57, 7
    %v59 = vsub.s32 0, %v58
    %v60 = vrot.slane %v55, %v59
    %vm62 = vcmask 130048
    %v64 = vsel %vm62, %v47, 0
    %v67 = vsel %vm62, %v48, 0
    %v70 = vsel %vm62, %v49, 0
    %v73 = vsel %vm62, %v50, 0
    %v76 = vsel %vm62, %v51, 0
    %v79 = vsel %vm62, %v52, 0
    %v82 = vsel %vm62, %v53, 0
    %v85 = vsel %vm62, %v54, 0
    %v88 = vsel %vm62, %v45, 0
    %v91 = vsel %vm62, %v46, 0
    %93 = vmatprep.subr.mxu0 0.0
    %94 = vmatpush1.xpose.msra.mxu0 %v88
    %95 = vmatprep.subr.mxu0 0.0
    %96 = vmatpush1.xpose.msra.mxu0 %v91
    %97 = vmatprep.subr.mxu0 0.0
    %98 = vmatpush1.xpose.msra.mxu0 0.0
    %99 = vmatprep.subr.mxu0 0.0
    %100 = vmatpush1.xpose.msra.mxu0 0.0
    %101 = vmatprep.subr.mxu0 0.0
    %102 = vmatpush1.xpose.msra.mxu0 0.0
    %103 = vmatprep.subr.mxu0 0.0
    %104 = vmatpush1.xpose.msra.mxu0 0.0
    %105 = vmatprep.subr.mxu0 0.0
    %106 = vmatpush1.xpose.msra.mxu0 0.0
    %107 = vmatprep.subr.mxu0 0.0
    %108 = vmatpush1.xpose.msra.mxu0 0.0
    %109 = vmatprep.subr.mxu0 0.0
    %110 = vmatpush1.xpose.msra.mxu0 0.0
    %111 = vmatprep.subr.mxu0 0.0
    %112 = vmatpush1.xpose.msra.mxu0 0.0
    %113 = vmatprep.subr.mxu0 0.0
    %114 = vmatpush1.xpose.msra.mxu0 0.0
    %115 = vmatprep.subr.mxu0 0.0
    %116 = vmatpush1.xpose.msra.mxu0 0.0
    %117 = vmatprep.subr.mxu0 0.0
    %118 = vmatpush1.xpose.msra.mxu0 0.0
    %119 = vmatprep.subr.mxu0 0.0
    %120 = vmatpush1.xpose.msra.mxu0 0.0
    %121 = vmatprep.subr.mxu0 0.0
    %122 = vmatpush1.xpose.msra.mxu0 0.0
    %123 = vmatprep.subr.mxu0 0.0
    %124 = vmatpush1.xpose.msra.mxu0 0.0
    %125 = vmatprep.subr.mxu0 0.0
    %126 = vmatpush1.xpose.msra.mxu0 0.0
    %127 = vmatprep.subr.mxu0 0.0
    %128 = vmatpush1.xpose.msra.mxu0 0.0
    %129 = vmatprep.subr.mxu0 0.0
    %130 = vmatpush1.xpose.msra.mxu0 0.0
    %131 = vmatprep.subr.mxu0 0.0
    %132 = vmatpush1.xpose.msra.mxu0 0.0
    %133 = vmatprep.subr.mxu0 0.0
    %134 = vmatpush1.xpose.msra.mxu0 0.0
    %135 = vmatprep.subr.mxu0 0.0
    %136 = vmatpush1.xpose.msra.mxu0 0.0
    %137 = vmatprep.subr.mxu0 0.0
    %138 = vmatpush1.xpose.msra.mxu0 0.0
    %139 = vmatprep.subr.mxu0 0.0
    %140 = vmatpush1.xpose.msra.mxu0 0.0
    %141 = vmatprep.subr.mxu0 0.0
    %142 = vmatpush1.xpose.msra.mxu0 0.0
    %143 = vmatprep.subr.mxu0 0.0
    %144 = vmatpush1.xpose.msra.mxu0 0.0
    %145 = vmatprep.subr.mxu0 0.0
    %146 = vmatpush1.xpose.msra.mxu0 0.0
    %147 = vmatprep.subr.mxu0 0.0
    %148 = vmatpush1.xpose.msra.mxu0 0.0
    %149 = vmatprep.subr.mxu0 0.0
    %150 = vmatpush1.xpose.msra.mxu0 0.0
    %151 = vmatprep.subr.mxu0 0.0
    %152 = vmatpush1.xpose.msra.mxu0 0.0
    %153 = vmatprep.subr.mxu0 0.0
    %154 = vmatpush1.xpose.msra.mxu0 0.0
    %155 = vmatprep.subr.mxu0 0.0
    %156 = vmatpush1.xpose.msra.mxu0 0.0
    %157 = vmatprep.mubr.f32.mxu0 0.0
    %158 = vmatmul.mubr.f32.gmra.mrb[0].mxu0 %v64
    %v159 = vpop.f32.mrb[0].mxu0
    %v160 = vadd.f32 %v60, %v159
    %v161 = vpop.f32.mrb[0].mxu0
    %162 = vmatprep.mubr.f32.mxu0 0.0
    %163 = vmatmul.mubr.f32.gmra.mrb[0].mxu0 %v67
    %v164 = vpop.f32.mrb[0].mxu0
    %v165 = vadd.f32 %v60, %v164
    %v166 = vpop.f32.mrb[0].mxu0
    %167 = vmatprep.mubr.f32.mxu0 0.0
    %168 = vmatmul.mubr.f32.gmra.mrb[0].mxu0 %v70
    %v169 = vpop.f32.mrb[0].mxu0
    %v170 = vadd.f32 %v60, %v169
    %v171 = vpop.f32.mrb[0].mxu0
    %172 = vmatprep.mubr.f32.mxu0 0.0
    %173 = vmatmul.mubr.f32.gmra.mrb[0].mxu0 %v73
    %v174 = vpop.f32.mrb[0].mxu0
    %v175 = vadd.f32 %v60, %v174
    %v176 = vpop.f32.mrb[0].mxu0
    %177 = vmatprep.mubr.f32.mxu0 0.0
    %178 = vmatmul.mubr.f32.gmra.mrb[0].mxu0 %v76
    %v179 = vpop.f32.mrb[0].mxu0
    %v180 = vadd.f32 %v60, %v179
    %v181 = vpop.f32.mrb[0].mxu0
    %182 = vmatprep.mubr.f32.mxu0 0.0
    %183 = vmatmul.mubr.f32.gmra.mrb[0].mxu0 %v79
    %v184 = vpop.f32.mrb[0].mxu0
    %v185 = vadd.f32 %v60, %v184
    %v186 = vpop.f32.mrb[0].mxu0
    %187 = vmatprep.mubr.f32.mxu0 0.0
    %188 = vmatmul.mubr.f32.gmra.mrb[0].mxu0 %v82
    %v189 = vpop.f32.mrb[0].mxu0
    %v190 = vadd.f32 %v60, %v189
    %v191 = vpop.f32.mrb[0].mxu0
    %192 = vmatprep.mubr.f32.mxu0 0.0
    %193 = vmatmul.mubr.f32.gmra.mrb[0].mxu0 %v85
    %v194 = vpop.f32.mrb[0].mxu0
    %v195 = vadd.f32 %v60, %v194
    %v196 = vpop.f32.mrb[0].mxu0
    %197 = vdwg.mxu0
    %v198 = vsel %vm62, %v160, 0.0
    %199 = vadd.xlane.f32.xlu0 %v198
    %v200 = vpop.xlane.xlu0 %199
    %v201 = vsel %vm62, %v165, 0.0
    %202 = vadd.xlane.f32.xlu0 %v201
    %v203 = vpop.xlane.xlu0 %202
    %v204 = vsel %vm62, %v170, 0.0
    %205 = vadd.xlane.f32.xlu0 %v204
    %v206 = vpop.xlane.xlu0 %205
    %v207 = vsel %vm62, %v175, 0.0
    %208 = vadd.xlane.f32.xlu0 %v207
    %v209 = vpop.xlane.xlu0 %208
    %v210 = vsel %vm62, %v180, 0.0
    %211 = vadd.xlane.f32.xlu0 %v210
    %v212 = vpop.xlane.xlu0 %211
    %v213 = vsel %vm62, %v185, 0.0
    %214 = vadd.xlane.f32.xlu0 %v213
    %v215 = vpop.xlane.xlu0 %214
    %v216 = vsel %vm62, %v190, 0.0
    %217 = vadd.xlane.f32.xlu0 %v216
    %v218 = vpop.xlane.xlu0 %217
    %v219 = vsel %vm62, %v195, 0.0
    %220 = vadd.xlane.f32.xlu0 %v219
    %v221 = vpop.xlane.xlu0 %220
    %v222 = vrcp.pop 16.0
    %v223 = vmul.f32 %v200, %v222
    %v224 = vmul.f32 %v203, %v222
    %v225 = vmul.f32 %v206, %v222
    %v226 = vmul.f32 %v209, %v222
    %v227 = vmul.f32 %v212, %v222
    %v228 = vmul.f32 %v215, %v222
    %v229 = vmul.f32 %v218, %v222
    %v230 = vmul.f32 %v221, %v222
    %v231 = vsub.f32 %v160, %v223
    %v232 = vsub.f32 %v165, %v224
    %v233 = vsub.f32 %v170, %v225
    %v234 = vsub.f32 %v175, %v226
    %v235 = vsub.f32 %v180, %v227
    %v236 = vsub.f32 %v185, %v228
    %v237 = vsub.f32 %v190, %v229
    %v238 = vsub.f32 %v195, %v230
    %v239 = vmul.f32 %v231, %v231
    %v240 = vmul.f32 %v232, %v232
    %v241 = vmul.f32 %v233, %v233
    %v242 = vmul.f32 %v234, %v234
    %v243 = vmul.f32 %v235, %v235
    %v244 = vmul.f32 %v236, %v236
    %v245 = vmul.f32 %v237, %v237
    %v246 = vmul.f32 %v238, %v238
    %v247 = vsel %vm62, %v239, 0.0
    %248 = vadd.xlane.f32.xlu0 %v247
    %v249 = vpop.xlane.xlu0 %248
    %v250 = vsel %vm62, %v240, 0.0
    %251 = vadd.xlane.f32.xlu0 %v250
    %v252 = vpop.xlane.xlu0 %251
    %v253 = vsel %vm62, %v241, 0.0
    %254 = vadd.xlane.f32.xlu0 %v253
    %v255 = vpop.xlane.xlu0 %254
    %v256 = vsel %vm62, %v242, 0.0
    %257 = vadd.xlane.f32.xlu0 %v256
    %v258 = vpop.xlane.xlu0 %257
    %v259 = vsel %vm62, %v243, 0.0
    %260 = vadd.xlane.f32.xlu0 %v259
    %v261 = vpop.xlane.xlu0 %260
    %v262 = vsel %vm62, %v244, 0.0
    %263 = vadd.xlane.f32.xlu0 %v262
    %v264 = vpop.xlane.xlu0 %263
    %v265 = vsel %vm62, %v245, 0.0
    %266 = vadd.xlane.f32.xlu0 %v265
    %v267 = vpop.xlane.xlu0 %266
    %v268 = vsel %vm62, %v246, 0.0
    %269 = vadd.xlane.f32.xlu0 %v268
    %v270 = vpop.xlane.xlu0 %269
    %v271 = vmul.f32 %v249, %v222
    %v272 = vmul.f32 %v252, %v222
    %v273 = vmul.f32 %v255, %v222
    %v274 = vmul.f32 %v258, %v222
    %v275 = vmul.f32 %v261, %v222
    %v276 = vmul.f32 %v264, %v222
    %v277 = vmul.f32 %v267, %v222
    %v278 = vmul.f32 %v270, %v222
    %v279 = vadd.f32 %v271, 1e-05
    %v280 = vadd.f32 %v272, 1e-05
    %v281 = vadd.f32 %v273, 1e-05
    %v282 = vadd.f32 %v274, 1e-05
    %v283 = vadd.f32 %v275, 1e-05
    %v284 = vadd.f32 %v276, 1e-05
    %v285 = vadd.f32 %v277, 1e-05
    %v286 = vadd.f32 %v278, 1e-05
    %v287 = vrsqrt.pop %v279
    %v288 = vrsqrt.pop %v280
    %v289 = vrsqrt.pop %v281
    %v290 = vrsqrt.pop %v282
    %v291 = vrsqrt.pop %v283
    %v292 = vrsqrt.pop %v284
    %v293 = vrsqrt.pop %v285
    %v294 = vrsqrt.pop %v286
    %v295 = vmul.f32 %v231, %v287
    %v296 = vmul.f32 %v232, %v288
    %v297 = vmul.f32 %v233, %v289
    %v298 = vmul.f32 %v234, %v290
    %v299 = vmul.f32 %v235, %v291
    %v300 = vmul.f32 %v236, %v292
    %v301 = vmul.f32 %v237, %v293
    %v302 = vmul.f32 %v238, %v294
    %v303 = vld [vmem:[%s5] sm:$0x1]
    %v305 = vlaneseq
    %v306 = vshrl.u32 %v305, 7
    %v307 = vsub.s32 0, %v306
    %v308 = vrot.slane %v303, %v307
    %v310 = vmul.f32 %v295, %v308
    %v311 = vmul.f32 %v296, %v308
    %v312 = vmul.f32 %v297, %v308
    %v313 = vmul.f32 %v298, %v308
    %v314 = vmul.f32 %v299, %v308
    %v315 = vmul.f32 %v300, %v308
    %v316 = vmul.f32 %v301, %v308
    %v317 = vmul.f32 %v302, %v308
    %v318 = vld [vmem:[%s6] sm:$0x1]
    %v320 = vlaneseq
    %v321 = vshrl.u32 %v320, 7
    %v322 = vsub.s32 0, %v321
    %v323 = vrot.slane %v318, %v322
    %v325 = vadd.f32 %v310, %v323
    %v326 = vadd.f32 %v311, %v323
    %v327 = vadd.f32 %v312, %v323
    %v328 = vadd.f32 %v313, %v323
    %v329 = vadd.f32 %v314, %v323
    %v330 = vadd.f32 %v315, %v323
    %v331 = vadd.f32 %v316, %v323
    %v332 = vadd.f32 %v317, %v323
    %v333 = vld [vmem:[%s1] sm:$0xff]
    %v334 = vld [vmem:[%s1 + $0x8] sm:$0xff]
    %v335 = vld [vmem:[%s1 + $0x10] sm:$0xff]
    %v336 = vld [vmem:[%s1 + $0x18] sm:$0x7]
    %v338 = vsel %vm62, %v333, 0
    %v341 = vsel %vm62, %v334, 0
    %v344 = vsel %vm62, %v335, 0
    %v347 = vsel %vm62, %v336, 0
    %349 = vmatprep.subr.mxu0 0.0
    %350 = vmatpush1.xpose.msra.mxu0 %v88
    %351 = vmatprep.subr.mxu0 0.0
    %352 = vmatpush1.xpose.msra.mxu0 %v91
    %353 = vmatprep.subr.mxu0 0.0
    %354 = vmatpush1.xpose.msra.mxu0 0.0
    %355 = vmatprep.subr.mxu0 0.0
    %356 = vmatpush1.xpose.msra.mxu0 0.0
    %357 = vmatprep.subr.mxu0 0.0
    %358 = vmatpush1.xpose.msra.mxu0 0.0
    %359 = vmatprep.subr.mxu0 0.0
    %360 = vmatpush1.xpose.msra.mxu0 0.0
    %361 = vmatprep.subr.mxu0 0.0
    %362 = vmatpush1.xpose.msra.mxu0 0.0
    %363 = vmatprep.subr.mxu0 0.0
    %364 = vmatpush1.xpose.msra.mxu0 0.0
    %365 = vmatprep.subr.mxu0 0.0
    %366 = vmatpush1.xpose.msra.mxu0 0.0
    %367 = vmatprep.subr.mxu0 0.0
    %368 = vmatpush1.xpose.msra.mxu0 0.0
    %369 = vmatprep.subr.mxu0 0.0
    %370 = vmatpush1.xpose.msra.mxu0 0.0
    %371 = vmatprep.subr.mxu0 0.0
    %372 = vmatpush1.xpose.msra.mxu0 0.0
    %373 = vmatprep.subr.mxu0 0.0
    %374 = vmatpush1.xpose.msra.mxu0 0.0
    %375 = vmatprep.subr.mxu0 0.0
    %376 = vmatpush1.xpose.msra.mxu0 0.0
    %377 = vmatprep.subr.mxu0 0.0
    %378 = vmatpush1.xpose.msra.mxu0 0.0
    %379 = vmatprep.subr.mxu0 0.0
    %380 = vmatpush1.xpose.msra.mxu0 0.0
    %381 = vmatprep.subr.mxu0 0.0
    %382 = vmatpush1.xpose.msra.mxu0 0.0
    %383 = vmatprep.subr.mxu0 0.0
    %384 = vmatpush1.xpose.msra.mxu0 0.0
    %385 = vmatprep.subr.mxu0 0.0
    %386 = vmatpush1.xpose.msra.mxu0 0.0
    %387 = vmatprep.subr.mxu0 0.0
    %388 = vmatpush1.xpose.msra.mxu0 0.0
    %389 = vmatprep.subr.mxu0 0.0
    %390 = vmatpush1.xpose.msra.mxu0 0.0
    %391 = vmatprep.subr.mxu0 0.0
    %392 = vmatpush1.xpose.msra.mxu0 0.0
    %393 = vmatprep.subr.mxu0 0.0
    %394 = vmatpush1.xpose.msra.mxu0 0.0
    %395 = vmatprep.subr.mxu0 0.0
    %396 = vmatpush1.xpose.msra.mxu0 0.0
    %397 = vmatprep.subr.mxu0 0.0
    %398 = vmatpush1.xpose.msra.mxu0 0.0
    %399 = vmatprep.subr.mxu0 0.0
    %400 = vmatpush1.xpose.msra.mxu0 0.0
    %401 = vmatprep.subr.mxu0 0.0
    %402 = vmatpush1.xpose.msra.mxu0 0.0
    %403 = vmatprep.subr.mxu0 0.0
    %404 = vmatpush1.xpose.msra.mxu0 0.0
    %405 = vmatprep.subr.mxu0 0.0
    %406 = vmatpush1.xpose.msra.mxu0 0.0
    %407 = vmatprep.subr.mxu0 0.0
    %408 = vmatpush1.xpose.msra.mxu0 0.0
    %409 = vmatprep.subr.mxu0 0.0
    %410 = vmatpush1.xpose.msra.mxu0 0.0
    %411 = vmatprep.subr.mxu0 0.0
    %412 = vmatpush1.xpose.msra.mxu0 0.0
    %413 = vmatprep.mubr.f32.mxu0 0.0
    %414 = vmatmul.mubr.f32.gmra.mrb[0].mxu0 %v338
    %v415 = vpop.f32.mrb[0].mxu0
    %v416 = vadd.f32 %v60, %v415
    %v417 = vpop.f32.mrb[0].mxu0
    %418 = vmatprep.mubr.f32.mxu0 0.0
    %419 = vmatmul.mubr.f32.gmra.mrb[0].mxu0 %v341
    %v420 = vpop.f32.mrb[0].mxu0
    %v421 = vadd.f32 %v60, %v420
    %v422 = vpop.f32.mrb[0].mxu0
    %423 = vmatprep.mubr.f32.mxu0 0.0
    %424 = vmatmul.mubr.f32.gmra.mrb[0].mxu0 %v344
    %v425 = vpop.f32.mrb[0].mxu0
    %v426 = vadd.f32 %v60, %v425
    %v427 = vpop.f32.mrb[0].mxu0
    %428 = vmatprep.mubr.f32.mxu0 0.0
    %429 = vmatmul.mubr.f32.gmra.mrb[0].mxu0 %v347
    %v430 = vpop.f32.mrb[0].mxu0
    %v431 = vadd.f32 %v60, %v430
    %v432 = vpop.f32.mrb[0].mxu0
    %433 = vdwg.mxu0
    %v434 = vsel %vm62, %v416, 0.0
    %435 = vadd.xlane.f32.xlu0 %v434
    %v436 = vpop.xlane.xlu0 %435
    %v437 = vsel %vm62, %v421, 0.0
    %438 = vadd.xlane.f32.xlu0 %v437
    %v439 = vpop.xlane.xlu0 %438
    %v440 = vsel %vm62, %v426, 0.0
    %441 = vadd.xlane.f32.xlu0 %v440
    %v442 = vpop.xlane.xlu0 %441
    %vm443 = vcmask 124928
    %v444 = vsel %vm443, %v431, 0.0
    %445 = vadd.xlane.f32.xlu0 %v444
    %v446 = vpop.xlane.xlu0 %445
    %v447 = vmul.f32 %v436, %v222
    %v448 = vmul.f32 %v439, %v222
    %v449 = vmul.f32 %v442, %v222
    %v450 = vmul.f32 %v446, %v222
    %v451 = vsub.f32 %v416, %v447
    %v452 = vsub.f32 %v421, %v448
    %v453 = vsub.f32 %v426, %v449
    %v454 = vsub.f32 %v431, %v450
    %v455 = vmul.f32 %v451, %v451
    %v456 = vmul.f32 %v452, %v452
    %v457 = vmul.f32 %v453, %v453
    %v458 = vmul.f32 %v454, %v454
    %v459 = vsel %vm62, %v455, 0.0
    %460 = vadd.xlane.f32.xlu0 %v459
    %v461 = vpop.xlane.xlu0 %460
    %v462 = vsel %vm62, %v456, 0.0
    %463 = vadd.xlane.f32.xlu0 %v462
    %v464 = vpop.xlane.xlu0 %463
    %v465 = vsel %vm62, %v457, 0.0
    %466 = vadd.xlane.f32.xlu0 %v465
    %v467 = vpop.xlane.xlu0 %466
    %v468 = vsel %vm443, %v458, 0.0
    %469 = vadd.xlane.f32.xlu0 %v468
    %v470 = vpop.xlane.xlu0 %469
    %v471 = vmul.f32 %v461, %v222
    %v472 = vmul.f32 %v464, %v222
    %v473 = vmul.f32 %v467, %v222
    %v474 = vmul.f32 %v470, %v222
    %v475 = vadd.f32 %v471, 1e-05
    %v476 = vadd.f32 %v472, 1e-05
    %v477 = vadd.f32 %v473, 1e-05
    %v478 = vadd.f32 %v474, 1e-05
    %v479 = vrsqrt.pop %v475
    %v480 = vrsqrt.pop %v476
    %v481 = vrsqrt.pop %v477
    %v482 = vrsqrt.pop %v478
    %v483 = vmul.f32 %v451, %v479
    %v484 = vmul.f32 %v452, %v480
    %v485 = vmul.f32 %v453, %v481
    %v486 = vmul.f32 %v454, %v482
    %v487 = vmul.f32 %v483, %v308
    %v488 = vmul.f32 %v484, %v308
    %v489 = vmul.f32 %v485, %v308
    %v490 = vmul.f32 %v486, %v308
    %v491 = vadd.f32 %v487, %v323
    %v492 = vadd.f32 %v488, %v323
    %v493 = vadd.f32 %v489, %v323
    %v494 = vadd.f32 %v490, %v323
    %495 = vst.msk [vmem:[#allocation4] sm:$0xff] %vm62, %v491
    %496 = vst.msk [vmem:[#allocation4 + $0x8] sm:$0xff] %vm62, %v492
    %497 = vst.msk [vmem:[#allocation4 + $0x10] sm:$0xff] %vm62, %v493
    %498 = vst.msk [vmem:[#allocation4 + $0x18] sm:$0x7] %vm443, %v494
    %v499 = vld [vmem:[%s2] sm:$0xff]
    %v500 = vld [vmem:[%s2 + $0x8] sm:$0xff]
    %v501 = vld [vmem:[%s2 + $0x10] sm:$0xff]
    %v502 = vld [vmem:[%s2 + $0x18] sm:$0x7]
    %v503 = vld [vmem:[%s4] sm:$0x1]
    %v505 = vlaneseq
    %v506 = vshrl.u32 %v505, 7
    %v507 = vsub.s32 0, %v506
    %v508 = vrot.slane %v503, %v507
    %v511 = vsel %vm62, %v499, 0
    %v514 = vsel %vm62, %v500, 0
    %v517 = vsel %vm62, %v501, 0
    %v520 = vsel %vm62, %v502, 0
    %522 = vmatprep.subr.mxu0 0.0
    %523 = vmatpush1.xpose.msra.mxu0 %v88
    %524 = vmatprep.subr.mxu0 0.0
    %525 = vmatpush1.xpose.msra.mxu0 %v91
    %526 = vmatprep.subr.mxu0 0.0
    %527 = vmatpush1.xpose.msra.mxu0 0.0
    %528 = vmatprep.subr.mxu0 0.0
    %529 = vmatpush1.xpose.msra.mxu0 0.0
    %530 = vmatprep.subr.mxu0 0.0
    %531 = vmatpush1.xpose.msra.mxu0 0.0
    %532 = vmatprep.subr.mxu0 0.0
    %533 = vmatpush1.xpose.msra.mxu0 0.0
    %534 = vmatprep.subr.mxu0 0.0
    %535 = vmatpush1.xpose.msra.mxu0 0.0
    %536 = vmatprep.subr.mxu0 0.0
    %537 = vmatpush1.xpose.msra.mxu0 0.0
    %538 = vmatprep.subr.mxu0 0.0
    %539 = vmatpush1.xpose.msra.mxu0 0.0
    %540 = vmatprep.subr.mxu0 0.0
    %541 = vmatpush1.xpose.msra.mxu0 0.0
    %542 = vmatprep.subr.mxu0 0.0
    %543 = vmatpush1.xpose.msra.mxu0 0.0
    %544 = vmatprep.subr.mxu0 0.0
    %545 = vmatpush1.xpose.msra.mxu0 0.0
    %546 = vmatprep.subr.mxu0 0.0
    %547 = vmatpush1.xpose.msra.mxu0 0.0
    %548 = vmatprep.subr.mxu0 0.0
    %549 = vmatpush1.xpose.msra.mxu0 0.0
    %550 = vmatprep.subr.mxu0 0.0
    %551 = vmatpush1.xpose.msra.mxu0 0.0
    %552 = vmatprep.subr.mxu0 0.0
    %553 = vmatpush1.xpose.msra.mxu0 0.0
    %554 = vmatprep.subr.mxu0 0.0
    %555 = vmatpush1.xpose.msra.mxu0 0.0
    %556 = vmatprep.subr.mxu0 0.0
    %557 = vmatpush1.xpose.msra.mxu0 0.0
    %558 = vmatprep.subr.mxu0 0.0
    %559 = vmatpush1.xpose.msra.mxu0 0.0
    %560 = vmatprep.subr.mxu0 0.0
    %561 = vmatpush1.xpose.msra.mxu0 0.0
    %562 = vmatprep.subr.mxu0 0.0
    %563 = vmatpush1.xpose.msra.mxu0 0.0
    %564 = vmatprep.subr.mxu0 0.0
    %565 = vmatpush1.xpose.msra.mxu0 0.0
    %566 = vmatprep.subr.mxu0 0.0
    %567 = vmatpush1.xpose.msra.mxu0 0.0
    %568 = vmatprep.subr.mxu0 0.0
    %569 = vmatpush1.xpose.msra.mxu0 0.0
    %570 = vmatprep.subr.mxu0 0.0
    %571 = vmatpush1.xpose.msra.mxu0 0.0
    %572 = vmatprep.subr.mxu0 0.0
    %573 = vmatpush1.xpose.msra.mxu0 0.0
    %574 = vmatprep.subr.mxu0 0.0
    %575 = vmatpush1.xpose.msra.mxu0 0.0
    %576 = vmatprep.subr.mxu0 0.0
    %577 = vmatpush1.xpose.msra.mxu0 0.0
    %578 = vmatprep.subr.mxu0 0.0
    %579 = vmatpush1.xpose.msra.mxu0 0.0
    %580 = vmatprep.subr.mxu0 0.0
    %581 = vmatpush1.xpose.msra.mxu0 0.0
    %582 = vmatprep.subr.mxu0 0.0
    %583 = vmatpush1.xpose.msra.mxu0 0.0
    %584 = vmatprep.subr.mxu0 0.0
    %585 = vmatpush1.xpose.msra.mxu0 0.0
    %586 = vmatprep.mubr.f32.mxu0 0.0
    %587 = vmatmul.mubr.f32.gmra.mrb[0].mxu0 %v511
    %v588 = vpop.f32.mrb[0].mxu0
    %v589 = vadd.f32 %v508, %v588
    %v590 = vpop.f32.mrb[0].mxu0
    %591 = vmatprep.mubr.f32.mxu0 0.0
    %592 = vmatmul.mubr.f32.gmra.mrb[0].mxu0 %v514
    %v593 = vpop.f32.mrb[0].mxu0
    %v594 = vadd.f32 %v508, %v593
    %v595 = vpop.f32.mrb[0].mxu0
    %596 = vmatprep.mubr.f32.mxu0 0.0
    %597 = vmatmul.mubr.f32.gmra.mrb[0].mxu0 %v517
    %v598 = vpop.f32.mrb[0].mxu0
    %v599 = vadd.f32 %v508, %v598
    %v600 = vpop.f32.mrb[0].mxu0
    %601 = vmatprep.mubr.f32.mxu0 0.0
    %602 = vmatmul.mubr.f32.gmra.mrb[0].mxu0 %v520
    %v603 = vpop.f32.mrb[0].mxu0
    %v604 = vadd.f32 %v508, %v603
    %v605 = vpop.f32.mrb[0].mxu0
    %606 = vdwg.mxu0
    %607 = vst.msk [vmem:[#allocation5] sm:$0xff] %vm62, %v589
    %608 = vst.msk [vmem:[#allocation5 + $0x8] sm:$0xff] %vm62, %v594
    %609 = vst.msk [vmem:[#allocation5 + $0x10] sm:$0xff] %vm62, %v599
    %610 = vst.msk [vmem:[#allocation5 + $0x18] sm:$0x7] %vm443, %v604
    %v611 = vld [vmem:[%s9] sm:$0xff]
    %v612 = vld [vmem:[%s9 + $0x8] sm:$0xf]
    %v613 = vld [vmem:[%s10] sm:$0xff]
    %v614 = vld [vmem:[%s10 + $0x8] sm:$0xf]
    %615 = vst.msk [vmem:[#allocation2] sm:$0xff] %vm62, 0.0
    %616 = vst.msk [vmem:[#allocation2 + $0x8] sm:$0xff] %vm62, 0.0
    %617 = vst.msk [vmem:[#allocation2 + $0x10] sm:$0xff] %vm62, 0.0
    %618 = vst.msk [vmem:[#allocation2 + $0x18] sm:$0xff] %vm62, 0.0
    %619 = vst.msk [vmem:[#allocation2 + $0x20] sm:$0xff] %vm62, 0.0
    %620 = vst.msk [vmem:[#allocation2 + $0x28] sm:$0xff] %vm62, 0.0
    %621 = vst.msk [vmem:[#allocation2 + $0x30] sm:$0xff] %vm62, 0.0
    %622 = vst.msk [vmem:[#allocation2 + $0x38] sm:$0xff] %vm62, 0.0
    %623 = vst.msk [vmem:[#allocation2 + $0x40] sm:$0xff] %vm62, 0.0
    %624 = vst.msk [vmem:[#allocation2 + $0x48] sm:$0xff] %vm62, 0.0
    %625 = vst.msk [vmem:[#allocation2 + $0x50] sm:$0xff] %vm62, 0.0
    %626 = vst.msk [vmem:[#allocation2 + $0x58] sm:$0xff] %vm62, 0.0
    %627 = vst.msk [vmem:[#allocation2 + $0x10] sm:$0xff] %vm62, %v325
    %628 = vst.msk [vmem:[#allocation2 + $0x18] sm:$0xff] %vm62, %v326
    %629 = vst.msk [vmem:[#allocation2 + $0x20] sm:$0xff] %vm62, %v327
    %630 = vst.msk [vmem:[#allocation2 + $0x28] sm:$0xff] %vm62, %v328
    %631 = vst.msk [vmem:[#allocation2 + $0x30] sm:$0xff] %vm62, %v329
    %632 = vst.msk [vmem:[#allocation2 + $0x38] sm:$0xff] %vm62, %v330
    %633 = vst.msk [vmem:[#allocation2 + $0x40] sm:$0xff] %vm62, %v331
    %634 = vst.msk [vmem:[#allocation2 + $0x48] sm:$0xff] %vm62, %v332
    %v635 = vld [vmem:[#allocation2 + $0x7] sm:$0xff]
    %v636 = vld [vmem:[#allocation2 + $0xf] sm:$0xff]
    %v637 = vld [vmem:[#allocation2 + $0x17] sm:$0xff]
    %v638 = vld [vmem:[#allocation2 + $0x1f] sm:$0xff]
    %v639 = vld [vmem:[#allocation2 + $0x27] sm:$0xff]
    %v640 = vld [vmem:[#allocation2 + $0x2f] sm:$0xff]
    %v641 = vld [vmem:[#allocation2 + $0x37] sm:$0xff]
    %v642 = vld [vmem:[#allocation2 + $0x3f] sm:$0xff]
    %v643 = vld [vmem:[%s12] sm:$0xff]
    %v644 = vld [vmem:[%s12 + $0x8] sm:$0xff]
    %v645 = vld [vmem:[%s12 + $0x10] sm:$0xff]
    %v646 = vld [vmem:[%s12 + $0x18] sm:$0xff]
    %v647 = vld [vmem:[%s12 + $0x20] sm:$0xff]
    %v648 = vld [vmem:[%s12 + $0x28] sm:$0xff]
    %v649 = vld [vmem:[%s12 + $0x30] sm:$0xff]
    %v650 = vld [vmem:[%s12 + $0x38] sm:$0xff]
    %652 = vset.pattern.permute.xlu0 0
    %653 = vperm.xlu0 %652, %v643
    %v654 = vpop.permute.xlu0 %653
    %657 = vset.pattern.permute.xlu0 0
    %658 = vperm.xlu0 %657, %v644
    %v659 = vpop.permute.xlu0 %658
    %662 = vset.pattern.permute.xlu0 0
    %663 = vperm.xlu0 %662, %v645
    %v664 = vpop.permute.xlu0 %663
    %667 = vset.pattern.permute.xlu0 0
    %668 = vperm.xlu0 %667, %v646
    %v669 = vpop.permute.xlu0 %668
    %672 = vset.pattern.permute.xlu0 0
    %673 = vperm.xlu0 %672, %v647
    %v674 = vpop.permute.xlu0 %673
    %677 = vset.pattern.permute.xlu0 0
    %678 = vperm.xlu0 %677, %v648
    %v679 = vpop.permute.xlu0 %678
    %682 = vset.pattern.permute.xlu0 0
    %683 = vperm.xlu0 %682, %v649
    %v684 = vpop.permute.xlu0 %683
    %687 = vset.pattern.permute.xlu0 0
    %688 = vperm.xlu0 %687, %v650
    %v689 = vpop.permute.xlu0 %688
    %v691 = vmul.f32 %v635, %v654
    %v692 = vmul.f32 %v636, %v659
    %v693 = vmul.f32 %v637, %v664
    %v694 = vmul.f32 %v638, %v669
    %v695 = vmul.f32 %v639, %v674
    %v696 = vmul.f32 %v640, %v679
    %v697 = vmul.f32 %v641, %v684
    %v698 = vmul.f32 %v642, %v689
    %v699 = vld [vmem:[#allocation4] sm:$0x7]
    %vm700 = vcmask 23552
    %v702 = vsel %vm700, %v611, 0
    %v705 = vsel %vm700, %v612, 0
    %vm707 = vcmask 1042432
    %v709 = vsel %vm707, %v699, 0
    %711 = vmatprep.subr.mxu0 0.0
    %712 = vmatpush1.msra.mxu0 %v709
    %713 = vmatprep.subr.mxu0 0.0
    %714 = vmatpush1.msra.mxu0 0.0
    %715 = vmatprep.subr.mxu0 0.0
    %716 = vmatpush1.msra.mxu0 0.0
    %717 = vmatprep.subr.mxu0 0.0
    %718 = vmatpush1.msra.mxu0 0.0
    %719 = vmatprep.subr.mxu0 0.0
    %720 = vmatpush1.msra.mxu0 0.0
    %721 = vmatprep.subr.mxu0 0.0
    %722 = vmatpush1.msra.mxu0 0.0
    %723 = vmatprep.subr.mxu0 0.0
    %724 = vmatpush1.msra.mxu0 0.0
    %725 = vmatprep.subr.mxu0 0.0
    %726 = vmatpush1.msra.mxu0 0.0
    %727 = vmatprep.subr.mxu0 0.0
    %728 = vmatpush1.msra.mxu0 0.0
    %729 = vmatprep.subr.mxu0 0.0
    %730 = vmatpush1.msra.mxu0 0.0
    %731 = vmatprep.subr.mxu0 0.0
    %732 = vmatpush1.msra.mxu0 0.0
    %733 = vmatprep.subr.mxu0 0.0
    %734 = vmatpush1.msra.mxu0 0.0
    %735 = vmatprep.subr.mxu0 0.0
    %736 = vmatpush1.msra.mxu0 0.0
    %737 = vmatprep.subr.mxu0 0.0
    %738 = vmatpush1.msra.mxu0 0.0
    %739 = vmatprep.subr.mxu0 0.0
    %740 = vmatpush1.msra.mxu0 0.0
    %741 = vmatprep.subr.mxu0 0.0
    %742 = vmatpush1.msra.mxu0 0.0
    %743 = vmatprep.subr.mxu0 0.0
    %744 = vmatpush1.msra.mxu0 0.0
    %745 = vmatprep.subr.mxu0 0.0
    %746 = vmatpush1.msra.mxu0 0.0
    %747 = vmatprep.subr.mxu0 0.0
    %748 = vmatpush1.msra.mxu0 0.0
    %749 = vmatprep.subr.mxu0 0.0
    %750 = vmatpush1.msra.mxu0 0.0
    %751 = vmatprep.subr.mxu0 0.0
    %752 = vmatpush1.msra.mxu0 0.0
    %753 = vmatprep.subr.mxu0 0.0
    %754 = vmatpush1.msra.mxu0 0.0
    %755 = vmatprep.subr.mxu0 0.0
    %756 = vmatpush1.msra.mxu0 0.0
    %757 = vmatprep.subr.mxu0 0.0
    %758 = vmatpush1.msra.mxu0 0.0
    %759 = vmatprep.subr.mxu0 0.0
    %760 = vmatpush1.msra.mxu0 0.0
    %761 = vmatprep.subr.mxu0 0.0
    %762 = vmatpush1.msra.mxu0 0.0
    %763 = vmatprep.subr.mxu0 0.0
    %764 = vmatpush1.msra.mxu0 0.0
    %765 = vmatprep.subr.mxu0 0.0
    %766 = vmatpush1.msra.mxu0 0.0
    %767 = vmatprep.subr.mxu0 0.0
    %768 = vmatpush1.msra.mxu0 0.0
    %769 = vmatprep.subr.mxu0 0.0
    %770 = vmatpush1.msra.mxu0 0.0
    %771 = vmatprep.subr.mxu0 0.0
    %772 = vmatpush1.msra.mxu0 0.0
    %773 = vmatprep.subr.mxu0 0.0
    %774 = vmatpush1.msra.mxu0 0.0
    %775 = vmatprep.mubr.f32.mxu0 0.0
    %776 = vmatmul.mubr.f32.gmra.mrb[0].mxu0 %v702
    %v777 = vpop.f32.mrb[0].mxu0
    %v778 = vadd.f32 0.0, %v777
    %v779 = vpop.f32.mrb[0].mxu0
    %780 = vmatprep.mubr.f32.mxu0 0.0
    %781 = vmatmul.mubr.f32.gmra.mrb[0].mxu0 %v705
    %v782 = vpop.f32.mrb[0].mxu0
    %v783 = vadd.f32 0.0, %v782
    %v784 = vpop.f32.mrb[0].mxu0
    %785 = vdwg.mxu0
    %v786 = vmul.f32 %v778, %v613
    %v787 = vmul.f32 %v783, %v614
    %v788 = vld [vmem:[#allocation2 + $0x8] sm:$0xff]
    %v789 = vld [vmem:[#allocation2 + $0x10] sm:$0xff]
    %v790 = vld [vmem:[#allocation2 + $0x18] sm:$0xff]
    %v791 = vld [vmem:[#allocation2 + $0x20] sm:$0xff]
    %v792 = vld [vmem:[#allocation2 + $0x28] sm:$0xff]
    %v793 = vld [vmem:[#allocation2 + $0x30] sm:$0xff]
    %v794 = vld [vmem:[#allocation2 + $0x38] sm:$0xff]
    %v795 = vld [vmem:[#allocation2 + $0x40] sm:$0xff]
    %796 = vset.pattern.permute.xlu0 1
    %797 = vperm.xlu0 %796, %v643
    %v798 = vpop.permute.xlu0 %797
    %800 = vset.pattern.permute.xlu0 1
    %801 = vperm.xlu0 %800, %v644
    %v802 = vpop.permute.xlu0 %801
    %804 = vset.pattern.permute.xlu0 1
    %805 = vperm.xlu0 %804, %v645
    %v806 = vpop.permute.xlu0 %805
    %808 = vset.pattern.permute.xlu0 1
    %809 = vperm.xlu0 %808, %v646
    %v810 = vpop.permute.xlu0 %809
    %812 = vset.pattern.permute.xlu0 1
    %813 = vperm.xlu0 %812, %v647
    %v814 = vpop.permute.xlu0 %813
    %816 = vset.pattern.permute.xlu0 1
    %817 = vperm.xlu0 %816, %v648
    %v818 = vpop.permute.xlu0 %817
    %820 = vset.pattern.permute.xlu0 1
    %821 = vperm.xlu0 %820, %v649
    %v822 = vpop.permute.xlu0 %821
    %824 = vset.pattern.permute.xlu0 1
    %825 = vperm.xlu0 %824, %v650
    %v826 = vpop.permute.xlu0 %825
    %v828 = vmul.f32 %v788, %v798
    %v829 = vmul.f32 %v789, %v802
    %v830 = vmul.f32 %v790, %v806
    %v831 = vmul.f32 %v791, %v810
    %v832 = vmul.f32 %v792, %v814
    %v833 = vmul.f32 %v793, %v818
    %v834 = vmul.f32 %v794, %v822
    %v835 = vmul.f32 %v795, %v826
    %v836 = vld [vmem:[#allocation4 + $0x3] sm:$0x7]
    %v838 = vsel %vm707, %v836, 0
    %840 = vmatprep.subr.mxu0 0.0
    %841 = vmatpush1.msra.mxu0 %v838
    %842 = vmatprep.subr.mxu0 0.0
    %843 = vmatpush1.msra.mxu0 0.0
    %844 = vmatprep.subr.mxu0 0.0
    %845 = vmatpush1.msra.mxu0 0.0
    %846 = vmatprep.subr.mxu0 0.0
    %847 = vmatpush1.msra.mxu0 0.0
    %848 = vmatprep.subr.mxu0 0.0
    %849 = vmatpush1.msra.mxu0 0.0
    %850 = vmatprep.subr.mxu0 0.0
    %851 = vmatpush1.msra.mxu0 0.0
    %852 = vmatprep.subr.mxu0 0.0
    %853 = vmatpush1.msra.mxu0 0.0
    %854 = vmatprep.subr.mxu0 0.0
    %855 = vmatpush1.msra.mxu0 0.0
    %856 = vmatprep.subr.mxu0 0.0
    %857 = vmatpush1.msra.mxu0 0.0
    %858 = vmatprep.subr.mxu0 0.0
    %859 = vmatpush1.msra.mxu0 0.0
    %860 = vmatprep.subr.mxu0 0.0
    %861 = vmatpush1.msra.mxu0 0.0
    %862 = vmatprep.subr.mxu0 0.0
    %863 = vmatpush1.msra.mxu0 0.0
    %864 = vmatprep.subr.mxu0 0.0
    %865 = vmatpush1.msra.mxu0 0.0
    %866 = vmatprep.subr.mxu0 0.0
    %867 = vmatpush1.msra.mxu0 0.0
    %868 = vmatprep.subr.mxu0 0.0
    %869 = vmatpush1.msra.mxu0 0.0
    %870 = vmatprep.subr.mxu0 0.0
    %871 = vmatpush1.msra.mxu0 0.0
    %872 = vmatprep.subr.mxu0 0.0
    %873 = vmatpush1.msra.mxu0 0.0
    %874 = vmatprep.subr.mxu0 0.0
    %875 = vmatpush1.msra.mxu0 0.0
    %876 = vmatprep.subr.mxu0 0.0
    %877 = vmatpush1.msra.mxu0 0.0
    %878 = vmatprep.subr.mxu0 0.0
    %879 = vmatpush1.msra.mxu0 0.0
    %880 = vmatprep.subr.mxu0 0.0
    %881 = vmatpush1.msra.mxu0 0.0
    %882 = vmatprep.subr.mxu0 0.0
    %883 = vmatpush1.msra.mxu0 0.0
    %884 = vmatprep.subr.mxu0 0.0
    %885 = vmatpush1.msra.mxu0 0.0
    %886 = vmatprep.subr.mxu0 0.0
    %887 = vmatpush1.msra.mxu0 0.0
    %888 = vmatprep.subr.mxu0 0.0
    %889 = vmatpush1.msra.mxu0 0.0
    %890 = vmatprep.subr.mxu0 0.0
    %891 = vmatpush1.msra.mxu0 0.0
    %892 = vmatprep.subr.mxu0 0.0
    %893 = vmatpush1.msra.mxu0 0.0
    %894 = vmatprep.subr.mxu0 0.0
    %895 = vmatpush1.msra.mxu0 0.0
    %896 = vmatprep.subr.mxu0 0.0
    %897 = vmatpush1.msra.mxu0 0.0
    %898 = vmatprep.subr.mxu0 0.0
    %899 = vmatpush1.msra.mxu0 0.0
    %900 = vmatprep.subr.mxu0 0.0
    %901 = vmatpush1.msra.mxu0 0.0
    %902 = vmatprep.subr.mxu0 0.0
    %903 = vmatpush1.msra.mxu0 0.0
    %904 = vmatprep.mubr.f32.mxu0 0.0
    %905 = vmatmul.mubr.f32.gmra.mrb[0].mxu0 %v702
    %v906 = vpop.f32.mrb[0].mxu0
    %v907 = vadd.f32 0.0, %v906
    %v908 = vpop.f32.mrb[0].mxu0
    %909 = vmatprep.mubr.f32.mxu0 0.0
    %910 = vmatmul.mubr.f32.gmra.mrb[0].mxu0 %v705
    %v911 = vpop.f32.mrb[0].mxu0
    %v912 = vadd.f32 0.0, %v911
    %v913 = vpop.f32.mrb[0].mxu0
    %914 = vdwg.mxu0
    %v915 = vmul.f32 %v907, %v613
    %v916 = vmul.f32 %v912, %v614
    %v918 = vsel %vm62, %v828, 0
    %v921 = vsel %vm62, %v829, 0
    %v924 = vsel %vm62, %v830, 0
    %v927 = vsel %vm62, %v831, 0
    %v930 = vsel %vm62, %v832, 0
    %v933 = vsel %vm62, %v833, 0
    %v936 = vsel %vm62, %v834, 0
    %v939 = vsel %vm62, %v835, 0
    %v942 = vsel %vm62, %v915, 0
    %v945 = vsel %vm62, %v916, 0
    %947 = vmatprep.subr.mxu0 0.0
    %948 = vmatpush1.xpose.msra.mxu0 %v942
    %949 = vmatprep.subr.mxu0 0.0
    %950 = vmatpush1.xpose.msra.mxu0 %v945
    %951 = vmatprep.subr.mxu0 0.0
    %952 = vmatpush1.xpose.msra.mxu0 0.0
    %953 = vmatprep.subr.mxu0 0.0
    %954 = vmatpush1.xpose.msra.mxu0 0.0
    %955 = vmatprep.subr.mxu0 0.0
    %956 = vmatpush1.xpose.msra.mxu0 0.0
    %957 = vmatprep.subr.mxu0 0.0
    %958 = vmatpush1.xpose.msra.mxu0 0.0
    %959 = vmatprep.subr.mxu0 0.0
    %960 = vmatpush1.xpose.msra.mxu0 0.0
    %961 = vmatprep.subr.mxu0 0.0
    %962 = vmatpush1.xpose.msra.mxu0 0.0
    %963 = vmatprep.subr.mxu0 0.0
    %964 = vmatpush1.xpose.msra.mxu0 0.0
    %965 = vmatprep.subr.mxu0 0.0
    %966 = vmatpush1.xpose.msra.mxu0 0.0
    %967 = vmatprep.subr.mxu0 0.0
    %968 = vmatpush1.xpose.msra.mxu0 0.0
    %969 = vmatprep.subr.mxu0 0.0
    %970 = vmatpush1.xpose.msra.mxu0 0.0
    %971 = vmatprep.subr.mxu0 0.0
    %972 = vmatpush1.xpose.msra.mxu0 0.0
    %973 = vmatprep.subr.mxu0 0.0
    %974 = vmatpush1.xpose.msra.mxu0 0.0
    %975 = vmatprep.subr.mxu0 0.0
    %976 = vmatpush1.xpose.msra.mxu0 0.0
    %977 = vmatprep.subr.mxu0 0.0
    %978 = vmatpush1.xpose.msra.mxu0 0.0
    %979 = vmatprep.subr.mxu0 0.0
    %980 = vmatpush1.xpose.msra.mxu0 0.0
    %981 = vmatprep.subr.mxu0 0.0
    %982 = vmatpush1.xpose.msra.mxu0 0.0
    %983 = vmatprep.subr.mxu0 0.0
    %984 = vmatpush1.xpose.msra.mxu0 0.0
    %985 = vmatprep.subr.mxu0 0.0
    %986 = vmatpush1.xpose.msra.mxu0 0.0
    %987 = vmatprep.subr.mxu0 0.0
    %988 = vmatpush1.xpose.msra.mxu0 0.0
    %989 = vmatprep.subr.mxu0 0.0
    %990 = vmatpush1.xpose.msra.mxu0 0.0
    %991 = vmatprep.subr.mxu0 0.0
    %992 = vmatpush1.xpose.msra.mxu0 0.0
    %993 = vmatprep.subr.mxu0 0.0
    %994 = vmatpush1.xpose.msra.mxu0 0.0
    %995 = vmatprep.subr.mxu0 0.0
    %996 = vmatpush1.xpose.msra.mxu0 0.0
    %997 = vmatprep.subr.mxu0 0.0
    %998 = vmatpush1.xpose.msra.mxu0 0.0
    %999 = vmatprep.subr.mxu0 0.0
    %1000 = vmatpush1.xpose.msra.mxu0 0.0
    %1001 = vmatprep.subr.mxu0 0.0
    %1002 = vmatpush1.xpose.msra.mxu0 0.0
    %1003 = vmatprep.subr.mxu0 0.0
    %1004 = vmatpush1.xpose.msra.mxu0 0.0
    %1005 = vmatprep.subr.mxu0 0.0
    %1006 = vmatpush1.xpose.msra.mxu0 0.0
    %1007 = vmatprep.subr.mxu0 0.0
    %1008 = vmatpush1.xpose.msra.mxu0 0.0
    %1009 = vmatprep.subr.mxu0 0.0
    %1010 = vmatpush1.xpose.msra.mxu0 0.0
    %1011 = vmatprep.mubr.f32.mxu0 0.0
    %1012 = vmatmul.mubr.f32.gmra.mrb[0].mxu0 %v918
    %v1013 = vpop.f32.mrb[0].mxu0
    %v1014 = vadd.f32 0.0, %v1013
    %v1015 = vpop.f32.mrb[0].mxu0
    %1016 = vmatprep.mubr.f32.mxu0 0.0
    %1017 = vmatmul.mubr.f32.gmra.mrb[0].mxu0 %v921
    %v1018 = vpop.f32.mrb[0].mxu0
    %v1019 = vadd.f32 0.0, %v1018
    %v1020 = vpop.f32.mrb[0].mxu0
    %1021 = vmatprep.mubr.f32.mxu0 0.0
    %1022 = vmatmul.mubr.f32.gmra.mrb[0].mxu0 %v924
    %v1023 = vpop.f32.mrb[0].mxu0
    %v1024 = vadd.f32 0.0, %v1023
    %v1025 = vpop.f32.mrb[0].mxu0
    %1026 = vmatprep.mubr.f32.mxu0 0.0
    %1027 = vmatmul.mubr.f32.gmra.mrb[0].mxu0 %v927
    %v1028 = vpop.f32.mrb[0].mxu0
    %v1029 = vadd.f32 0.0, %v1028
    %v1030 = vpop.f32.mrb[0].mxu0
    %1031 = vmatprep.mubr.f32.mxu0 0.0
    %1032 = vmatmul.mubr.f32.gmra.mrb[0].mxu0 %v930
    %v1033 = vpop.f32.mrb[0].mxu0
    %v1034 = vadd.f32 0.0, %v1033
    %v1035 = vpop.f32.mrb[0].mxu0
    %1036 = vmatprep.mubr.f32.mxu0 0.0
    %1037 = vmatmul.mubr.f32.gmra.mrb[0].mxu0 %v933
    %v1038 = vpop.f32.mrb[0].mxu0
    %v1039 = vadd.f32 0.0, %v1038
    %v1040 = vpop.f32.mrb[0].mxu0
    %1041 = vmatprep.mubr.f32.mxu0 0.0
    %1042 = vmatmul.mubr.f32.gmra.mrb[0].mxu0 %v936
    %v1043 = vpop.f32.mrb[0].mxu0
    %v1044 = vadd.f32 0.0, %v1043
    %v1045 = vpop.f32.mrb[0].mxu0
    %1046 = vmatprep.mubr.f32.mxu0 0.0
    %1047 = vmatmul.mubr.f32.gmra.mrb[0].mxu0 %v939
    %v1048 = vpop.f32.mrb[0].mxu0
    %v1049 = vadd.f32 0.0, %v1048
    %v1050 = vpop.f32.mrb[0].mxu0
    %1051 = vdwg.mxu0
    %v1053 = vsel %vm62, %v691, 0
    %v1056 = vsel %vm62, %v692, 0
    %v1059 = vsel %vm62, %v693, 0
    %v1062 = vsel %vm62, %v694, 0
    %v1065 = vsel %vm62, %v695, 0
    %v1068 = vsel %vm62, %v696, 0
    %v1071 = vsel %vm62, %v697, 0
    %v1074 = vsel %vm62, %v698, 0
    %v1077 = vsel %vm62, %v786, 0
    %v1080 = vsel %vm62, %v787, 0
    %1082 = vmatprep.subr.mxu0 0.0
    %1083 = vmatpush1.xpose.msra.mxu0 %v1077
    %1084 = vmatprep.subr.mxu0 0.0
    %1085 = vmatpush1.xpose.msra.mxu0 %v1080
    %1086 = vmatprep.subr.mxu0 0.0
    %1087 = vmatpush1.xpose.msra.mxu0 0.0
    %1088 = vmatprep.subr.mxu0 0.0
    %1089 = vmatpush1.xpose.msra.mxu0 0.0
    %1090 = vmatprep.subr.mxu0 0.0
    %1091 = vmatpush1.xpose.msra.mxu0 0.0
    %1092 = vmatprep.subr.mxu0 0.0
    %1093 = vmatpush1.xpose.msra.mxu0 0.0
    %1094 = vmatprep.subr.mxu0 0.0
    %1095 = vmatpush1.xpose.msra.mxu0 0.0
    %1096 = vmatprep.subr.mxu0 0.0
    %1097 = vmatpush1.xpose.msra.mxu0 0.0
    %1098 = vmatprep.subr.mxu0 0.0
    %1099 = vmatpush1.xpose.msra.mxu0 0.0
    %1100 = vmatprep.subr.mxu0 0.0
    %1101 = vmatpush1.xpose.msra.mxu0 0.0
    %1102 = vmatprep.subr.mxu0 0.0
    %1103 = vmatpush1.xpose.msra.mxu0 0.0
    %1104 = vmatprep.subr.mxu0 0.0
    %1105 = vmatpush1.xpose.msra.mxu0 0.0
    %1106 = vmatprep.subr.mxu0 0.0
    %1107 = vmatpush1.xpose.msra.mxu0 0.0
    %1108 = vmatprep.subr.mxu0 0.0
    %1109 = vmatpush1.xpose.msra.mxu0 0.0
    %1110 = vmatprep.subr.mxu0 0.0
    %1111 = vmatpush1.xpose.msra.mxu0 0.0
    %1112 = vmatprep.subr.mxu0 0.0
    %1113 = vmatpush1.xpose.msra.mxu0 0.0
    %1114 = vmatprep.subr.mxu0 0.0
    %1115 = vmatpush1.xpose.msra.mxu0 0.0
    %1116 = vmatprep.subr.mxu0 0.0
    %1117 = vmatpush1.xpose.msra.mxu0 0.0
    %1118 = vmatprep.subr.mxu0 0.0
    %1119 = vmatpush1.xpose.msra.mxu0 0.0
    %1120 = vmatprep.subr.mxu0 0.0
    %1121 = vmatpush1.xpose.msra.mxu0 0.0
    %1122 = vmatprep.subr.mxu0 0.0
    %1123 = vmatpush1.xpose.msra.mxu0 0.0
    %1124 = vmatprep.subr.mxu0 0.0
    %1125 = vmatpush1.xpose.msra.mxu0 0.0
    %1126 = vmatprep.subr.mxu0 0.0
    %1127 = vmatpush1.xpose.msra.mxu0 0.0
    %1128 = vmatprep.subr.mxu0 0.0
    %1129 = vmatpush1.xpose.msra.mxu0 0.0
    %1130 = vmatprep.subr.mxu0 0.0
    %1131 = vmatpush1.xpose.msra.mxu0 0.0
    %1132 = vmatprep.subr.mxu0 0.0
    %1133 = vmatpush1.xpose.msra.mxu0 0.0
    %1134 = vmatprep.subr.mxu0 0.0
    %1135 = vmatpush1.xpose.msra.mxu0 0.0
    %1136 = vmatprep.subr.mxu0 0.0
    %1137 = vmatpush1.xpose.msra.mxu0 0.0
    %1138 = vmatprep.subr.mxu0 0.0
    %1139 = vmatpush1.xpose.msra.mxu0 0.0
    %1140 = vmatprep.subr.mxu0 0.0
    %1141 = vmatpush1.xpose.msra.mxu0 0.0
    %1142 = vmatprep.subr.mxu0 0.0
    %1143 = vmatpush1.xpose.msra.mxu0 0.0
    %1144 = vmatprep.subr.mxu0 0.0
    %1145 = vmatpush1.xpose.msra.mxu0 0.0
    %1146 = vmatprep.mubr.f32.mxu0 0.0
    %1147 = vmatmul.mubr.f32.gmra.mrb[0].mxu0 %v1053
    %v1148 = vpop.f32.mrb[0].mxu0
    %v1149 = vadd.f32 %v1014, %v1148
    %v1150 = vpop.f32.mrb[0].mxu0
    %1151 = vmatprep.mubr.f32.mxu0 0.0
    %1152 = vmatmul.mubr.f32.gmra.mrb[0].mxu0 %v1056
    %v1153 = vpop.f32.mrb[0].mxu0
    %v1154 = vadd.f32 %v1019, %v1153
    %v1155 = vpop.f32.mrb[0].mxu0
    %1156 = vmatprep.mubr.f32.mxu0 0.0
    %1157 = vmatmul.mubr.f32.gmra.mrb[0].mxu0 %v1059
    %v1158 = vpop.f32.mrb[0].mxu0
    %v1159 = vadd.f32 %v1024, %v1158
    %v1160 = vpop.f32.mrb[0].mxu0
    %1161 = vmatprep.mubr.f32.mxu0 0.0
    %1162 = vmatmul.mubr.f32.gmra.mrb[0].mxu0 %v1062
    %v1163 = vpop.f32.mrb[0].mxu0
    %v1164 = vadd.f32 %v1029, %v1163
    %v1165 = vpop.f32.mrb[0].mxu0
    %1166 = vmatprep.mubr.f32.mxu0 0.0
    %1167 = vmatmul.mubr.f32.gmra.mrb[0].mxu0 %v1065
    %v1168 = vpop.f32.mrb[0].mxu0
    %v1169 = vadd.f32 %v1034, %v1168
    %v1170 = vpop.f32.mrb[0].mxu0
    %1171 = vmatprep.mubr.f32.mxu0 0.0
    %1172 = vmatmul.mubr.f32.gmra.mrb[0].mxu0 %v1068
    %v1173 = vpop.f32.mrb[0].mxu0
    %v1174 = vadd.f32 %v1039, %v1173
    %v1175 = vpop.f32.mrb[0].mxu0
    %1176 = vmatprep.mubr.f32.mxu0 0.0
    %1177 = vmatmul.mubr.f32.gmra.mrb[0].mxu0 %v1071
    %v1178 = vpop.f32.mrb[0].mxu0
    %v1179 = vadd.f32 %v1044, %v1178
    %v1180 = vpop.f32.mrb[0].mxu0
    %1181 = vmatprep.mubr.f32.mxu0 0.0
    %1182 = vmatmul.mubr.f32.gmra.mrb[0].mxu0 %v1074
    %v1183 = vpop.f32.mrb[0].mxu0
    %v1184 = vadd.f32 %v1049, %v1183
    %v1185 = vpop.f32.mrb[0].mxu0
    %1186 = vdwg.mxu0
    %v1187 = vld [vmem:[#allocation2 + $0x9] sm:$0xff]
    %v1188 = vld [vmem:[#allocation2 + $0x11] sm:$0xff]
    %v1189 = vld [vmem:[#allocation2 + $0x19] sm:$0xff]
    %v1190 = vld [vmem:[#allocation2 + $0x21] sm:$0xff]
    %v1191 = vld [vmem:[#allocation2 + $0x29] sm:$0xff]
    %v1192 = vld [vmem:[#allocation2 + $0x31] sm:$0xff]
    %v1193 = vld [vmem:[#allocation2 + $0x39] sm:$0xff]
    %v1194 = vld [vmem:[#allocation2 + $0x41] sm:$0xff]
    %1195 = vset.pattern.permute.xlu0 2
    %1196 = vperm.xlu0 %1195, %v643
    %v1197 = vpop.permute.xlu0 %1196
    %1199 = vset.pattern.permute.xlu0 2
    %1200 = vperm.xlu0 %1199, %v644
    %v1201 = vpop.permute.xlu0 %1200
    %1203 = vset.pattern.permute.xlu0 2
    %1204 = vperm.xlu0 %1203, %v645
    %v1205 = vpop.permute.xlu0 %1204
    %1207 = vset.pattern.permute.xlu0 2
    %1208 = vperm.xlu0 %1207, %v646
    %v1209 = vpop.permute.xlu0 %1208
    %1211 = vset.pattern.permute.xlu0 2
    %1212 = vperm.xlu0 %1211, %v647
    %v1213 = vpop.permute.xlu0 %1212
    %1215 = vset.pattern.permute.xlu0 2
    %1216 = vperm.xlu0 %1215, %v648
    %v1217 = vpop.permute.xlu0 %1216
    %1219 = vset.pattern.permute.xlu0 2
    %1220 = vperm.xlu0 %1219, %v649
    %v1221 = vpop.permute.xlu0 %1220
    %1223 = vset.pattern.permute.xlu0 2
    %1224 = vperm.xlu0 %1223, %v650
    %v1225 = vpop.permute.xlu0 %1224
    %v1227 = vmul.f32 %v1187, %v1197
    %v1228 = vmul.f32 %v1188, %v1201
    %v1229 = vmul.f32 %v1189, %v1205
    %v1230 = vmul.f32 %v1190, %v1209
    %v1231 = vmul.f32 %v1191, %v1213
    %v1232 = vmul.f32 %v1192, %v1217
    %v1233 = vmul.f32 %v1193, %v1221
    %v1234 = vmul.f32 %v1194, %v1225
    %v1235 = vld [vmem:[#allocation4 + $0x6] sm:$0x7]
    %v1237 = vsel %vm707, %v1235, 0
    %1239 = vmatprep.subr.mxu0 0.0
    %1240 = vmatpush1.msra.mxu0 %v1237
    %1241 = vmatprep.subr.mxu0 0.0
    %1242 = vmatpush1.msra.mxu0 0.0
    %1243 = vmatprep.subr.mxu0 0.0
    %1244 = vmatpush1.msra.mxu0 0.0
    %1245 = vmatprep.subr.mxu0 0.0
    %1246 = vmatpush1.msra.mxu0 0.0
    %1247 = vmatprep.subr.mxu0 0.0
    %1248 = vmatpush1.msra.mxu0 0.0
    %1249 = vmatprep.subr.mxu0 0.0
    %1250 = vmatpush1.msra.mxu0 0.0
    %1251 = vmatprep.subr.mxu0 0.0
    %1252 = vmatpush1.msra.mxu0 0.0
    %1253 = vmatprep.subr.mxu0 0.0
    %1254 = vmatpush1.msra.mxu0 0.0
    %1255 = vmatprep.subr.mxu0 0.0
    %1256 = vmatpush1.msra.mxu0 0.0
    %1257 = vmatprep.subr.mxu0 0.0
    %1258 = vmatpush1.msra.mxu0 0.0
    %1259 = vmatprep.subr.mxu0 0.0
    %1260 = vmatpush1.msra.mxu0 0.0
    %1261 = vmatprep.subr.mxu0 0.0
    %1262 = vmatpush1.msra.mxu0 0.0
    %1263 = vmatprep.subr.mxu0 0.0
    %1264 = vmatpush1.msra.mxu0 0.0
    %1265 = vmatprep.subr.mxu0 0.0
    %1266 = vmatpush1.msra.mxu0 0.0
    %1267 = vmatprep.subr.mxu0 0.0
    %1268 = vmatpush1.msra.mxu0 0.0
    %1269 = vmatprep.subr.mxu0 0.0
    %1270 = vmatpush1.msra.mxu0 0.0
    %1271 = vmatprep.subr.mxu0 0.0
    %1272 = vmatpush1.msra.mxu0 0.0
    %1273 = vmatprep.subr.mxu0 0.0
    %1274 = vmatpush1.msra.mxu0 0.0
    %1275 = vmatprep.subr.mxu0 0.0
    %1276 = vmatpush1.msra.mxu0 0.0
    %1277 = vmatprep.subr.mxu0 0.0
    %1278 = vmatpush1.msra.mxu0 0.0
    %1279 = vmatprep.subr.mxu0 0.0
    %1280 = vmatpush1.msra.mxu0 0.0
    %1281 = vmatprep.subr.mxu0 0.0
    %1282 = vmatpush1.msra.mxu0 0.0
    %1283 = vmatprep.subr.mxu0 0.0
    %1284 = vmatpush1.msra.mxu0 0.0
    %1285 = vmatprep.subr.mxu0 0.0
    %1286 = vmatpush1.msra.mxu0 0.0
    %1287 = vmatprep.subr.mxu0 0.0
    %1288 = vmatpush1.msra.mxu0 0.0
    %1289 = vmatprep.subr.mxu0 0.0
    %1290 = vmatpush1.msra.mxu0 0.0
    %1291 = vmatprep.subr.mxu0 0.0
    %1292 = vmatpush1.msra.mxu0 0.0
    %1293 = vmatprep.subr.mxu0 0.0
    %1294 = vmatpush1.msra.mxu0 0.0
    %1295 = vmatprep.subr.mxu0 0.0
    %1296 = vmatpush1.msra.mxu0 0.0
    %1297 = vmatprep.subr.mxu0 0.0
    %1298 = vmatpush1.msra.mxu0 0.0
    %1299 = vmatprep.subr.mxu0 0.0
    %1300 = vmatpush1.msra.mxu0 0.0
    %1301 = vmatprep.subr.mxu0 0.0
    %1302 = vmatpush1.msra.mxu0 0.0
    %1303 = vmatprep.mubr.f32.mxu0 0.0
    %1304 = vmatmul.mubr.f32.gmra.mrb[0].mxu0 %v702
    %v1305 = vpop.f32.mrb[0].mxu0
    %v1306 = vadd.f32 0.0, %v1305
    %v1307 = vpop.f32.mrb[0].mxu0
    %1308 = vmatprep.mubr.f32.mxu0 0.0
    %1309 = vmatmul.mubr.f32.gmra.mrb[0].mxu0 %v705
    %v1310 = vpop.f32.mrb[0].mxu0
    %v1311 = vadd.f32 0.0, %v1310
    %v1312 = vpop.f32.mrb[0].mxu0
    %1313 = vdwg.mxu0
    %v1314 = vmul.f32 %v1306, %v613
    %v1315 = vmul.f32 %v1311, %v614
    %v1317 = vsel %vm62, %v1227, 0
    %v1320 = vsel %vm62, %v1228, 0
    %v1323 = vsel %vm62, %v1229, 0
    %v1326 = vsel %vm62, %v1230, 0
    %v1329 = vsel %vm62, %v1231, 0
    %v1332 = vsel %vm62, %v1232, 0
    %v1335 = vsel %vm62, %v1233, 0
    %v1338 = vsel %vm62, %v1234, 0
    %v1341 = vsel %vm62, %v1314, 0
    %v1344 = vsel %vm62, %v1315, 0
    %1346 = vmatprep.subr.mxu0 0.0
    %1347 = vmatpush1.xpose.msra.mxu0 %v1341
    %1348 = vmatprep.subr.mxu0 0.0
    %1349 = vmatpush1.xpose.msra.mxu0 %v1344
    %1350 = vmatprep.subr.mxu0 0.0
    %1351 = vmatpush1.xpose.msra.mxu0 0.0
    %1352 = vmatprep.subr.mxu0 0.0
    %1353 = vmatpush1.xpose.msra.mxu0 0.0
    %1354 = vmatprep.subr.mxu0 0.0
    %1355 = vmatpush1.xpose.msra.mxu0 0.0
    %1356 = vmatprep.subr.mxu0 0.0
    %1357 = vmatpush1.xpose.msra.mxu0 0.0
    %1358 = vmatprep.subr.mxu0 0.0
    %1359 = vmatpush1.xpose.msra.mxu0 0.0
    %1360 = vmatprep.subr.mxu0 0.0
    %1361 = vmatpush1.xpose.msra.mxu0 0.0
    %1362 = vmatprep.subr.mxu0 0.0
    %1363 = vmatpush1.xpose.msra.mxu0 0.0
    %1364 = vmatprep.subr.mxu0 0.0
    %1365 = vmatpush1.xpose.msra.mxu0 0.0
    %1366 = vmatprep.subr.mxu0 0.0
    %1367 = vmatpush1.xpose.msra.mxu0 0.0
    %1368 = vmatprep.subr.mxu0 0.0
    %1369 = vmatpush1.xpose.msra.mxu0 0.0
    %1370 = vmatprep.subr.mxu0 0.0
    %1371 = vmatpush1.xpose.msra.mxu0 0.0
    %1372 = vmatprep.subr.mxu0 0.0
    %1373 = vmatpush1.xpose.msra.mxu0 0.0
    %1374 = vmatprep.subr.mxu0 0.0
    %1375 = vmatpush1.xpose.msra.mxu0 0.0
    %1376 = vmatprep.subr.mxu0 0.0
    %1377 = vmatpush1.xpose.msra.mxu0 0.0
    %1378 = vmatprep.subr.mxu0 0.0
    %1379 = vmatpush1.xpose.msra.mxu0 0.0
    %1380 = vmatprep.subr.mxu0 0.0
    %1381 = vmatpush1.xpose.msra.mxu0 0.0
    %1382 = vmatprep.subr.mxu0 0.0
    %1383 = vmatpush1.xpose.msra.mxu0 0.0
    %1384 = vmatprep.subr.mxu0 0.0
    %1385 = vmatpush1.xpose.msra.mxu0 0.0
    %1386 = vmatprep.subr.mxu0 0.0
    %1387 = vmatpush1.xpose.msra.mxu0 0.0
    %1388 = vmatprep.subr.mxu0 0.0
    %1389 = vmatpush1.xpose.msra.mxu0 0.0
    %1390 = vmatprep.subr.mxu0 0.0
    %1391 = vmatpush1.xpose.msra.mxu0 0.0
    %1392 = vmatprep.subr.mxu0 0.0
    %1393 = vmatpush1.xpose.msra.mxu0 0.0
    %1394 = vmatprep.subr.mxu0 0.0
    %1395 = vmatpush1.xpose.msra.mxu0 0.0
    %1396 = vmatprep.subr.mxu0 0.0
    %1397 = vmatpush1.xpose.msra.mxu0 0.0
    %1398 = vmatprep.subr.mxu0 0.0
    %1399 = vmatpush1.xpose.msra.mxu0 0.0
    %1400 = vmatprep.subr.mxu0 0.0
    %1401 = vmatpush1.xpose.msra.mxu0 0.0
    %1402 = vmatprep.subr.mxu0 0.0
    %1403 = vmatpush1.xpose.msra.mxu0 0.0
    %1404 = vmatprep.subr.mxu0 0.0
    %1405 = vmatpush1.xpose.msra.mxu0 0.0
    %1406 = vmatprep.subr.mxu0 0.0
    %1407 = vmatpush1.xpose.msra.mxu0 0.0
    %1408 = vmatprep.subr.mxu0 0.0
    %1409 = vmatpush1.xpose.msra.mxu0 0.0
    %1410 = vmatprep.mubr.f32.mxu0 0.0
    %1411 = vmatmul.mubr.f32.gmra.mrb[0].mxu0 %v1317
    %v1412 = vpop.f32.mrb[0].mxu0
    %v1413 = vadd.f32 0.0, %v1412
    %v1414 = vpop.f32.mrb[0].mxu0
    %1415 = vmatprep.mubr.f32.mxu0 0.0
    %1416 = vmatmul.mubr.f32.gmra.mrb[0].mxu0 %v1320
    %v1417 = vpop.f32.mrb[0].mxu0
    %v1418 = vadd.f32 0.0, %v1417
    %v1419 = vpop.f32.mrb[0].mxu0
    %1420 = vmatprep.mubr.f32.mxu0 0.0
    %1421 = vmatmul.mubr.f32.gmra.mrb[0].mxu0 %v1323
    %v1422 = vpop.f32.mrb[0].mxu0
    %v1423 = vadd.f32 0.0, %v1422
    %v1424 = vpop.f32.mrb[0].mxu0
    %1425 = vmatprep.mubr.f32.mxu0 0.0
    %1426 = vmatmul.mubr.f32.gmra.mrb[0].mxu0 %v1326
    %v1427 = vpop.f32.mrb[0].mxu0
    %v1428 = vadd.f32 0.0, %v1427
    %v1429 = vpop.f32.mrb[0].mxu0
    %1430 = vmatprep.mubr.f32.mxu0 0.0
    %1431 = vmatmul.mubr.f32.gmra.mrb[0].mxu0 %v1329
    %v1432 = vpop.f32.mrb[0].mxu0
    %v1433 = vadd.f32 0.0, %v1432
    %v1434 = vpop.f32.mrb[0].mxu0
    %1435 = vmatprep.mubr.f32.mxu0 0.0
    %1436 = vmatmul.mubr.f32.gmra.mrb[0].mxu0 %v1332
    %v1437 = vpop.f32.mrb[0].mxu0
    %v1438 = vadd.f32 0.0, %v1437
    %v1439 = vpop.f32.mrb[0].mxu0
    %1440 = vmatprep.mubr.f32.mxu0 0.0
    %1441 = vmatmul.mubr.f32.gmra.mrb[0].mxu0 %v1335
    %v1442 = vpop.f32.mrb[0].mxu0
    %v1443 = vadd.f32 0.0, %v1442
    %v1444 = vpop.f32.mrb[0].mxu0
    %1445 = vmatprep.mubr.f32.mxu0 0.0
    %1446 = vmatmul.mubr.f32.gmra.mrb[0].mxu0 %v1338
    %v1447 = vpop.f32.mrb[0].mxu0
    %v1448 = vadd.f32 0.0, %v1447
    %v1449 = vpop.f32.mrb[0].mxu0
    %1450 = vdwg.mxu0
    %v1451 = vadd.f32 %v1149, %v1413
    %v1452 = vadd.f32 %v1154, %v1418
    %v1453 = vadd.f32 %v1159, %v1423
    %v1454 = vadd.f32 %v1164, %v1428
    %v1455 = vadd.f32 %v1169, %v1433
    %v1456 = vadd.f32 %v1174, %v1438
    %v1457 = vadd.f32 %v1179, %v1443
    %v1458 = vadd.f32 %v1184, %v1448
    %v1459 = vld [vmem:[#allocation2 + $0xf] sm:$0xff]
    %v1460 = vld [vmem:[#allocation2 + $0x17] sm:$0xff]
    %v1461 = vld [vmem:[#allocation2 + $0x1f] sm:$0xff]
    %v1462 = vld [vmem:[#allocation2 + $0x27] sm:$0xff]
    %v1463 = vld [vmem:[#allocation2 + $0x2f] sm:$0xff]
    %v1464 = vld [vmem:[#allocation2 + $0x37] sm:$0xff]
    %v1465 = vld [vmem:[#allocation2 + $0x3f] sm:$0xff]
    %v1466 = vld [vmem:[#allocation2 + $0x47] sm:$0xff]
    %v1467 = vmul.f32 %v1459, %v654
    %v1468 = vmul.f32 %v1460, %v659
    %v1469 = vmul.f32 %v1461, %v664
    %v1470 = vmul.f32 %v1462, %v669
    %v1471 = vmul.f32 %v1463, %v674
    %v1472 = vmul.f32 %v1464, %v679
    %v1473 = vmul.f32 %v1465, %v684
    %v1474 = vmul.f32 %v1466, %v689
    %v1475 = vld [vmem:[#allocation4 + $0x9] sm:$0x7]
    %v1477 = vsel %vm707, %v1475, 0
    %1479 = vmatprep.subr.mxu0 0.0
    %1480 = vmatpush1.msra.mxu0 %v1477
    %1481 = vmatprep.subr.mxu0 0.0
    %1482 = vmatpush1.msra.mxu0 0.0
    %1483 = vmatprep.subr.mxu0 0.0
    %1484 = vmatpush1.msra.mxu0 0.0
    %1485 = vmatprep.subr.mxu0 0.0
    %1486 = vmatpush1.msra.mxu0 0.0
    %1487 = vmatprep.subr.mxu0 0.0
    %1488 = vmatpush1.msra.mxu0 0.0
    %1489 = vmatprep.subr.mxu0 0.0
    %1490 = vmatpush1.msra.mxu0 0.0
    %1491 = vmatprep.subr.mxu0 0.0
    %1492 = vmatpush1.msra.mxu0 0.0
    %1493 = vmatprep.subr.mxu0 0.0
    %1494 = vmatpush1.msra.mxu0 0.0
    %1495 = vmatprep.subr.mxu0 0.0
    %1496 = vmatpush1.msra.mxu0 0.0
    %1497 = vmatprep.subr.mxu0 0.0
    %1498 = vmatpush1.msra.mxu0 0.0
    %1499 = vmatprep.subr.mxu0 0.0
    %1500 = vmatpush1.msra.mxu0 0.0
    %1501 = vmatprep.subr.mxu0 0.0
    %1502 = vmatpush1.msra.mxu0 0.0
    %1503 = vmatprep.subr.mxu0 0.0
    %1504 = vmatpush1.msra.mxu0 0.0
    %1505 = vmatprep.subr.mxu0 0.0
    %1506 = vmatpush1.msra.mxu0 0.0
    %1507 = vmatprep.subr.mxu0 0.0
    %1508 = vmatpush1.msra.mxu0 0.0
    %1509 = vmatprep.subr.mxu0 0.0
    %1510 = vmatpush1.msra.mxu0 0.0
    %1511 = vmatprep.subr.mxu0 0.0
    %1512 = vmatpush1.msra.mxu0 0.0
    %1513 = vmatprep.subr.mxu0 0.0
    %1514 = vmatpush1.msra.mxu0 0.0
    %1515 = vmatprep.subr.mxu0 0.0
    %1516 = vmatpush1.msra.mxu0 0.0
    %1517 = vmatprep.subr.mxu0 0.0
    %1518 = vmatpush1.msra.mxu0 0.0
    %1519 = vmatprep.subr.mxu0 0.0
    %1520 = vmatpush1.msra.mxu0 0.0
    %1521 = vmatprep.subr.mxu0 0.0
    %1522 = vmatpush1.msra.mxu0 0.0
    %1523 = vmatprep.subr.mxu0 0.0
    %1524 = vmatpush1.msra.mxu0 0.0
    %1525 = vmatprep.subr.mxu0 0.0
    %1526 = vmatpush1.msra.mxu0 0.0
    %1527 = vmatprep.subr.mxu0 0.0
    %1528 = vmatpush1.msra.mxu0 0.0
    %1529 = vmatprep.subr.mxu0 0.0
    %1530 = vmatpush1.msra.mxu0 0.0
    %1531 = vmatprep.subr.mxu0 0.0
    %1532 = vmatpush1.msra.mxu0 0.0
    %1533 = vmatprep.subr.mxu0 0.0
    %1534 = vmatpush1.msra.mxu0 0.0
    %1535 = vmatprep.subr.mxu0 0.0
    %1536 = vmatpush1.msra.mxu0 0.0
    %1537 = vmatprep.subr.mxu0 0.0
    %1538 = vmatpush1.msra.mxu0 0.0
    %1539 = vmatprep.subr.mxu0 0.0
    %1540 = vmatpush1.msra.mxu0 0.0
    %1541 = vmatprep.subr.mxu0 0.0
    %1542 = vmatpush1.msra.mxu0 0.0
    %1543 = vmatprep.mubr.f32.mxu0 0.0
    %1544 = vmatmul.mubr.f32.gmra.mrb[0].mxu0 %v702
    %v1545 = vpop.f32.mrb[0].mxu0
    %v1546 = vadd.f32 0.0, %v1545
    %v1547 = vpop.f32.mrb[0].mxu0
    %1548 = vmatprep.mubr.f32.mxu0 0.0
    %1549 = vmatmul.mubr.f32.gmra.mrb[0].mxu0 %v705
    %v1550 = vpop.f32.mrb[0].mxu0
    %v1551 = vadd.f32 0.0, %v1550
    %v1552 = vpop.f32.mrb[0].mxu0
    %1553 = vdwg.mxu0
    %v1554 = vmul.f32 %v1546, %v613
    %v1555 = vmul.f32 %v1551, %v614
    %v1557 = vsel %vm62, %v1467, 0
    %v1560 = vsel %vm62, %v1468, 0
    %v1563 = vsel %vm62, %v1469, 0
    %v1566 = vsel %vm62, %v1470, 0
    %v1569 = vsel %vm62, %v1471, 0
    %v1572 = vsel %vm62, %v1472, 0
    %v1575 = vsel %vm62, %v1473, 0
    %v1578 = vsel %vm62, %v1474, 0
    %v1581 = vsel %vm62, %v1554, 0
    %v1584 = vsel %vm62, %v1555, 0
    %1586 = vmatprep.subr.mxu0 0.0
    %1587 = vmatpush1.xpose.msra.mxu0 %v1581
    %1588 = vmatprep.subr.mxu0 0.0
    %1589 = vmatpush1.xpose.msra.mxu0 %v1584
    %1590 = vmatprep.subr.mxu0 0.0
    %1591 = vmatpush1.xpose.msra.mxu0 0.0
    %1592 = vmatprep.subr.mxu0 0.0
    %1593 = vmatpush1.xpose.msra.mxu0 0.0
    %1594 = vmatprep.subr.mxu0 0.0
    %1595 = vmatpush1.xpose.msra.mxu0 0.0
    %1596 = vmatprep.subr.mxu0 0.0
    %1597 = vmatpush1.xpose.msra.mxu0 0.0
    %1598 = vmatprep.subr.mxu0 0.0
    %1599 = vmatpush1.xpose.msra.mxu0 0.0
    %1600 = vmatprep.subr.mxu0 0.0
    %1601 = vmatpush1.xpose.msra.mxu0 0.0
    %1602 = vmatprep.subr.mxu0 0.0
    %1603 = vmatpush1.xpose.msra.mxu0 0.0
    %1604 = vmatprep.subr.mxu0 0.0
    %1605 = vmatpush1.xpose.msra.mxu0 0.0
    %1606 = vmatprep.subr.mxu0 0.0
    %1607 = vmatpush1.xpose.msra.mxu0 0.0
    %1608 = vmatprep.subr.mxu0 0.0
    %1609 = vmatpush1.xpose.msra.mxu0 0.0
    %1610 = vmatprep.subr.mxu0 0.0
    %1611 = vmatpush1.xpose.msra.mxu0 0.0
    %1612 = vmatprep.subr.mxu0 0.0
    %1613 = vmatpush1.xpose.msra.mxu0 0.0
    %1614 = vmatprep.subr.mxu0 0.0
    %1615 = vmatpush1.xpose.msra.mxu0 0.0
    %1616 = vmatprep.subr.mxu0 0.0
    %1617 = vmatpush1.xpose.msra.mxu0 0.0
    %1618 = vmatprep.subr.mxu0 0.0
    %1619 = vmatpush1.xpose.msra.mxu0 0.0
    %1620 = vmatprep.subr.mxu0 0.0
    %1621 = vmatpush1.xpose.msra.mxu0 0.0
    %1622 = vmatprep.subr.mxu0 0.0
    %1623 = vmatpush1.xpose.msra.mxu0 0.0
    %1624 = vmatprep.subr.mxu0 0.0
    %1625 = vmatpush1.xpose.msra.mxu0 0.0
    %1626 = vmatprep.subr.mxu0 0.0
    %1627 = vmatpush1.xpose.msra.mxu0 0.0
    %1628 = vmatprep.subr.mxu0 0.0
    %1629 = vmatpush1.xpose.msra.mxu0 0.0
    %1630 = vmatprep.subr.mxu0 0.0
    %1631 = vmatpush1.xpose.msra.mxu0 0.0
    %1632 = vmatprep.subr.mxu0 0.0
    %1633 = vmatpush1.xpose.msra.mxu0 0.0
    %1634 = vmatprep.subr.mxu0 0.0
    %1635 = vmatpush1.xpose.msra.mxu0 0.0
    %1636 = vmatprep.subr.mxu0 0.0
    %1637 = vmatpush1.xpose.msra.mxu0 0.0
    %1638 = vmatprep.subr.mxu0 0.0
    %1639 = vmatpush1.xpose.msra.mxu0 0.0
    %1640 = vmatprep.subr.mxu0 0.0
    %1641 = vmatpush1.xpose.msra.mxu0 0.0
    %1642 = vmatprep.subr.mxu0 0.0
    %1643 = vmatpush1.xpose.msra.mxu0 0.0
    %1644 = vmatprep.subr.mxu0 0.0
    %1645 = vmatpush1.xpose.msra.mxu0 0.0
    %1646 = vmatprep.subr.mxu0 0.0
    %1647 = vmatpush1.xpose.msra.mxu0 0.0
    %1648 = vmatprep.subr.mxu0 0.0
    %1649 = vmatpush1.xpose.msra.mxu0 0.0
    %1650 = vmatprep.mubr.f32.mxu0 0.0
    %1651 = vmatmul.mubr.f32.gmra.mrb[0].mxu0 %v1557
    %v1652 = vpop.f32.mrb[0].mxu0
    %v1653 = vadd.f32 0.0, %v1652
    %v1654 = vpop.f32.mrb[0].mxu0
    %1655 = vmatprep.mubr.f32.mxu0 0.0
    %1656 = vmatmul.mubr.f32.gmra.mrb[0].mxu0 %v1560
    %v1657 = vpop.f32.mrb[0].mxu0
    %v1658 = vadd.f32 0.0, %v1657
    %v1659 = vpop.f32.mrb[0].mxu0
    %1660 = vmatprep.mubr.f32.mxu0 0.0
    %1661 = vmatmul.mubr.f32.gmra.mrb[0].mxu0 %v1563
    %v1662 = vpop.f32.mrb[0].mxu0
    %v1663 = vadd.f32 0.0, %v1662
    %v1664 = vpop.f32.mrb[0].mxu0
    %1665 = vmatprep.mubr.f32.mxu0 0.0
    %1666 = vmatmul.mubr.f32.gmra.mrb[0].mxu0 %v1566
    %v1667 = vpop.f32.mrb[0].mxu0
    %v1668 = vadd.f32 0.0, %v1667
    %v1669 = vpop.f32.mrb[0].mxu0
    %1670 = vmatprep.mubr.f32.mxu0 0.0
    %1671 = vmatmul.mubr.f32.gmra.mrb[0].mxu0 %v1569
    %v1672 = vpop.f32.mrb[0].mxu0
    %v1673 = vadd.f32 0.0, %v1672
    %v1674 = vpop.f32.mrb[0].mxu0
    %1675 = vmatprep.mubr.f32.mxu0 0.0
    %1676 = vmatmul.mubr.f32.gmra.mrb[0].mxu0 %v1572
    %v1677 = vpop.f32.mrb[0].mxu0
    %v1678 = vadd.f32 0.0, %v1677
    %v1679 = vpop.f32.mrb[0].mxu0
    %1680 = vmatprep.mubr.f32.mxu0 0.0
    %1681 = vmatmul.mubr.f32.gmra.mrb[0].mxu0 %v1575
    %v1682 = vpop.f32.mrb[0].mxu0
    %v1683 = vadd.f32 0.0, %v1682
    %v1684 = vpop.f32.mrb[0].mxu0
    %1685 = vmatprep.mubr.f32.mxu0 0.0
    %1686 = vmatmul.mubr.f32.gmra.mrb[0].mxu0 %v1578
    %v1687 = vpop.f32.mrb[0].mxu0
    %v1688 = vadd.f32 0.0, %v1687
    %v1689 = vpop.f32.mrb[0].mxu0
    %1690 = vdwg.mxu0
    %v1691 = vadd.f32 %v1451, %v1653
    %v1692 = vadd.f32 %v1452, %v1658
    %v1693 = vadd.f32 %v1453, %v1663
    %v1694 = vadd.f32 %v1454, %v1668
    %v1695 = vadd.f32 %v1455, %v1673
    %v1696 = vadd.f32 %v1456, %v1678
    %v1697 = vadd.f32 %v1457, %v1683
    %v1698 = vadd.f32 %v1458, %v1688
    %v1699 = vld [vmem:[#allocation2 + $0x10] sm:$0xff]
    %v1700 = vld [vmem:[#allocation2 + $0x18] sm:$0xff]
    %v1701 = vld [vmem:[#allocation2 + $0x20] sm:$0xff]
    %v1702 = vld [vmem:[#allocation2 + $0x28] sm:$0xff]
    %v1703 = vld [vmem:[#allocation2 + $0x30] sm:$0xff]
    %v1704 = vld [vmem:[#allocation2 + $0x38] sm:$0xff]
    %v1705 = vld [vmem:[#allocation2 + $0x40] sm:$0xff]
    %v1706 = vld [vmem:[#allocation2 + $0x48] sm:$0xff]
    %v1707 = vmul.f32 %v1699, %v798
    %v1708 = vmul.f32 %v1700, %v802
    %v1709 = vmul.f32 %v1701, %v806
    %v1710 = vmul.f32 %v1702, %v810
    %v1711 = vmul.f32 %v1703, %v814
    %v1712 = vmul.f32 %v1704, %v818
    %v1713 = vmul.f32 %v1705, %v822
    %v1714 = vmul.f32 %v1706, %v826
    %v1715 = vld [vmem:[#allocation4 + $0xc] sm:$0x7]
    %v1717 = vsel %vm707, %v1715, 0
    %1719 = vmatprep.subr.mxu0 0.0
    %1720 = vmatpush1.msra.mxu0 %v1717
    %1721 = vmatprep.subr.mxu0 0.0
    %1722 = vmatpush1.msra.mxu0 0.0
    %1723 = vmatprep.subr.mxu0 0.0
    %1724 = vmatpush1.msra.mxu0 0.0
    %1725 = vmatprep.subr.mxu0 0.0
    %1726 = vmatpush1.msra.mxu0 0.0
    %1727 = vmatprep.subr.mxu0 0.0
    %1728 = vmatpush1.msra.mxu0 0.0
    %1729 = vmatprep.subr.mxu0 0.0
    %1730 = vmatpush1.msra.mxu0 0.0
    %1731 = vmatprep.subr.mxu0 0.0
    %1732 = vmatpush1.msra.mxu0 0.0
    %1733 = vmatprep.subr.mxu0 0.0
    %1734 = vmatpush1.msra.mxu0 0.0
    %1735 = vmatprep.subr.mxu0 0.0
    %1736 = vmatpush1.msra.mxu0 0.0
    %1737 = vmatprep.subr.mxu0 0.0
    %1738 = vmatpush1.msra.mxu0 0.0
    %1739 = vmatprep.subr.mxu0 0.0
    %1740 = vmatpush1.msra.mxu0 0.0
    %1741 = vmatprep.subr.mxu0 0.0
    %1742 = vmatpush1.msra.mxu0 0.0
    %1743 = vmatprep.subr.mxu0 0.0
    %1744 = vmatpush1.msra.mxu0 0.0
    %1745 = vmatprep.subr.mxu0 0.0
    %1746 = vmatpush1.msra.mxu0 0.0
    %1747 = vmatprep.subr.mxu0 0.0
    %1748 = vmatpush1.msra.mxu0 0.0
    %1749 = vmatprep.subr.mxu0 0.0
    %1750 = vmatpush1.msra.mxu0 0.0
    %1751 = vmatprep.subr.mxu0 0.0
    %1752 = vmatpush1.msra.mxu0 0.0
    %1753 = vmatprep.subr.mxu0 0.0
    %1754 = vmatpush1.msra.mxu0 0.0
    %1755 = vmatprep.subr.mxu0 0.0
    %1756 = vmatpush1.msra.mxu0 0.0
    %1757 = vmatprep.subr.mxu0 0.0
    %1758 = vmatpush1.msra.mxu0 0.0
    %1759 = vmatprep.subr.mxu0 0.0
    %1760 = vmatpush1.msra.mxu0 0.0
    %1761 = vmatprep.subr.mxu0 0.0
    %1762 = vmatpush1.msra.mxu0 0.0
    %1763 = vmatprep.subr.mxu0 0.0
    %1764 = vmatpush1.msra.mxu0 0.0
    %1765 = vmatprep.subr.mxu0 0.0
    %1766 = vmatpush1.msra.mxu0 0.0
    %1767 = vmatprep.subr.mxu0 0.0
    %1768 = vmatpush1.msra.mxu0 0.0
    %1769 = vmatprep.subr.mxu0 0.0
    %1770 = vmatpush1.msra.mxu0 0.0
    %1771 = vmatprep.subr.mxu0 0.0
    %1772 = vmatpush1.msra.mxu0 0.0
    %1773 = vmatprep.subr.mxu0 0.0
    %1774 = vmatpush1.msra.mxu0 0.0
    %1775 = vmatprep.subr.mxu0 0.0
    %1776 = vmatpush1.msra.mxu0 0.0
    %1777 = vmatprep.subr.mxu0 0.0
    %1778 = vmatpush1.msra.mxu0 0.0
    %1779 = vmatprep.subr.mxu0 0.0
    %1780 = vmatpush1.msra.mxu0 0.0
    %1781 = vmatprep.subr.mxu0 0.0
    %1782 = vmatpush1.msra.mxu0 0.0
    %1783 = vmatprep.mubr.f32.mxu0 0.0
    %1784 = vmatmul.mubr.f32.gmra.mrb[0].mxu0 %v702
    %v1785 = vpop.f32.mrb[0].mxu0
    %v1786 = vadd.f32 0.0, %v1785
    %v1787 = vpop.f32.mrb[0].mxu0
    %1788 = vmatprep.mubr.f32.mxu0 0.0
    %1789 = vmatmul.mubr.f32.gmra.mrb[0].mxu0 %v705
    %v1790 = vpop.f32.mrb[0].mxu0
    %v1791 = vadd.f32 0.0, %v1790
    %v1792 = vpop.f32.mrb[0].mxu0
    %1793 = vdwg.mxu0
    %v1794 = vmul.f32 %v1786, %v613
    %v1795 = vmul.f32 %v1791, %v614
    %v1797 = vsel %vm62, %v1707, 0
    %v1800 = vsel %vm62, %v1708, 0
    %v1803 = vsel %vm62, %v1709, 0
    %v1806 = vsel %vm62, %v1710, 0
    %v1809 = vsel %vm62, %v1711, 0
    %v1812 = vsel %vm62, %v1712, 0
    %v1815 = vsel %vm62, %v1713, 0
    %v1818 = vsel %vm62, %v1714, 0
    %v1821 = vsel %vm62, %v1794, 0
    %v1824 = vsel %vm62, %v1795, 0
    %1826 = vmatprep.subr.mxu0 0.0
    %1827 = vmatpush1.xpose.msra.mxu0 %v1821
    %1828 = vmatprep.subr.mxu0 0.0
    %1829 = vmatpush1.xpose.msra.mxu0 %v1824
    %1830 = vmatprep.subr.mxu0 0.0
    %1831 = vmatpush1.xpose.msra.mxu0 0.0
    %1832 = vmatprep.subr.mxu0 0.0
    %1833 = vmatpush1.xpose.msra.mxu0 0.0
    %1834 = vmatprep.subr.mxu0 0.0
    %1835 = vmatpush1.xpose.msra.mxu0 0.0
    %1836 = vmatprep.subr.mxu0 0.0
    %1837 = vmatpush1.xpose.msra.mxu0 0.0
    %1838 = vmatprep.subr.mxu0 0.0
    %1839 = vmatpush1.xpose.msra.mxu0 0.0
    %1840 = vmatprep.subr.mxu0 0.0
    %1841 = vmatpush1.xpose.msra.mxu0 0.0
    %1842 = vmatprep.subr.mxu0 0.0
    %1843 = vmatpush1.xpose.msra.mxu0 0.0
    %1844 = vmatprep.subr.mxu0 0.0
    %1845 = vmatpush1.xpose.msra.mxu0 0.0
    %1846 = vmatprep.subr.mxu0 0.0
    %1847 = vmatpush1.xpose.msra.mxu0 0.0
    %1848 = vmatprep.subr.mxu0 0.0
    %1849 = vmatpush1.xpose.msra.mxu0 0.0
    %1850 = vmatprep.subr.mxu0 0.0
    %1851 = vmatpush1.xpose.msra.mxu0 0.0
    %1852 = vmatprep.subr.mxu0 0.0
    %1853 = vmatpush1.xpose.msra.mxu0 0.0
    %1854 = vmatprep.subr.mxu0 0.0
    %1855 = vmatpush1.xpose.msra.mxu0 0.0
    %1856 = vmatprep.subr.mxu0 0.0
    %1857 = vmatpush1.xpose.msra.mxu0 0.0
    %1858 = vmatprep.subr.mxu0 0.0
    %1859 = vmatpush1.xpose.msra.mxu0 0.0
    %1860 = vmatprep.subr.mxu0 0.0
    %1861 = vmatpush1.xpose.msra.mxu0 0.0
    %1862 = vmatprep.subr.mxu0 0.0
    %1863 = vmatpush1.xpose.msra.mxu0 0.0
    %1864 = vmatprep.subr.mxu0 0.0
    %1865 = vmatpush1.xpose.msra.mxu0 0.0
    %1866 = vmatprep.subr.mxu0 0.0
    %1867 = vmatpush1.xpose.msra.mxu0 0.0
    %1868 = vmatprep.subr.mxu0 0.0
    %1869 = vmatpush1.xpose.msra.mxu0 0.0
    %1870 = vmatprep.subr.mxu0 0.0
    %1871 = vmatpush1.xpose.msra.mxu0 0.0
    %1872 = vmatprep.subr.mxu0 0.0
    %1873 = vmatpush1.xpose.msra.mxu0 0.0
    %1874 = vmatprep.subr.mxu0 0.0
    %1875 = vmatpush1.xpose.msra.mxu0 0.0
    %1876 = vmatprep.subr.mxu0 0.0
    %1877 = vmatpush1.xpose.msra.mxu0 0.0
    %1878 = vmatprep.subr.mxu0 0.0
    %1879 = vmatpush1.xpose.msra.mxu0 0.0
    %1880 = vmatprep.subr.mxu0 0.0
    %1881 = vmatpush1.xpose.msra.mxu0 0.0
    %1882 = vmatprep.subr.mxu0 0.0
    %1883 = vmatpush1.xpose.msra.mxu0 0.0
    %1884 = vmatprep.subr.mxu0 0.0
    %1885 = vmatpush1.xpose.msra.mxu0 0.0
    %1886 = vmatprep.subr.mxu0 0.0
    %1887 = vmatpush1.xpose.msra.mxu0 0.0
    %1888 = vmatprep.subr.mxu0 0.0
    %1889 = vmatpush1.xpose.msra.mxu0 0.0
    %1890 = vmatprep.mubr.f32.mxu0 0.0
    %1891 = vmatmul.mubr.f32.gmra.mrb[0].mxu0 %v1797
    %v1892 = vpop.f32.mrb[0].mxu0
    %v1893 = vadd.f32 0.0, %v1892
    %v1894 = vpop.f32.mrb[0].mxu0
    %1895 = vmatprep.mubr.f32.mxu0 0.0
    %1896 = vmatmul.mubr.f32.gmra.mrb[0].mxu0 %v1800
    %v1897 = vpop.f32.mrb[0].mxu0
    %v1898 = vadd.f32 0.0, %v1897
    %v1899 = vpop.f32.mrb[0].mxu0
    %1900 = vmatprep.mubr.f32.mxu0 0.0
    %1901 = vmatmul.mubr.f32.gmra.mrb[0].mxu0 %v1803
    %v1902 = vpop.f32.mrb[0].mxu0
    %v1903 = vadd.f32 0.0, %v1902
    %v1904 = vpop.f32.mrb[0].mxu0
    %1905 = vmatprep.mubr.f32.mxu0 0.0
    %1906 = vmatmul.mubr.f32.gmra.mrb[0].mxu0 %v1806
    %v1907 = vpop.f32.mrb[0].mxu0
    %v1908 = vadd.f32 0.0, %v1907
    %v1909 = vpop.f32.mrb[0].mxu0
    %1910 = vmatprep.mubr.f32.mxu0 0.0
    %1911 = vmatmul.mubr.f32.gmra.mrb[0].mxu0 %v1809
    %v1912 = vpop.f32.mrb[0].mxu0
    %v1913 = vadd.f32 0.0, %v1912
    %v1914 = vpop.f32.mrb[0].mxu0
    %1915 = vmatprep.mubr.f32.mxu0 0.0
    %1916 = vmatmul.mubr.f32.gmra.mrb[0].mxu0 %v1812
    %v1917 = vpop.f32.mrb[0].mxu0
    %v1918 = vadd.f32 0.0, %v1917
    %v1919 = vpop.f32.mrb[0].mxu0
    %1920 = vmatprep.mubr.f32.mxu0 0.0
    %1921 = vmatmul.mubr.f32.gmra.mrb[0].mxu0 %v1815
    %v1922 = vpop.f32.mrb[0].mxu0
    %v1923 = vadd.f32 0.0, %v1922
    %v1924 = vpop.f32.mrb[0].mxu0
    %1925 = vmatprep.mubr.f32.mxu0 0.0
    %1926 = vmatmul.mubr.f32.gmra.mrb[0].mxu0 %v1818
    %v1927 = vpop.f32.mrb[0].mxu0
    %v1928 = vadd.f32 0.0, %v1927
    %v1929 = vpop.f32.mrb[0].mxu0
    %1930 = vdwg.mxu0
    %v1931 = vadd.f32 %v1691, %v1893
    %v1932 = vadd.f32 %v1692, %v1898
    %v1933 = vadd.f32 %v1693, %v1903
    %v1934 = vadd.f32 %v1694, %v1908
    %v1935 = vadd.f32 %v1695, %v1913
    %v1936 = vadd.f32 %v1696, %v1918
    %v1937 = vadd.f32 %v1697, %v1923
    %v1938 = vadd.f32 %v1698, %v1928
    %v1939 = vld [vmem:[#allocation2 + $0x11] sm:$0xff]
    %v1940 = vld [vmem:[#allocation2 + $0x19] sm:$0xff]
    %v1941 = vld [vmem:[#allocation2 + $0x21] sm:$0xff]
    %v1942 = vld [vmem:[#allocation2 + $0x29] sm:$0xff]
    %v1943 = vld [vmem:[#allocation2 + $0x31] sm:$0xff]
    %v1944 = vld [vmem:[#allocation2 + $0x39] sm:$0xff]
    %v1945 = vld [vmem:[#allocation2 + $0x41] sm:$0xff]
    %v1946 = vld [vmem:[#allocation2 + $0x49] sm:$0xff]
    %v1947 = vmul.f32 %v1939, %v1197
    %v1948 = vmul.f32 %v1940, %v1201
    %v1949 = vmul.f32 %v1941, %v1205
    %v1950 = vmul.f32 %v1942, %v1209
    %v1951 = vmul.f32 %v1943, %v1213
    %v1952 = vmul.f32 %v1944, %v1217
    %v1953 = vmul.f32 %v1945, %v1221
    %v1954 = vmul.f32 %v1946, %v1225
    %v1955 = vld [vmem:[#allocation4 + $0xf] sm:$0x7]
    %v1957 = vsel %vm707, %v1955, 0
    %1959 = vmatprep.subr.mxu0 0.0
    %1960 = vmatpush1.msra.mxu0 %v1957
    %1961 = vmatprep.subr.mxu0 0.0
    %1962 = vmatpush1.msra.mxu0 0.0
    %1963 = vmatprep.subr.mxu0 0.0
    %1964 = vmatpush1.msra.mxu0 0.0
    %1965 = vmatprep.subr.mxu0 0.0
    %1966 = vmatpush1.msra.mxu0 0.0
    %1967 = vmatprep.subr.mxu0 0.0
    %1968 = vmatpush1.msra.mxu0 0.0
    %1969 = vmatprep.subr.mxu0 0.0
    %1970 = vmatpush1.msra.mxu0 0.0
    %1971 = vmatprep.subr.mxu0 0.0
    %1972 = vmatpush1.msra.mxu0 0.0
    %1973 = vmatprep.subr.mxu0 0.0
    %1974 = vmatpush1.msra.mxu0 0.0
    %1975 = vmatprep.subr.mxu0 0.0
    %1976 = vmatpush1.msra.mxu0 0.0
    %1977 = vmatprep.subr.mxu0 0.0
    %1978 = vmatpush1.msra.mxu0 0.0
    %1979 = vmatprep.subr.mxu0 0.0
    %1980 = vmatpush1.msra.mxu0 0.0
    %1981 = vmatprep.subr.mxu0 0.0
    %1982 = vmatpush1.msra.mxu0 0.0
    %1983 = vmatprep.subr.mxu0 0.0
    %1984 = vmatpush1.msra.mxu0 0.0
    %1985 = vmatprep.subr.mxu0 0.0
    %1986 = vmatpush1.msra.mxu0 0.0
    %1987 = vmatprep.subr.mxu0 0.0
    %1988 = vmatpush1.msra.mxu0 0.0
    %1989 = vmatprep.subr.mxu0 0.0
    %1990 = vmatpush1.msra.mxu0 0.0
    %1991 = vmatprep.subr.mxu0 0.0
    %1992 = vmatpush1.msra.mxu0 0.0
    %1993 = vmatprep.subr.mxu0 0.0
    %1994 = vmatpush1.msra.mxu0 0.0
    %1995 = vmatprep.subr.mxu0 0.0
    %1996 = vmatpush1.msra.mxu0 0.0
    %1997 = vmatprep.subr.mxu0 0.0
    %1998 = vmatpush1.msra.mxu0 0.0
    %1999 = vmatprep.subr.mxu0 0.0
    %2000 = vmatpush1.msra.mxu0 0.0
    %2001 = vmatprep.subr.mxu0 0.0
    %2002 = vmatpush1.msra.mxu0 0.0
    %2003 = vmatprep.subr.mxu0 0.0
    %2004 = vmatpush1.msra.mxu0 0.0
    %2005 = vmatprep.subr.mxu0 0.0
    %2006 = vmatpush1.msra.mxu0 0.0
    %2007 = vmatprep.subr.mxu0 0.0
    %2008 = vmatpush1.msra.mxu0 0.0
    %2009 = vmatprep.subr.mxu0 0.0
    %2010 = vmatpush1.msra.mxu0 0.0
    %2011 = vmatprep.subr.mxu0 0.0
    %2012 = vmatpush1.msra.mxu0 0.0
    %2013 = vmatprep.subr.mxu0 0.0
    %2014 = vmatpush1.msra.mxu0 0.0
    %2015 = vmatprep.subr.mxu0 0.0
    %2016 = vmatpush1.msra.mxu0 0.0
    %2017 = vmatprep.subr.mxu0 0.0
    %2018 = vmatpush1.msra.mxu0 0.0
    %2019 = vmatprep.subr.mxu0 0.0
    %2020 = vmatpush1.msra.mxu0 0.0
    %2021 = vmatprep.subr.mxu0 0.0
    %2022 = vmatpush1.msra.mxu0 0.0
    %2023 = vmatprep.mubr.f32.mxu0 0.0
    %2024 = vmatmul.mubr.f32.gmra.mrb[0].mxu0 %v702
    %v2025 = vpop.f32.mrb[0].mxu0
    %v2026 = vadd.f32 0.0, %v2025
    %v2027 = vpop.f32.mrb[0].mxu0
    %2028 = vmatprep.mubr.f32.mxu0 0.0
    %2029 = vmatmul.mubr.f32.gmra.mrb[0].mxu0 %v705
    %v2030 = vpop.f32.mrb[0].mxu0
    %v2031 = vadd.f32 0.0, %v2030
    %v2032 = vpop.f32.mrb[0].mxu0
    %2033 = vdwg.mxu0
    %v2034 = vmul.f32 %v2026, %v613
    %v2035 = vmul.f32 %v2031, %v614
    %v2037 = vsel %vm62, %v1947, 0
    %v2040 = vsel %vm62, %v1948, 0
    %v2043 = vsel %vm62, %v1949, 0
    %v2046 = vsel %vm62, %v1950, 0
    %v2049 = vsel %vm62, %v1951, 0
    %v2052 = vsel %vm62, %v1952, 0
    %v2055 = vsel %vm62, %v1953, 0
    %v2058 = vsel %vm62, %v1954, 0
    %v2061 = vsel %vm62, %v2034, 0
    %v2064 = vsel %vm62, %v2035, 0
    %2066 = vmatprep.subr.mxu0 0.0
    %2067 = vmatpush1.xpose.msra.mxu0 %v2061
    %2068 = vmatprep.subr.mxu0 0.0
    %2069 = vmatpush1.xpose.msra.mxu0 %v2064
    %2070 = vmatprep.subr.mxu0 0.0
    %2071 = vmatpush1.xpose.msra.mxu0 0.0
    %2072 = vmatprep.subr.mxu0 0.0
    %2073 = vmatpush1.xpose.msra.mxu0 0.0
    %2074 = vmatprep.subr.mxu0 0.0
    %2075 = vmatpush1.xpose.msra.mxu0 0.0
    %2076 = vmatprep.subr.mxu0 0.0
    %2077 = vmatpush1.xpose.msra.mxu0 0.0
    %2078 = vmatprep.subr.mxu0 0.0
    %2079 = vmatpush1.xpose.msra.mxu0 0.0
    %2080 = vmatprep.subr.mxu0 0.0
    %2081 = vmatpush1.xpose.msra.mxu0 0.0
    %2082 = vmatprep.subr.mxu0 0.0
    %2083 = vmatpush1.xpose.msra.mxu0 0.0
    %2084 = vmatprep.subr.mxu0 0.0
    %2085 = vmatpush1.xpose.msra.mxu0 0.0
    %2086 = vmatprep.subr.mxu0 0.0
    %2087 = vmatpush1.xpose.msra.mxu0 0.0
    %2088 = vmatprep.subr.mxu0 0.0
    %2089 = vmatpush1.xpose.msra.mxu0 0.0
    %2090 = vmatprep.subr.mxu0 0.0
    %2091 = vmatpush1.xpose.msra.mxu0 0.0
    %2092 = vmatprep.subr.mxu0 0.0
    %2093 = vmatpush1.xpose.msra.mxu0 0.0
    %2094 = vmatprep.subr.mxu0 0.0
    %2095 = vmatpush1.xpose.msra.mxu0 0.0
    %2096 = vmatprep.subr.mxu0 0.0
    %2097 = vmatpush1.xpose.msra.mxu0 0.0
    %2098 = vmatprep.subr.mxu0 0.0
    %2099 = vmatpush1.xpose.msra.mxu0 0.0
    %2100 = vmatprep.subr.mxu0 0.0
    %2101 = vmatpush1.xpose.msra.mxu0 0.0
    %2102 = vmatprep.subr.mxu0 0.0
    %2103 = vmatpush1.xpose.msra.mxu0 0.0
    %2104 = vmatprep.subr.mxu0 0.0
    %2105 = vmatpush1.xpose.msra.mxu0 0.0
    %2106 = vmatprep.subr.mxu0 0.0
    %2107 = vmatpush1.xpose.msra.mxu0 0.0
    %2108 = vmatprep.subr.mxu0 0.0
    %2109 = vmatpush1.xpose.msra.mxu0 0.0
    %2110 = vmatprep.subr.mxu0 0.0
    %2111 = vmatpush1.xpose.msra.mxu0 0.0
    %2112 = vmatprep.subr.mxu0 0.0
    %2113 = vmatpush1.xpose.msra.mxu0 0.0
    %2114 = vmatprep.subr.mxu0 0.0
    %2115 = vmatpush1.xpose.msra.mxu0 0.0
    %2116 = vmatprep.subr.mxu0 0.0
    %2117 = vmatpush1.xpose.msra.mxu0 0.0
    %2118 = vmatprep.subr.mxu0 0.0
    %2119 = vmatpush1.xpose.msra.mxu0 0.0
    %2120 = vmatprep.subr.mxu0 0.0
    %2121 = vmatpush1.xpose.msra.mxu0 0.0
    %2122 = vmatprep.subr.mxu0 0.0
    %2123 = vmatpush1.xpose.msra.mxu0 0.0
    %2124 = vmatprep.subr.mxu0 0.0
    %2125 = vmatpush1.xpose.msra.mxu0 0.0
    %2126 = vmatprep.subr.mxu0 0.0
    %2127 = vmatpush1.xpose.msra.mxu0 0.0
    %2128 = vmatprep.subr.mxu0 0.0
    %2129 = vmatpush1.xpose.msra.mxu0 0.0
    %2130 = vmatprep.mubr.f32.mxu0 0.0
    %2131 = vmatmul.mubr.f32.gmra.mrb[0].mxu0 %v2037
    %v2132 = vpop.f32.mrb[0].mxu0
    %v2133 = vadd.f32 0.0, %v2132
    %v2134 = vpop.f32.mrb[0].mxu0
    %2135 = vmatprep.mubr.f32.mxu0 0.0
    %2136 = vmatmul.mubr.f32.gmra.mrb[0].mxu0 %v2040
    %v2137 = vpop.f32.mrb[0].mxu0
    %v2138 = vadd.f32 0.0, %v2137
    %v2139 = vpop.f32.mrb[0].mxu0
    %2140 = vmatprep.mubr.f32.mxu0 0.0
    %2141 = vmatmul.mubr.f32.gmra.mrb[0].mxu0 %v2043
    %v2142 = vpop.f32.mrb[0].mxu0
    %v2143 = vadd.f32 0.0, %v2142
    %v2144 = vpop.f32.mrb[0].mxu0
    %2145 = vmatprep.mubr.f32.mxu0 0.0
    %2146 = vmatmul.mubr.f32.gmra.mrb[0].mxu0 %v2046
    %v2147 = vpop.f32.mrb[0].mxu0
    %v2148 = vadd.f32 0.0, %v2147
    %v2149 = vpop.f32.mrb[0].mxu0
    %2150 = vmatprep.mubr.f32.mxu0 0.0
    %2151 = vmatmul.mubr.f32.gmra.mrb[0].mxu0 %v2049
    %v2152 = vpop.f32.mrb[0].mxu0
    %v2153 = vadd.f32 0.0, %v2152
    %v2154 = vpop.f32.mrb[0].mxu0
    %2155 = vmatprep.mubr.f32.mxu0 0.0
    %2156 = vmatmul.mubr.f32.gmra.mrb[0].mxu0 %v2052
    %v2157 = vpop.f32.mrb[0].mxu0
    %v2158 = vadd.f32 0.0, %v2157
    %v2159 = vpop.f32.mrb[0].mxu0
    %2160 = vmatprep.mubr.f32.mxu0 0.0
    %2161 = vmatmul.mubr.f32.gmra.mrb[0].mxu0 %v2055
    %v2162 = vpop.f32.mrb[0].mxu0
    %v2163 = vadd.f32 0.0, %v2162
    %v2164 = vpop.f32.mrb[0].mxu0
    %2165 = vmatprep.mubr.f32.mxu0 0.0
    %2166 = vmatmul.mubr.f32.gmra.mrb[0].mxu0 %v2058
    %v2167 = vpop.f32.mrb[0].mxu0
    %v2168 = vadd.f32 0.0, %v2167
    %v2169 = vpop.f32.mrb[0].mxu0
    %2170 = vdwg.mxu0
    %v2171 = vadd.f32 %v1931, %v2133
    %v2172 = vadd.f32 %v1932, %v2138
    %v2173 = vadd.f32 %v1933, %v2143
    %v2174 = vadd.f32 %v1934, %v2148
    %v2175 = vadd.f32 %v1935, %v2153
    %v2176 = vadd.f32 %v1936, %v2158
    %v2177 = vadd.f32 %v1937, %v2163
    %v2178 = vadd.f32 %v1938, %v2168
    %v2179 = vld [vmem:[#allocation2 + $0x17] sm:$0xff]
    %v2180 = vld [vmem:[#allocation2 + $0x1f] sm:$0xff]
    %v2181 = vld [vmem:[#allocation2 + $0x27] sm:$0xff]
    %v2182 = vld [vmem:[#allocation2 + $0x2f] sm:$0xff]
    %v2183 = vld [vmem:[#allocation2 + $0x37] sm:$0xff]
    %v2184 = vld [vmem:[#allocation2 + $0x3f] sm:$0xff]
    %v2185 = vld [vmem:[#allocation2 + $0x47] sm:$0xff]
    %v2186 = vld [vmem:[#allocation2 + $0x4f] sm:$0xff]
    %v2187 = vmul.f32 %v2179, %v654
    %v2188 = vmul.f32 %v2180, %v659
    %v2189 = vmul.f32 %v2181, %v664
    %v2190 = vmul.f32 %v2182, %v669
    %v2191 = vmul.f32 %v2183, %v674
    %v2192 = vmul.f32 %v2184, %v679
    %v2193 = vmul.f32 %v2185, %v684
    %v2194 = vmul.f32 %v2186, %v689
    %v2195 = vld [vmem:[#allocation4 + $0x12] sm:$0x7]
    %v2197 = vsel %vm707, %v2195, 0
    %2199 = vmatprep.subr.mxu0 0.0
    %2200 = vmatpush1.msra.mxu0 %v2197
    %2201 = vmatprep.subr.mxu0 0.0
    %2202 = vmatpush1.msra.mxu0 0.0
    %2203 = vmatprep.subr.mxu0 0.0
    %2204 = vmatpush1.msra.mxu0 0.0
    %2205 = vmatprep.subr.mxu0 0.0
    %2206 = vmatpush1.msra.mxu0 0.0
    %2207 = vmatprep.subr.mxu0 0.0
    %2208 = vmatpush1.msra.mxu0 0.0
    %2209 = vmatprep.subr.mxu0 0.0
    %2210 = vmatpush1.msra.mxu0 0.0
    %2211 = vmatprep.subr.mxu0 0.0
    %2212 = vmatpush1.msra.mxu0 0.0
    %2213 = vmatprep.subr.mxu0 0.0
    %2214 = vmatpush1.msra.mxu0 0.0
    %2215 = vmatprep.subr.mxu0 0.0
    %2216 = vmatpush1.msra.mxu0 0.0
    %2217 = vmatprep.subr.mxu0 0.0
    %2218 = vmatpush1.msra.mxu0 0.0
    %2219 = vmatprep.subr.mxu0 0.0
    %2220 = vmatpush1.msra.mxu0 0.0
    %2221 = vmatprep.subr.mxu0 0.0
    %2222 = vmatpush1.msra.mxu0 0.0
    %2223 = vmatprep.subr.mxu0 0.0
    %2224 = vmatpush1.msra.mxu0 0.0
    %2225 = vmatprep.subr.mxu0 0.0
    %2226 = vmatpush1.msra.mxu0 0.0
    %2227 = vmatprep.subr.mxu0 0.0
    %2228 = vmatpush1.msra.mxu0 0.0
    %2229 = vmatprep.subr.mxu0 0.0
    %2230 = vmatpush1.msra.mxu0 0.0
    %2231 = vmatprep.subr.mxu0 0.0
    %2232 = vmatpush1.msra.mxu0 0.0
    %2233 = vmatprep.subr.mxu0 0.0
    %2234 = vmatpush1.msra.mxu0 0.0
    %2235 = vmatprep.subr.mxu0 0.0
    %2236 = vmatpush1.msra.mxu0 0.0
    %2237 = vmatprep.subr.mxu0 0.0
    %2238 = vmatpush1.msra.mxu0 0.0
    %2239 = vmatprep.subr.mxu0 0.0
    %2240 = vmatpush1.msra.mxu0 0.0
    %2241 = vmatprep.subr.mxu0 0.0
    %2242 = vmatpush1.msra.mxu0 0.0
    %2243 = vmatprep.subr.mxu0 0.0
    %2244 = vmatpush1.msra.mxu0 0.0
    %2245 = vmatprep.subr.mxu0 0.0
    %2246 = vmatpush1.msra.mxu0 0.0
    %2247 = vmatprep.subr.mxu0 0.0
    %2248 = vmatpush1.msra.mxu0 0.0
    %2249 = vmatprep.subr.mxu0 0.0
    %2250 = vmatpush1.msra.mxu0 0.0
    %2251 = vmatprep.subr.mxu0 0.0
    %2252 = vmatpush1.msra.mxu0 0.0
    %2253 = vmatprep.subr.mxu0 0.0
    %2254 = vmatpush1.msra.mxu0 0.0
    %2255 = vmatprep.subr.mxu0 0.0
    %2256 = vmatpush1.msra.mxu0 0.0
    %2257 = vmatprep.subr.mxu0 0.0
    %2258 = vmatpush1.msra.mxu0 0.0
    %2259 = vmatprep.subr.mxu0 0.0
    %2260 = vmatpush1.msra.mxu0 0.0
    %2261 = vmatprep.subr.mxu0 0.0
    %2262 = vmatpush1.msra.mxu0 0.0
    %2263 = vmatprep.mubr.f32.mxu0 0.0
    %2264 = vmatmul.mubr.f32.gmra.mrb[0].mxu0 %v702
    %v2265 = vpop.f32.mrb[0].mxu0
    %v2266 = vadd.f32 0.0, %v2265
    %v2267 = vpop.f32.mrb[0].mxu0
    %2268 = vmatprep.mubr.f32.mxu0 0.0
    %2269 = vmatmul.mubr.f32.gmra.mrb[0].mxu0 %v705
    %v2270 = vpop.f32.mrb[0].mxu0
    %v2271 = vadd.f32 0.0, %v2270
    %v2272 = vpop.f32.mrb[0].mxu0
    %2273 = vdwg.mxu0
    %v2274 = vmul.f32 %v2266, %v613
    %v2275 = vmul.f32 %v2271, %v614
    %v2277 = vsel %vm62, %v2187, 0
    %v2280 = vsel %vm62, %v2188, 0
    %v2283 = vsel %vm62, %v2189, 0
    %v2286 = vsel %vm62, %v2190, 0
    %v2289 = vsel %vm62, %v2191, 0
    %v2292 = vsel %vm62, %v2192, 0
    %v2295 = vsel %vm62, %v2193, 0
    %v2298 = vsel %vm62, %v2194, 0
    %v2301 = vsel %vm62, %v2274, 0
    %v2304 = vsel %vm62, %v2275, 0
    %2306 = vmatprep.subr.mxu0 0.0
    %2307 = vmatpush1.xpose.msra.mxu0 %v2301
    %2308 = vmatprep.subr.mxu0 0.0
    %2309 = vmatpush1.xpose.msra.mxu0 %v2304
    %2310 = vmatprep.subr.mxu0 0.0
    %2311 = vmatpush1.xpose.msra.mxu0 0.0
    %2312 = vmatprep.subr.mxu0 0.0
    %2313 = vmatpush1.xpose.msra.mxu0 0.0
    %2314 = vmatprep.subr.mxu0 0.0
    %2315 = vmatpush1.xpose.msra.mxu0 0.0
    %2316 = vmatprep.subr.mxu0 0.0
    %2317 = vmatpush1.xpose.msra.mxu0 0.0
    %2318 = vmatprep.subr.mxu0 0.0
    %2319 = vmatpush1.xpose.msra.mxu0 0.0
    %2320 = vmatprep.subr.mxu0 0.0
    %2321 = vmatpush1.xpose.msra.mxu0 0.0
    %2322 = vmatprep.subr.mxu0 0.0
    %2323 = vmatpush1.xpose.msra.mxu0 0.0
    %2324 = vmatprep.subr.mxu0 0.0
    %2325 = vmatpush1.xpose.msra.mxu0 0.0
    %2326 = vmatprep.subr.mxu0 0.0
    %2327 = vmatpush1.xpose.msra.mxu0 0.0
    %2328 = vmatprep.subr.mxu0 0.0
    %2329 = vmatpush1.xpose.msra.mxu0 0.0
    %2330 = vmatprep.subr.mxu0 0.0
    %2331 = vmatpush1.xpose.msra.mxu0 0.0
    %2332 = vmatprep.subr.mxu0 0.0
    %2333 = vmatpush1.xpose.msra.mxu0 0.0
    %2334 = vmatprep.subr.mxu0 0.0
    %2335 = vmatpush1.xpose.msra.mxu0 0.0
    %2336 = vmatprep.subr.mxu0 0.0
    %2337 = vmatpush1.xpose.msra.mxu0 0.0
    %2338 = vmatprep.subr.mxu0 0.0
    %2339 = vmatpush1.xpose.msra.mxu0 0.0
    %2340 = vmatprep.subr.mxu0 0.0
    %2341 = vmatpush1.xpose.msra.mxu0 0.0
    %2342 = vmatprep.subr.mxu0 0.0
    %2343 = vmatpush1.xpose.msra.mxu0 0.0
    %2344 = vmatprep.subr.mxu0 0.0
    %2345 = vmatpush1.xpose.msra.mxu0 0.0
    %2346 = vmatprep.subr.mxu0 0.0
    %2347 = vmatpush1.xpose.msra.mxu0 0.0
    %2348 = vmatprep.subr.mxu0 0.0
    %2349 = vmatpush1.xpose.msra.mxu0 0.0
    %2350 = vmatprep.subr.mxu0 0.0
    %2351 = vmatpush1.xpose.msra.mxu0 0.0
    %2352 = vmatprep.subr.mxu0 0.0
    %2353 = vmatpush1.xpose.msra.mxu0 0.0
    %2354 = vmatprep.subr.mxu0 0.0
    %2355 = vmatpush1.xpose.msra.mxu0 0.0
    %2356 = vmatprep.subr.mxu0 0.0
    %2357 = vmatpush1.xpose.msra.mxu0 0.0
    %2358 = vmatprep.subr.mxu0 0.0
    %2359 = vmatpush1.xpose.msra.mxu0 0.0
    %2360 = vmatprep.subr.mxu0 0.0
    %2361 = vmatpush1.xpose.msra.mxu0 0.0
    %2362 = vmatprep.subr.mxu0 0.0
    %2363 = vmatpush1.xpose.msra.mxu0 0.0
    %2364 = vmatprep.subr.mxu0 0.0
    %2365 = vmatpush1.xpose.msra.mxu0 0.0
    %2366 = vmatprep.subr.mxu0 0.0
    %2367 = vmatpush1.xpose.msra.mxu0 0.0
    %2368 = vmatprep.subr.mxu0 0.0
    %2369 = vmatpush1.xpose.msra.mxu0 0.0
    %2370 = vmatprep.mubr.f32.mxu0 0.0
    %2371 = vmatmul.mubr.f32.gmra.mrb[0].mxu0 %v2277
    %v2372 = vpop.f32.mrb[0].mxu0
    %v2373 = vadd.f32 0.0, %v2372
    %v2374 = vpop.f32.mrb[0].mxu0
    %2375 = vmatprep.mubr.f32.mxu0 0.0
    %2376 = vmatmul.mubr.f32.gmra.mrb[0].mxu0 %v2280
    %v2377 = vpop.f32.mrb[0].mxu0
    %v2378 = vadd.f32 0.0, %v2377
    %v2379 = vpop.f32.mrb[0].mxu0
    %2380 = vmatprep.mubr.f32.mxu0 0.0
    %2381 = vmatmul.mubr.f32.gmra.mrb[0].mxu0 %v2283
    %v2382 = vpop.f32.mrb[0].mxu0
    %v2383 = vadd.f32 0.0, %v2382
    %v2384 = vpop.f32.mrb[0].mxu0
    %2385 = vmatprep.mubr.f32.mxu0 0.0
    %2386 = vmatmul.mubr.f32.gmra.mrb[0].mxu0 %v2286
    %v2387 = vpop.f32.mrb[0].mxu0
    %v2388 = vadd.f32 0.0, %v2387
    %v2389 = vpop.f32.mrb[0].mxu0
    %2390 = vmatprep.mubr.f32.mxu0 0.0
    %2391 = vmatmul.mubr.f32.gmra.mrb[0].mxu0 %v2289
    %v2392 = vpop.f32.mrb[0].mxu0
    %v2393 = vadd.f32 0.0, %v2392
    %v2394 = vpop.f32.mrb[0].mxu0
    %2395 = vmatprep.mubr.f32.mxu0 0.0
    %2396 = vmatmul.mubr.f32.gmra.mrb[0].mxu0 %v2292
    %v2397 = vpop.f32.mrb[0].mxu0
    %v2398 = vadd.f32 0.0, %v2397
    %v2399 = vpop.f32.mrb[0].mxu0
    %2400 = vmatprep.mubr.f32.mxu0 0.0
    %2401 = vmatmul.mubr.f32.gmra.mrb[0].mxu0 %v2295
    %v2402 = vpop.f32.mrb[0].mxu0
    %v2403 = vadd.f32 0.0, %v2402
    %v2404 = vpop.f32.mrb[0].mxu0
    %2405 = vmatprep.mubr.f32.mxu0 0.0
    %2406 = vmatmul.mubr.f32.gmra.mrb[0].mxu0 %v2298
    %v2407 = vpop.f32.mrb[0].mxu0
    %v2408 = vadd.f32 0.0, %v2407
    %v2409 = vpop.f32.mrb[0].mxu0
    %2410 = vdwg.mxu0
    %v2411 = vadd.f32 %v2171, %v2373
    %v2412 = vadd.f32 %v2172, %v2378
    %v2413 = vadd.f32 %v2173, %v2383
    %v2414 = vadd.f32 %v2174, %v2388
    %v2415 = vadd.f32 %v2175, %v2393
    %v2416 = vadd.f32 %v2176, %v2398
    %v2417 = vadd.f32 %v2177, %v2403
    %v2418 = vadd.f32 %v2178, %v2408
    %v2419 = vld [vmem:[#allocation2 + $0x18] sm:$0xff]
    %v2420 = vld [vmem:[#allocation2 + $0x20] sm:$0xff]
    %v2421 = vld [vmem:[#allocation2 + $0x28] sm:$0xff]
    %v2422 = vld [vmem:[#allocation2 + $0x30] sm:$0xff]
    %v2423 = vld [vmem:[#allocation2 + $0x38] sm:$0xff]
    %v2424 = vld [vmem:[#allocation2 + $0x40] sm:$0xff]
    %v2425 = vld [vmem:[#allocation2 + $0x48] sm:$0xff]
    %v2426 = vld [vmem:[#allocation2 + $0x50] sm:$0xff]
    %v2427 = vmul.f32 %v2419, %v798
    %v2428 = vmul.f32 %v2420, %v802
    %v2429 = vmul.f32 %v2421, %v806
    %v2430 = vmul.f32 %v2422, %v810
    %v2431 = vmul.f32 %v2423, %v814
    %v2432 = vmul.f32 %v2424, %v818
    %v2433 = vmul.f32 %v2425, %v822
    %v2434 = vmul.f32 %v2426, %v826
    %v2435 = vld [vmem:[#allocation4 + $0x15] sm:$0x7]
    %v2437 = vsel %vm707, %v2435, 0
    %2439 = vmatprep.subr.mxu0 0.0
    %2440 = vmatpush1.msra.mxu0 %v2437
    %2441 = vmatprep.subr.mxu0 0.0
    %2442 = vmatpush1.msra.mxu0 0.0
    %2443 = vmatprep.subr.mxu0 0.0
    %2444 = vmatpush1.msra.mxu0 0.0
    %2445 = vmatprep.subr.mxu0 0.0
    %2446 = vmatpush1.msra.mxu0 0.0
    %2447 = vmatprep.subr.mxu0 0.0
    %2448 = vmatpush1.msra.mxu0 0.0
    %2449 = vmatprep.subr.mxu0 0.0
    %2450 = vmatpush1.msra.mxu0 0.0
    %2451 = vmatprep.subr.mxu0 0.0
    %2452 = vmatpush1.msra.mxu0 0.0
    %2453 = vmatprep.subr.mxu0 0.0
    %2454 = vmatpush1.msra.mxu0 0.0
    %2455 = vmatprep.subr.mxu0 0.0
    %2456 = vmatpush1.msra.mxu0 0.0
    %2457 = vmatprep.subr.mxu0 0.0
    %2458 = vmatpush1.msra.mxu0 0.0
    %2459 = vmatprep.subr.mxu0 0.0
    %2460 = vmatpush1.msra.mxu0 0.0
    %2461 = vmatprep.subr.mxu0 0.0
    %2462 = vmatpush1.msra.mxu0 0.0
    %2463 = vmatprep.subr.mxu0 0.0
    %2464 = vmatpush1.msra.mxu0 0.0
    %2465 = vmatprep.subr.mxu0 0.0
    %2466 = vmatpush1.msra.mxu0 0.0
    %2467 = vmatprep.subr.mxu0 0.0
    %2468 = vmatpush1.msra.mxu0 0.0
    %2469 = vmatprep.subr.mxu0 0.0
    %2470 = vmatpush1.msra.mxu0 0.0
    %2471 = vmatprep.subr.mxu0 0.0
    %2472 = vmatpush1.msra.mxu0 0.0
    %2473 = vmatprep.subr.mxu0 0.0
    %2474 = vmatpush1.msra.mxu0 0.0
    %2475 = vmatprep.subr.mxu0 0.0
    %2476 = vmatpush1.msra.mxu0 0.0
    %2477 = vmatprep.subr.mxu0 0.0
    %2478 = vmatpush1.msra.mxu0 0.0
    %2479 = vmatprep.subr.mxu0 0.0
    %2480 = vmatpush1.msra.mxu0 0.0
    %2481 = vmatprep.subr.mxu0 0.0
    %2482 = vmatpush1.msra.mxu0 0.0
    %2483 = vmatprep.subr.mxu0 0.0
    %2484 = vmatpush1.msra.mxu0 0.0
    %2485 = vmatprep.subr.mxu0 0.0
    %2486 = vmatpush1.msra.mxu0 0.0
    %2487 = vmatprep.subr.mxu0 0.0
    %2488 = vmatpush1.msra.mxu0 0.0
    %2489 = vmatprep.subr.mxu0 0.0
    %2490 = vmatpush1.msra.mxu0 0.0
    %2491 = vmatprep.subr.mxu0 0.0
    %2492 = vmatpush1.msra.mxu0 0.0
    %2493 = vmatprep.subr.mxu0 0.0
    %2494 = vmatpush1.msra.mxu0 0.0
    %2495 = vmatprep.subr.mxu0 0.0
    %2496 = vmatpush1.msra.mxu0 0.0
    %2497 = vmatprep.subr.mxu0 0.0
    %2498 = vmatpush1.msra.mxu0 0.0
    %2499 = vmatprep.subr.mxu0 0.0
    %2500 = vmatpush1.msra.mxu0 0.0
    %2501 = vmatprep.subr.mxu0 0.0
    %2502 = vmatpush1.msra.mxu0 0.0
    %2503 = vmatprep.mubr.f32.mxu0 0.0
    %2504 = vmatmul.mubr.f32.gmra.mrb[0].mxu0 %v702
    %v2505 = vpop.f32.mrb[0].mxu0
    %v2506 = vadd.f32 0.0, %v2505
    %v2507 = vpop.f32.mrb[0].mxu0
    %2508 = vmatprep.mubr.f32.mxu0 0.0
    %2509 = vmatmul.mubr.f32.gmra.mrb[0].mxu0 %v705
    %v2510 = vpop.f32.mrb[0].mxu0
    %v2511 = vadd.f32 0.0, %v2510
    %v2512 = vpop.f32.mrb[0].mxu0
    %2513 = vdwg.mxu0
    %v2514 = vmul.f32 %v2506, %v613
    %v2515 = vmul.f32 %v2511, %v614
    %v2517 = vsel %vm62, %v2427, 0
    %v2520 = vsel %vm62, %v2428, 0
    %v2523 = vsel %vm62, %v2429, 0
    %v2526 = vsel %vm62, %v2430, 0
    %v2529 = vsel %vm62, %v2431, 0
    %v2532 = vsel %vm62, %v2432, 0
    %v2535 = vsel %vm62, %v2433, 0
    %v2538 = vsel %vm62, %v2434, 0
    %v2541 = vsel %vm62, %v2514, 0
    %v2544 = vsel %vm62, %v2515, 0
    %2546 = vmatprep.subr.mxu0 0.0
    %2547 = vmatpush1.xpose.msra.mxu0 %v2541
    %2548 = vmatprep.subr.mxu0 0.0
    %2549 = vmatpush1.xpose.msra.mxu0 %v2544
    %2550 = vmatprep.subr.mxu0 0.0
    %2551 = vmatpush1.xpose.msra.mxu0 0.0
    %2552 = vmatprep.subr.mxu0 0.0
    %2553 = vmatpush1.xpose.msra.mxu0 0.0
    %2554 = vmatprep.subr.mxu0 0.0
    %2555 = vmatpush1.xpose.msra.mxu0 0.0
    %2556 = vmatprep.subr.mxu0 0.0
    %2557 = vmatpush1.xpose.msra.mxu0 0.0
    %2558 = vmatprep.subr.mxu0 0.0
    %2559 = vmatpush1.xpose.msra.mxu0 0.0
    %2560 = vmatprep.subr.mxu0 0.0
    %2561 = vmatpush1.xpose.msra.mxu0 0.0
    %2562 = vmatprep.subr.mxu0 0.0
    %2563 = vmatpush1.xpose.msra.mxu0 0.0
    %2564 = vmatprep.subr.mxu0 0.0
    %2565 = vmatpush1.xpose.msra.mxu0 0.0
    %2566 = vmatprep.subr.mxu0 0.0
    %2567 = vmatpush1.xpose.msra.mxu0 0.0
    %2568 = vmatprep.subr.mxu0 0.0
    %2569 = vmatpush1.xpose.msra.mxu0 0.0
    %2570 = vmatprep.subr.mxu0 0.0
    %2571 = vmatpush1.xpose.msra.mxu0 0.0
    %2572 = vmatprep.subr.mxu0 0.0
    %2573 = vmatpush1.xpose.msra.mxu0 0.0
    %2574 = vmatprep.subr.mxu0 0.0
    %2575 = vmatpush1.xpose.msra.mxu0 0.0
    %2576 = vmatprep.subr.mxu0 0.0
    %2577 = vmatpush1.xpose.msra.mxu0 0.0
    %2578 = vmatprep.subr.mxu0 0.0
    %2579 = vmatpush1.xpose.msra.mxu0 0.0
    %2580 = vmatprep.subr.mxu0 0.0
    %2581 = vmatpush1.xpose.msra.mxu0 0.0
    %2582 = vmatprep.subr.mxu0 0.0
    %2583 = vmatpush1.xpose.msra.mxu0 0.0
    %2584 = vmatprep.subr.mxu0 0.0
    %2585 = vmatpush1.xpose.msra.mxu0 0.0
    %2586 = vmatprep.subr.mxu0 0.0
    %2587 = vmatpush1.xpose.msra.mxu0 0.0
    %2588 = vmatprep.subr.mxu0 0.0
    %2589 = vmatpush1.xpose.msra.mxu0 0.0
    %2590 = vmatprep.subr.mxu0 0.0
    %2591 = vmatpush1.xpose.msra.mxu0 0.0
    %2592 = vmatprep.subr.mxu0 0.0
    %2593 = vmatpush1.xpose.msra.mxu0 0.0
    %2594 = vmatprep.subr.mxu0 0.0
    %2595 = vmatpush1.xpose.msra.mxu0 0.0
    %2596 = vmatprep.subr.mxu0 0.0
    %2597 = vmatpush1.xpose.msra.mxu0 0.0
    %2598 = vmatprep.subr.mxu0 0.0
    %2599 = vmatpush1.xpose.msra.mxu0 0.0
    %2600 = vmatprep.subr.mxu0 0.0
    %2601 = vmatpush1.xpose.msra.mxu0 0.0
    %2602 = vmatprep.subr.mxu0 0.0
    %2603 = vmatpush1.xpose.msra.mxu0 0.0
    %2604 = vmatprep.subr.mxu0 0.0
    %2605 = vmatpush1.xpose.msra.mxu0 0.0
    %2606 = vmatprep.subr.mxu0 0.0
    %2607 = vmatpush1.xpose.msra.mxu0 0.0
    %2608 = vmatprep.subr.mxu0 0.0
    %2609 = vmatpush1.xpose.msra.mxu0 0.0
    %2610 = vmatprep.mubr.f32.mxu0 0.0
    %2611 = vmatmul.mubr.f32.gmra.mrb[0].mxu0 %v2517
    %v2612 = vpop.f32.mrb[0].mxu0
    %v2613 = vadd.f32 0.0, %v2612
    %v2614 = vpop.f32.mrb[0].mxu0
    %2615 = vmatprep.mubr.f32.mxu0 0.0
    %2616 = vmatmul.mubr.f32.gmra.mrb[0].mxu0 %v2520
    %v2617 = vpop.f32.mrb[0].mxu0
    %v2618 = vadd.f32 0.0, %v2617
    %v2619 = vpop.f32.mrb[0].mxu0
    %2620 = vmatprep.mubr.f32.mxu0 0.0
    %2621 = vmatmul.mubr.f32.gmra.mrb[0].mxu0 %v2523
    %v2622 = vpop.f32.mrb[0].mxu0
    %v2623 = vadd.f32 0.0, %v2622
    %v2624 = vpop.f32.mrb[0].mxu0
    %2625 = vmatprep.mubr.f32.mxu0 0.0
    %2626 = vmatmul.mubr.f32.gmra.mrb[0].mxu0 %v2526
    %v2627 = vpop.f32.mrb[0].mxu0
    %v2628 = vadd.f32 0.0, %v2627
    %v2629 = vpop.f32.mrb[0].mxu0
    %2630 = vmatprep.mubr.f32.mxu0 0.0
    %2631 = vmatmul.mubr.f32.gmra.mrb[0].mxu0 %v2529
    %v2632 = vpop.f32.mrb[0].mxu0
    %v2633 = vadd.f32 0.0, %v2632
    %v2634 = vpop.f32.mrb[0].mxu0
    %2635 = vmatprep.mubr.f32.mxu0 0.0
    %2636 = vmatmul.mubr.f32.gmra.mrb[0].mxu0 %v2532
    %v2637 = vpop.f32.mrb[0].mxu0
    %v2638 = vadd.f32 0.0, %v2637
    %v2639 = vpop.f32.mrb[0].mxu0
    %2640 = vmatprep.mubr.f32.mxu0 0.0
    %2641 = vmatmul.mubr.f32.gmra.mrb[0].mxu0 %v2535
    %v2642 = vpop.f32.mrb[0].mxu0
    %v2643 = vadd.f32 0.0, %v2642
    %v2644 = vpop.f32.mrb[0].mxu0
    %2645 = vmatprep.mubr.f32.mxu0 0.0
    %2646 = vmatmul.mubr.f32.gmra.mrb[0].mxu0 %v2538
    %v2647 = vpop.f32.mrb[0].mxu0
    %v2648 = vadd.f32 0.0, %v2647
    %v2649 = vpop.f32.mrb[0].mxu0
    %2650 = vdwg.mxu0
    %v2651 = vadd.f32 %v2411, %v2613
    %v2652 = vadd.f32 %v2412, %v2618
    %v2653 = vadd.f32 %v2413, %v2623
    %v2654 = vadd.f32 %v2414, %v2628
    %v2655 = vadd.f32 %v2415, %v2633
    %v2656 = vadd.f32 %v2416, %v2638
    %v2657 = vadd.f32 %v2417, %v2643
    %v2658 = vadd.f32 %v2418, %v2648
    %v2659 = vld [vmem:[#allocation2 + $0x19] sm:$0xff]
    %v2660 = vld [vmem:[#allocation2 + $0x21] sm:$0xff]
    %v2661 = vld [vmem:[#allocation2 + $0x29] sm:$0xff]
    %v2662 = vld [vmem:[#allocation2 + $0x31] sm:$0xff]
    %v2663 = vld [vmem:[#allocation2 + $0x39] sm:$0xff]
    %v2664 = vld [vmem:[#allocation2 + $0x41] sm:$0xff]
    %v2665 = vld [vmem:[#allocation2 + $0x49] sm:$0xff]
    %v2666 = vld [vmem:[#allocation2 + $0x51] sm:$0xff]
    %v2667 = vmul.f32 %v2659, %v1197
    %v2668 = vmul.f32 %v2660, %v1201
    %v2669 = vmul.f32 %v2661, %v1205
    %v2670 = vmul.f32 %v2662, %v1209
    %v2671 = vmul.f32 %v2663, %v1213
    %v2672 = vmul.f32 %v2664, %v1217
    %v2673 = vmul.f32 %v2665, %v1221
    %v2674 = vmul.f32 %v2666, %v1225
    %v2675 = vld [vmem:[#allocation4 + $0x18] sm:$0x7]
    %v2677 = vsel %vm707, %v2675, 0
    %2679 = vmatprep.subr.mxu0 0.0
    %2680 = vmatpush1.msra.mxu0 %v2677
    %2681 = vmatprep.subr.mxu0 0.0
    %2682 = vmatpush1.msra.mxu0 0.0
    %2683 = vmatprep.subr.mxu0 0.0
    %2684 = vmatpush1.msra.mxu0 0.0
    %2685 = vmatprep.subr.mxu0 0.0
    %2686 = vmatpush1.msra.mxu0 0.0
    %2687 = vmatprep.subr.mxu0 0.0
    %2688 = vmatpush1.msra.mxu0 0.0
    %2689 = vmatprep.subr.mxu0 0.0
    %2690 = vmatpush1.msra.mxu0 0.0
    %2691 = vmatprep.subr.mxu0 0.0
    %2692 = vmatpush1.msra.mxu0 0.0
    %2693 = vmatprep.subr.mxu0 0.0
    %2694 = vmatpush1.msra.mxu0 0.0
    %2695 = vmatprep.subr.mxu0 0.0
    %2696 = vmatpush1.msra.mxu0 0.0
    %2697 = vmatprep.subr.mxu0 0.0
    %2698 = vmatpush1.msra.mxu0 0.0
    %2699 = vmatprep.subr.mxu0 0.0
    %2700 = vmatpush1.msra.mxu0 0.0
    %2701 = vmatprep.subr.mxu0 0.0
    %2702 = vmatpush1.msra.mxu0 0.0
    %2703 = vmatprep.subr.mxu0 0.0
    %2704 = vmatpush1.msra.mxu0 0.0
    %2705 = vmatprep.subr.mxu0 0.0
    %2706 = vmatpush1.msra.mxu0 0.0
    %2707 = vmatprep.subr.mxu0 0.0
    %2708 = vmatpush1.msra.mxu0 0.0
    %2709 = vmatprep.subr.mxu0 0.0
    %2710 = vmatpush1.msra.mxu0 0.0
    %2711 = vmatprep.subr.mxu0 0.0
    %2712 = vmatpush1.msra.mxu0 0.0
    %2713 = vmatprep.subr.mxu0 0.0
    %2714 = vmatpush1.msra.mxu0 0.0
    %2715 = vmatprep.subr.mxu0 0.0
    %2716 = vmatpush1.msra.mxu0 0.0
    %2717 = vmatprep.subr.mxu0 0.0
    %2718 = vmatpush1.msra.mxu0 0.0
    %2719 = vmatprep.subr.mxu0 0.0
    %2720 = vmatpush1.msra.mxu0 0.0
    %2721 = vmatprep.subr.mxu0 0.0
    %2722 = vmatpush1.msra.mxu0 0.0
    %2723 = vmatprep.subr.mxu0 0.0
    %2724 = vmatpush1.msra.mxu0 0.0
    %2725 = vmatprep.subr.mxu0 0.0
    %2726 = vmatpush1.msra.mxu0 0.0
    %2727 = vmatprep.subr.mxu0 0.0
    %2728 = vmatpush1.msra.mxu0 0.0
    %2729 = vmatprep.subr.mxu0 0.0
    %2730 = vmatpush1.msra.mxu0 0.0
    %2731 = vmatprep.subr.mxu0 0.0
    %2732 = vmatpush1.msra.mxu0 0.0
    %2733 = vmatprep.subr.mxu0 0.0
    %2734 = vmatpush1.msra.mxu0 0.0
    %2735 = vmatprep.subr.mxu0 0.0
    %2736 = vmatpush1.msra.mxu0 0.0
    %2737 = vmatprep.subr.mxu0 0.0
    %2738 = vmatpush1.msra.mxu0 0.0
    %2739 = vmatprep.subr.mxu0 0.0
    %2740 = vmatpush1.msra.mxu0 0.0
    %2741 = vmatprep.subr.mxu0 0.0
    %2742 = vmatpush1.msra.mxu0 0.0
    %2743 = vmatprep.mubr.f32.mxu0 0.0
    %2744 = vmatmul.mubr.f32.gmra.mrb[0].mxu0 %v702
    %v2745 = vpop.f32.mrb[0].mxu0
    %v2746 = vadd.f32 0.0, %v2745
    %v2747 = vpop.f32.mrb[0].mxu0
    %2748 = vmatprep.mubr.f32.mxu0 0.0
    %2749 = vmatmul.mubr.f32.gmra.mrb[0].mxu0 %v705
    %v2750 = vpop.f32.mrb[0].mxu0
    %v2751 = vadd.f32 0.0, %v2750
    %v2752 = vpop.f32.mrb[0].mxu0
    %2753 = vdwg.mxu0
    %v2754 = vmul.f32 %v2746, %v613
    %v2755 = vmul.f32 %v2751, %v614
    %v2757 = vsel %vm62, %v2667, 0
    %v2760 = vsel %vm62, %v2668, 0
    %v2763 = vsel %vm62, %v2669, 0
    %v2766 = vsel %vm62, %v2670, 0
    %v2769 = vsel %vm62, %v2671, 0
    %v2772 = vsel %vm62, %v2672, 0
    %v2775 = vsel %vm62, %v2673, 0
    %v2778 = vsel %vm62, %v2674, 0
    %v2781 = vsel %vm62, %v2754, 0
    %v2784 = vsel %vm62, %v2755, 0
    %2786 = vmatprep.subr.mxu0 0.0
    %2787 = vmatpush1.xpose.msra.mxu0 %v2781
    %2788 = vmatprep.subr.mxu0 0.0
    %2789 = vmatpush1.xpose.msra.mxu0 %v2784
    %2790 = vmatprep.subr.mxu0 0.0
    %2791 = vmatpush1.xpose.msra.mxu0 0.0
    %2792 = vmatprep.subr.mxu0 0.0
    %2793 = vmatpush1.xpose.msra.mxu0 0.0
    %2794 = vmatprep.subr.mxu0 0.0
    %2795 = vmatpush1.xpose.msra.mxu0 0.0
    %2796 = vmatprep.subr.mxu0 0.0
    %2797 = vmatpush1.xpose.msra.mxu0 0.0
    %2798 = vmatprep.subr.mxu0 0.0
    %2799 = vmatpush1.xpose.msra.mxu0 0.0
    %2800 = vmatprep.subr.mxu0 0.0
    %2801 = vmatpush1.xpose.msra.mxu0 0.0
    %2802 = vmatprep.subr.mxu0 0.0
    %2803 = vmatpush1.xpose.msra.mxu0 0.0
    %2804 = vmatprep.subr.mxu0 0.0
    %2805 = vmatpush1.xpose.msra.mxu0 0.0
    %2806 = vmatprep.subr.mxu0 0.0
    %2807 = vmatpush1.xpose.msra.mxu0 0.0
    %2808 = vmatprep.subr.mxu0 0.0
    %2809 = vmatpush1.xpose.msra.mxu0 0.0
    %2810 = vmatprep.subr.mxu0 0.0
    %2811 = vmatpush1.xpose.msra.mxu0 0.0
    %2812 = vmatprep.subr.mxu0 0.0
    %2813 = vmatpush1.xpose.msra.mxu0 0.0
    %2814 = vmatprep.subr.mxu0 0.0
    %2815 = vmatpush1.xpose.msra.mxu0 0.0
    %2816 = vmatprep.subr.mxu0 0.0
    %2817 = vmatpush1.xpose.msra.mxu0 0.0
    %2818 = vmatprep.subr.mxu0 0.0
    %2819 = vmatpush1.xpose.msra.mxu0 0.0
    %2820 = vmatprep.subr.mxu0 0.0
    %2821 = vmatpush1.xpose.msra.mxu0 0.0
    %2822 = vmatprep.subr.mxu0 0.0
    %2823 = vmatpush1.xpose.msra.mxu0 0.0
    %2824 = vmatprep.subr.mxu0 0.0
    %2825 = vmatpush1.xpose.msra.mxu0 0.0
    %2826 = vmatprep.subr.mxu0 0.0
    %2827 = vmatpush1.xpose.msra.mxu0 0.0
    %2828 = vmatprep.subr.mxu0 0.0
    %2829 = vmatpush1.xpose.msra.mxu0 0.0
    %2830 = vmatprep.subr.mxu0 0.0
    %2831 = vmatpush1.xpose.msra.mxu0 0.0
    %2832 = vmatprep.subr.mxu0 0.0
    %2833 = vmatpush1.xpose.msra.mxu0 0.0
    %2834 = vmatprep.subr.mxu0 0.0
    %2835 = vmatpush1.xpose.msra.mxu0 0.0
    %2836 = vmatprep.subr.mxu0 0.0
    %2837 = vmatpush1.xpose.msra.mxu0 0.0
    %2838 = vmatprep.subr.mxu0 0.0
    %2839 = vmatpush1.xpose.msra.mxu0 0.0
    %2840 = vmatprep.subr.mxu0 0.0
    %2841 = vmatpush1.xpose.msra.mxu0 0.0
    %2842 = vmatprep.subr.mxu0 0.0
    %2843 = vmatpush1.xpose.msra.mxu0 0.0
    %2844 = vmatprep.subr.mxu0 0.0
    %2845 = vmatpush1.xpose.msra.mxu0 0.0
    %2846 = vmatprep.subr.mxu0 0.0
    %2847 = vmatpush1.xpose.msra.mxu0 0.0
    %2848 = vmatprep.subr.mxu0 0.0
    %2849 = vmatpush1.xpose.msra.mxu0 0.0
    %2850 = vmatprep.mubr.f32.mxu0 0.0
    %2851 = vmatmul.mubr.f32.gmra.mrb[0].mxu0 %v2757
    %v2852 = vpop.f32.mrb[0].mxu0
    %v2853 = vadd.f32 0.0, %v2852
    %v2854 = vpop.f32.mrb[0].mxu0
    %2855 = vmatprep.mubr.f32.mxu0 0.0
    %2856 = vmatmul.mubr.f32.gmra.mrb[0].mxu0 %v2760
    %v2857 = vpop.f32.mrb[0].mxu0
    %v2858 = vadd.f32 0.0, %v2857
    %v2859 = vpop.f32.mrb[0].mxu0
    %2860 = vmatprep.mubr.f32.mxu0 0.0
    %2861 = vmatmul.mubr.f32.gmra.mrb[0].mxu0 %v2763
    %v2862 = vpop.f32.mrb[0].mxu0
    %v2863 = vadd.f32 0.0, %v2862
    %v2864 = vpop.f32.mrb[0].mxu0
    %2865 = vmatprep.mubr.f32.mxu0 0.0
    %2866 = vmatmul.mubr.f32.gmra.mrb[0].mxu0 %v2766
    %v2867 = vpop.f32.mrb[0].mxu0
    %v2868 = vadd.f32 0.0, %v2867
    %v2869 = vpop.f32.mrb[0].mxu0
    %2870 = vmatprep.mubr.f32.mxu0 0.0
    %2871 = vmatmul.mubr.f32.gmra.mrb[0].mxu0 %v2769
    %v2872 = vpop.f32.mrb[0].mxu0
    %v2873 = vadd.f32 0.0, %v2872
    %v2874 = vpop.f32.mrb[0].mxu0
    %2875 = vmatprep.mubr.f32.mxu0 0.0
    %2876 = vmatmul.mubr.f32.gmra.mrb[0].mxu0 %v2772
    %v2877 = vpop.f32.mrb[0].mxu0
    %v2878 = vadd.f32 0.0, %v2877
    %v2879 = vpop.f32.mrb[0].mxu0
    %2880 = vmatprep.mubr.f32.mxu0 0.0
    %2881 = vmatmul.mubr.f32.gmra.mrb[0].mxu0 %v2775
    %v2882 = vpop.f32.mrb[0].mxu0
    %v2883 = vadd.f32 0.0, %v2882
    %v2884 = vpop.f32.mrb[0].mxu0
    %2885 = vmatprep.mubr.f32.mxu0 0.0
    %2886 = vmatmul.mubr.f32.gmra.mrb[0].mxu0 %v2778
    %v2887 = vpop.f32.mrb[0].mxu0
    %v2888 = vadd.f32 0.0, %v2887
    %v2889 = vpop.f32.mrb[0].mxu0
    %2890 = vdwg.mxu0
    %v2891 = vadd.f32 %v2651, %v2853
    %v2892 = vadd.f32 %v2652, %v2858
    %v2893 = vadd.f32 %v2653, %v2863
    %v2894 = vadd.f32 %v2654, %v2868
    %v2895 = vadd.f32 %v2655, %v2873
    %v2896 = vadd.f32 %v2656, %v2878
    %v2897 = vadd.f32 %v2657, %v2883
    %v2898 = vadd.f32 %v2658, %v2888
    %v2899 = vmul.f32 %v2891, 0.083333336
    %v2900 = vmul.f32 %v2892, 0.083333336
    %v2901 = vmul.f32 %v2893, 0.083333336
    %v2902 = vmul.f32 %v2894, 0.083333336
    %v2903 = vmul.f32 %v2895, 0.083333336
    %v2904 = vmul.f32 %v2896, 0.083333336
    %v2905 = vmul.f32 %v2897, 0.083333336
    %v2906 = vmul.f32 %v2898, 0.083333336
    %v2907 = vmul.f32 %v2899, 1.442695
    %v2908 = vpow.pop %v2907
    %v2909 = vmul.f32 %v2900, 1.442695
    %v2910 = vpow.pop %v2909
    %v2911 = vmul.f32 %v2901, 1.442695
    %v2912 = vpow.pop %v2911
    %v2913 = vmul.f32 %v2902, 1.442695
    %v2914 = vpow.pop %v2913
    %v2915 = vmul.f32 %v2903, 1.442695
    %v2916 = vpow.pop %v2915
    %v2917 = vmul.f32 %v2904, 1.442695
    %v2918 = vpow.pop %v2917
    %v2919 = vmul.f32 %v2905, 1.442695
    %v2920 = vpow.pop %v2919
    %v2921 = vmul.f32 %v2906, 1.442695
    %v2922 = vpow.pop %v2921
    %vm2923 = vcmask 97280
    %v2924 = vsel %vm2923, %v2908, -inf
    %v2925 = vsel %vm2923, %v2910, -inf
    %v2926 = vsel %vm2923, %v2912, -inf
    %v2927 = vsel %vm2923, %v2914, -inf
    %v2928 = vsel %vm2923, %v2916, -inf
    %v2929 = vmax.f32 %v2924, %v2928
    %v2930 = vsel %vm2923, %v2918, -inf
    %v2931 = vmax.f32 %v2925, %v2930
    %v2932 = vsel %vm2923, %v2920, -inf
    %v2933 = vmax.f32 %v2926, %v2932
    %v2934 = vsel %vm2923, %v2922, -inf
    %v2935 = vmax.f32 %v2927, %v2934
    %v2936 = vmax.f32 %v2929, %v2931
    %v2937 = vmax.f32 %v2933, %v2935
    %v2938 = vmax.f32 %v2936, %v2937
    %v2939 = vrot.slane %v2938, 4
    %v2940 = vmax.f32 %v2938, %v2939
    %v2941 = vrot.slane %v2940, 2
    %v2942 = vmax.f32 %v2940, %v2941
    %v2943 = vrot.slane %v2942, 1
    %v2944 = vmax.f32 %v2942, %v2943
    %v2945 = vrcp.pop %v2944
    %v2946 = vmul.f32 %v2908, %v2945
    %v2947 = vmul.f32 %v2910, %v2945
    %v2948 = vmul.f32 %v2912, %v2945
    %v2949 = vmul.f32 %v2914, %v2945
    %v2950 = vmul.f32 %v2916, %v2945
    %v2951 = vmul.f32 %v2918, %v2945
    %v2952 = vmul.f32 %v2920, %v2945
    %v2953 = vmul.f32 %v2922, %v2945
    %v2954 = vld [vmem:[%s11] sm:$0xff]
    %v2955 = vld [vmem:[%s11 + $0x8] sm:$0xf]
    %v2957 = vsel %vm2923, %v2908, 0
    %v2960 = vsel %vm2923, %v2910, 0
    %v2963 = vsel %vm2923, %v2912, 0
    %v2966 = vsel %vm2923, %v2914, 0
    %v2969 = vsel %vm2923, %v2916, 0
    %v2972 = vsel %vm2923, %v2918, 0
    %v2975 = vsel %vm2923, %v2920, 0
    %v2978 = vsel %vm2923, %v2922, 0
    %vm2980 = vcmask 1043456
    %v2982 = vsel %vm2980, %v2955, 0
    %2984 = vmatprep.subr.mxu0 0.0
    %2985 = vmatpush1.msra.mxu0 %v2954
    %2986 = vmatprep.subr.mxu0 0.0
    %2987 = vmatpush1.msra.mxu0 %v2982
    %2988 = vmatprep.subr.mxu0 0.0
    %2989 = vmatpush1.msra.mxu0 0.0
    %2990 = vmatprep.subr.mxu0 0.0
    %2991 = vmatpush1.msra.mxu0 0.0
    %2992 = vmatprep.subr.mxu0 0.0
    %2993 = vmatpush1.msra.mxu0 0.0
    %2994 = vmatprep.subr.mxu0 0.0
    %2995 = vmatpush1.msra.mxu0 0.0
    %2996 = vmatprep.subr.mxu0 0.0
    %2997 = vmatpush1.msra.mxu0 0.0
    %2998 = vmatprep.subr.mxu0 0.0
    %2999 = vmatpush1.msra.mxu0 0.0
    %3000 = vmatprep.subr.mxu0 0.0
    %3001 = vmatpush1.msra.mxu0 0.0
    %3002 = vmatprep.subr.mxu0 0.0
    %3003 = vmatpush1.msra.mxu0 0.0
    %3004 = vmatprep.subr.mxu0 0.0
    %3005 = vmatpush1.msra.mxu0 0.0
    %3006 = vmatprep.subr.mxu0 0.0
    %3007 = vmatpush1.msra.mxu0 0.0
    %3008 = vmatprep.subr.mxu0 0.0
    %3009 = vmatpush1.msra.mxu0 0.0
    %3010 = vmatprep.subr.mxu0 0.0
    %3011 = vmatpush1.msra.mxu0 0.0
    %3012 = vmatprep.subr.mxu0 0.0
    %3013 = vmatpush1.msra.mxu0 0.0
    %3014 = vmatprep.subr.mxu0 0.0
    %3015 = vmatpush1.msra.mxu0 0.0
    %3016 = vmatprep.subr.mxu0 0.0
    %3017 = vmatpush1.msra.mxu0 0.0
    %3018 = vmatprep.subr.mxu0 0.0
    %3019 = vmatpush1.msra.mxu0 0.0
    %3020 = vmatprep.subr.mxu0 0.0
    %3021 = vmatpush1.msra.mxu0 0.0
    %3022 = vmatprep.subr.mxu0 0.0
    %3023 = vmatpush1.msra.mxu0 0.0
    %3024 = vmatprep.subr.mxu0 0.0
    %3025 = vmatpush1.msra.mxu0 0.0
    %3026 = vmatprep.subr.mxu0 0.0
    %3027 = vmatpush1.msra.mxu0 0.0
    %3028 = vmatprep.subr.mxu0 0.0
    %3029 = vmatpush1.msra.mxu0 0.0
    %3030 = vmatprep.subr.mxu0 0.0
    %3031 = vmatpush1.msra.mxu0 0.0
    %3032 = vmatprep.subr.mxu0 0.0
    %3033 = vmatpush1.msra.mxu0 0.0
    %3034 = vmatprep.subr.mxu0 0.0
    %3035 = vmatpush1.msra.mxu0 0.0
    %3036 = vmatprep.subr.mxu0 0.0
    %3037 = vmatpush1.msra.mxu0 0.0
    %3038 = vmatprep.subr.mxu0 0.0
    %3039 = vmatpush1.msra.mxu0 0.0
    %3040 = vmatprep.subr.mxu0 0.0
    %3041 = vmatpush1.msra.mxu0 0.0
    %3042 = vmatprep.subr.mxu0 0.0
    %3043 = vmatpush1.msra.mxu0 0.0
    %3044 = vmatprep.subr.mxu0 0.0
    %3045 = vmatpush1.msra.mxu0 0.0
    %3046 = vmatprep.subr.mxu0 0.0
    %3047 = vmatpush1.msra.mxu0 0.0
    %3048 = vmatprep.mubr.f32.mxu0 0.0
    %3049 = vmatmul.mubr.f32.gmra.mrb[0].mxu0 %v2957
    %v3050 = vpop.f32.mrb[0].mxu0
    %v3051 = vadd.f32 0.0, %v3050
    %v3052 = vpop.f32.mrb[0].mxu0
    %3053 = vmatprep.mubr.f32.mxu0 0.0
    %3054 = vmatmul.mubr.f32.gmra.mrb[0].mxu0 %v2960
    %v3055 = vpop.f32.mrb[0].mxu0
    %v3056 = vadd.f32 0.0, %v3055
    %v3057 = vpop.f32.mrb[0].mxu0
    %3058 = vmatprep.mubr.f32.mxu0 0.0
    %3059 = vmatmul.mubr.f32.gmra.mrb[0].mxu0 %v2963
    %v3060 = vpop.f32.mrb[0].mxu0
    %v3061 = vadd.f32 0.0, %v3060
    %v3062 = vpop.f32.mrb[0].mxu0
    %3063 = vmatprep.mubr.f32.mxu0 0.0
    %3064 = vmatmul.mubr.f32.gmra.mrb[0].mxu0 %v2966
    %v3065 = vpop.f32.mrb[0].mxu0
    %v3066 = vadd.f32 0.0, %v3065
    %v3067 = vpop.f32.mrb[0].mxu0
    %3068 = vmatprep.mubr.f32.mxu0 0.0
    %3069 = vmatmul.mubr.f32.gmra.mrb[0].mxu0 %v2969
    %v3070 = vpop.f32.mrb[0].mxu0
    %v3071 = vadd.f32 0.0, %v3070
    %v3072 = vpop.f32.mrb[0].mxu0
    %3073 = vmatprep.mubr.f32.mxu0 0.0
    %3074 = vmatmul.mubr.f32.gmra.mrb[0].mxu0 %v2972
    %v3075 = vpop.f32.mrb[0].mxu0
    %v3076 = vadd.f32 0.0, %v3075
    %v3077 = vpop.f32.mrb[0].mxu0
    %3078 = vmatprep.mubr.f32.mxu0 0.0
    %3079 = vmatmul.mubr.f32.gmra.mrb[0].mxu0 %v2975
    %v3080 = vpop.f32.mrb[0].mxu0
    %v3081 = vadd.f32 0.0, %v3080
    %v3082 = vpop.f32.mrb[0].mxu0
    %3083 = vmatprep.mubr.f32.mxu0 0.0
    %3084 = vmatmul.mubr.f32.gmra.mrb[0].mxu0 %v2978
    %v3085 = vpop.f32.mrb[0].mxu0
    %v3086 = vadd.f32 0.0, %v3085
    %v3087 = vpop.f32.mrb[0].mxu0
    %3088 = vdwg.mxu0
    %v3089 = vrcp.pop %v3051
    %v3090 = vrcp.pop %v3056
    %v3091 = vrcp.pop %v3061
    %v3092 = vrcp.pop %v3066
    %v3093 = vrcp.pop %v3071
    %v3094 = vrcp.pop %v3076
    %v3095 = vrcp.pop %v3081
    %v3096 = vrcp.pop %v3086
    %v3097 = vmul.f32 %v2908, %v3089
    %v3098 = vmul.f32 %v2910, %v3090
    %v3099 = vmul.f32 %v2912, %v3091
    %v3100 = vmul.f32 %v2914, %v3092
    %v3101 = vmul.f32 %v2916, %v3093
    %v3102 = vmul.f32 %v2918, %v3094
    %v3103 = vmul.f32 %v2920, %v3095
    %v3104 = vmul.f32 %v2922, %v3096
    %v3105 = vmul.f32 %v2946, %v3097
    %v3106 = vmul.f32 %v2947, %v3098
    %v3107 = vmul.f32 %v2948, %v3099
    %v3108 = vmul.f32 %v2949, %v3100
    %v3109 = vmul.f32 %v2950, %v3101
    %v3110 = vmul.f32 %v2951, %v3102
    %v3111 = vmul.f32 %v2952, %v3103
    %v3112 = vmul.f32 %v2953, %v3104
    %3113 = vst.msk [vmem:[#allocation3] sm:$0xff] %vm2923, 0.0
    %3114 = vst.msk [vmem:[#allocation3 + $0x8] sm:$0xff] %vm2923, 0.0
    %3115 = vst.msk [vmem:[#allocation3 + $0x10] sm:$0xff] %vm2923, 0.0
    %3116 = vst.msk [vmem:[#allocation3 + $0x18] sm:$0xff] %vm2923, 0.0
    %3117 = vst.msk [vmem:[#allocation3 + $0x20] sm:$0xff] %vm2923, 0.0
    %3118 = vst.msk [vmem:[#allocation3 + $0x28] sm:$0xff] %vm2923, 0.0
    %3119 = vst.msk [vmem:[#allocation3 + $0x30] sm:$0xff] %vm2923, 0.0
    %3120 = vst.msk [vmem:[#allocation3 + $0x38] sm:$0xff] %vm2923, 0.0
    %3121 = vst.msk [vmem:[#allocation3 + $0x40] sm:$0xff] %vm2923, 0.0
    %3122 = vst.msk [vmem:[#allocation3 + $0x48] sm:$0xff] %vm2923, 0.0
    %3123 = vst.msk [vmem:[#allocation3 + $0x50] sm:$0xff] %vm2923, 0.0
    %3124 = vst.msk [vmem:[#allocation3 + $0x58] sm:$0xff] %vm2923, 0.0
    %3125 = vst.msk [vmem:[#allocation3 + $0x10] sm:$0xff] %vm2923, %v3105
    %3126 = vst.msk [vmem:[#allocation3 + $0x18] sm:$0xff] %vm2923, %v3106
    %3127 = vst.msk [vmem:[#allocation3 + $0x20] sm:$0xff] %vm2923, %v3107
    %3128 = vst.msk [vmem:[#allocation3 + $0x28] sm:$0xff] %vm2923, %v3108
    %3129 = vst.msk [vmem:[#allocation3 + $0x30] sm:$0xff] %vm2923, %v3109
    %3130 = vst.msk [vmem:[#allocation3 + $0x38] sm:$0xff] %vm2923, %v3110
    %3131 = vst.msk [vmem:[#allocation3 + $0x40] sm:$0xff] %vm2923, %v3111
    %3132 = vst.msk [vmem:[#allocation3 + $0x48] sm:$0xff] %vm2923, %v3112
    %v3133 = vld [vmem:[#allocation3 + $0x7] sm:$0xff]
    %v3134 = vld [vmem:[#allocation3 + $0xf] sm:$0xff]
    %v3135 = vld [vmem:[#allocation3 + $0x17] sm:$0xff]
    %v3136 = vld [vmem:[#allocation3 + $0x1f] sm:$0xff]
    %v3137 = vld [vmem:[#allocation3 + $0x27] sm:$0xff]
    %v3138 = vld [vmem:[#allocation3 + $0x2f] sm:$0xff]
    %v3139 = vld [vmem:[#allocation3 + $0x37] sm:$0xff]
    %v3140 = vld [vmem:[#allocation3 + $0x3f] sm:$0xff]
    %v3141 = vld [vmem:[%s12] sm:$0xff]
    %v3142 = vld [vmem:[%s12 + $0x8] sm:$0xff]
    %v3143 = vld [vmem:[%s12 + $0x10] sm:$0xff]
    %v3144 = vld [vmem:[%s12 + $0x18] sm:$0xff]
    %v3145 = vld [vmem:[%s12 + $0x20] sm:$0xff]
    %v3146 = vld [vmem:[%s12 + $0x28] sm:$0xff]
    %v3147 = vld [vmem:[%s12 + $0x30] sm:$0xff]
    %v3148 = vld [vmem:[%s12 + $0x38] sm:$0xff]
    %3150 = vset.pattern.permute.xlu0 0
    %3151 = vperm.xlu0 %3150, %v3141
    %v3152 = vpop.permute.xlu0 %3151
    %3155 = vset.pattern.permute.xlu0 0
    %3156 = vperm.xlu0 %3155, %v3142
    %v3157 = vpop.permute.xlu0 %3156
    %3160 = vset.pattern.permute.xlu0 0
    %3161 = vperm.xlu0 %3160, %v3143
    %v3162 = vpop.permute.xlu0 %3161
    %3165 = vset.pattern.permute.xlu0 0
    %3166 = vperm.xlu0 %3165, %v3144
    %v3167 = vpop.permute.xlu0 %3166
    %3170 = vset.pattern.permute.xlu0 0
    %3171 = vperm.xlu0 %3170, %v3145
    %v3172 = vpop.permute.xlu0 %3171
    %3175 = vset.pattern.permute.xlu0 0
    %3176 = vperm.xlu0 %3175, %v3146
    %v3177 = vpop.permute.xlu0 %3176
    %3180 = vset.pattern.permute.xlu0 0
    %3181 = vperm.xlu0 %3180, %v3147
    %v3182 = vpop.permute.xlu0 %3181
    %3185 = vset.pattern.permute.xlu0 0
    %3186 = vperm.xlu0 %3185, %v3148
    %v3187 = vpop.permute.xlu0 %3186
    %v3189 = vmul.f32 %v3133, %v3152
    %v3190 = vmul.f32 %v3134, %v3157
    %v3191 = vmul.f32 %v3135, %v3162
    %v3192 = vmul.f32 %v3136, %v3167
    %v3193 = vmul.f32 %v3137, %v3172
    %v3194 = vmul.f32 %v3138, %v3177
    %v3195 = vmul.f32 %v3139, %v3182
    %v3196 = vmul.f32 %v3140, %v3187
    %v3197 = vld [vmem:[#allocation5 + $0x18] sm:$0x7]
    %v3199 = vsel %vm707, %v3197, 0
    %3201 = vmatprep.subr.mxu0 0.0
    %3202 = vmatpush1.msra.mxu0 %v3199
    %3203 = vmatprep.subr.mxu0 0.0
    %3204 = vmatpush1.msra.mxu0 0.0
    %3205 = vmatprep.subr.mxu0 0.0
    %3206 = vmatpush1.msra.mxu0 0.0
    %3207 = vmatprep.subr.mxu0 0.0
    %3208 = vmatpush1.msra.mxu0 0.0
    %3209 = vmatprep.subr.mxu0 0.0
    %3210 = vmatpush1.msra.mxu0 0.0
    %3211 = vmatprep.subr.mxu0 0.0
    %3212 = vmatpush1.msra.mxu0 0.0
    %3213 = vmatprep.subr.mxu0 0.0
    %3214 = vmatpush1.msra.mxu0 0.0
    %3215 = vmatprep.subr.mxu0 0.0
    %3216 = vmatpush1.msra.mxu0 0.0
    %3217 = vmatprep.subr.mxu0 0.0
    %3218 = vmatpush1.msra.mxu0 0.0
    %3219 = vmatprep.subr.mxu0 0.0
    %3220 = vmatpush1.msra.mxu0 0.0
    %3221 = vmatprep.subr.mxu0 0.0
    %3222 = vmatpush1.msra.mxu0 0.0
    %3223 = vmatprep.subr.mxu0 0.0
    %3224 = vmatpush1.msra.mxu0 0.0
    %3225 = vmatprep.subr.mxu0 0.0
    %3226 = vmatpush1.msra.mxu0 0.0
    %3227 = vmatprep.subr.mxu0 0.0
    %3228 = vmatpush1.msra.mxu0 0.0
    %3229 = vmatprep.subr.mxu0 0.0
    %3230 = vmatpush1.msra.mxu0 0.0
    %3231 = vmatprep.subr.mxu0 0.0
    %3232 = vmatpush1.msra.mxu0 0.0
    %3233 = vmatprep.subr.mxu0 0.0
    %3234 = vmatpush1.msra.mxu0 0.0
    %3235 = vmatprep.subr.mxu0 0.0
    %3236 = vmatpush1.msra.mxu0 0.0
    %3237 = vmatprep.subr.mxu0 0.0
    %3238 = vmatpush1.msra.mxu0 0.0
    %3239 = vmatprep.subr.mxu0 0.0
    %3240 = vmatpush1.msra.mxu0 0.0
    %3241 = vmatprep.subr.mxu0 0.0
    %3242 = vmatpush1.msra.mxu0 0.0
    %3243 = vmatprep.subr.mxu0 0.0
    %3244 = vmatpush1.msra.mxu0 0.0
    %3245 = vmatprep.subr.mxu0 0.0
    %3246 = vmatpush1.msra.mxu0 0.0
    %3247 = vmatprep.subr.mxu0 0.0
    %3248 = vmatpush1.msra.mxu0 0.0
    %3249 = vmatprep.subr.mxu0 0.0
    %3250 = vmatpush1.msra.mxu0 0.0
    %3251 = vmatprep.subr.mxu0 0.0
    %3252 = vmatpush1.msra.mxu0 0.0
    %3253 = vmatprep.subr.mxu0 0.0
    %3254 = vmatpush1.msra.mxu0 0.0
    %3255 = vmatprep.subr.mxu0 0.0
    %3256 = vmatpush1.msra.mxu0 0.0
    %3257 = vmatprep.subr.mxu0 0.0
    %3258 = vmatpush1.msra.mxu0 0.0
    %3259 = vmatprep.subr.mxu0 0.0
    %3260 = vmatpush1.msra.mxu0 0.0
    %3261 = vmatprep.subr.mxu0 0.0
    %3262 = vmatpush1.msra.mxu0 0.0
    %3263 = vmatprep.subr.mxu0 0.0
    %3264 = vmatpush1.msra.mxu0 0.0
    %3265 = vmatprep.mubr.f32.mxu0 0.0
    %3266 = vmatmul.mubr.f32.gmra.mrb[0].mxu0 %v702
    %v3267 = vpop.f32.mrb[0].mxu0
    %v3268 = vadd.f32 0.0, %v3267
    %v3269 = vpop.f32.mrb[0].mxu0
    %3270 = vmatprep.mubr.f32.mxu0 0.0
    %3271 = vmatmul.mubr.f32.gmra.mrb[0].mxu0 %v705
    %v3272 = vpop.f32.mrb[0].mxu0
    %v3273 = vadd.f32 0.0, %v3272
    %v3274 = vpop.f32.mrb[0].mxu0
    %3275 = vdwg.mxu0
    %v3276 = vmul.f32 %v3268, %v613
    %v3277 = vmul.f32 %v3273, %v614
    %v3278 = vld [vmem:[#allocation3 + $0x8] sm:$0xff]
    %v3279 = vld [vmem:[#allocation3 + $0x10] sm:$0xff]
    %v3280 = vld [vmem:[#allocation3 + $0x18] sm:$0xff]
    %v3281 = vld [vmem:[#allocation3 + $0x20] sm:$0xff]
    %v3282 = vld [vmem:[#allocation3 + $0x28] sm:$0xff]
    %v3283 = vld [vmem:[#allocation3 + $0x30] sm:$0xff]
    %v3284 = vld [vmem:[#allocation3 + $0x38] sm:$0xff]
    %v3285 = vld [vmem:[#allocation3 + $0x40] sm:$0xff]
    %3286 = vset.pattern.permute.xlu0 1
    %3287 = vperm.xlu0 %3286, %v3141
    %v3288 = vpop.permute.xlu0 %3287
    %3290 = vset.pattern.permute.xlu0 1
    %3291 = vperm.xlu0 %3290, %v3142
    %v3292 = vpop.permute.xlu0 %3291
    %3294 = vset.pattern.permute.xlu0 1
    %3295 = vperm.xlu0 %3294, %v3143
    %v3296 = vpop.permute.xlu0 %3295
    %3298 = vset.pattern.permute.xlu0 1
    %3299 = vperm.xlu0 %3298, %v3144
    %v3300 = vpop.permute.xlu0 %3299
    %3302 = vset.pattern.permute.xlu0 1
    %3303 = vperm.xlu0 %3302, %v3145
    %v3304 = vpop.permute.xlu0 %3303
    %3306 = vset.pattern.permute.xlu0 1
    %3307 = vperm.xlu0 %3306, %v3146
    %v3308 = vpop.permute.xlu0 %3307
    %3310 = vset.pattern.permute.xlu0 1
    %3311 = vperm.xlu0 %3310, %v3147
    %v3312 = vpop.permute.xlu0 %3311
    %3314 = vset.pattern.permute.xlu0 1
    %3315 = vperm.xlu0 %3314, %v3148
    %v3316 = vpop.permute.xlu0 %3315
    %v3318 = vmul.f32 %v3278, %v3288
    %v3319 = vmul.f32 %v3279, %v3292
    %v3320 = vmul.f32 %v3280, %v3296
    %v3321 = vmul.f32 %v3281, %v3300
    %v3322 = vmul.f32 %v3282, %v3304
    %v3323 = vmul.f32 %v3283, %v3308
    %v3324 = vmul.f32 %v3284, %v3312
    %v3325 = vmul.f32 %v3285, %v3316
    %v3326 = vld [vmem:[#allocation5 + $0x15] sm:$0x7]
    %v3328 = vsel %vm707, %v3326, 0
    %3330 = vmatprep.subr.mxu0 0.0
    %3331 = vmatpush1.msra.mxu0 %v3328
    %3332 = vmatprep.subr.mxu0 0.0
    %3333 = vmatpush1.msra.mxu0 0.0
    %3334 = vmatprep.subr.mxu0 0.0
    %3335 = vmatpush1.msra.mxu0 0.0
    %3336 = vmatprep.subr.mxu0 0.0
    %3337 = vmatpush1.msra.mxu0 0.0
    %3338 = vmatprep.subr.mxu0 0.0
    %3339 = vmatpush1.msra.mxu0 0.0
    %3340 = vmatprep.subr.mxu0 0.0
    %3341 = vmatpush1.msra.mxu0 0.0
    %3342 = vmatprep.subr.mxu0 0.0
    %3343 = vmatpush1.msra.mxu0 0.0
    %3344 = vmatprep.subr.mxu0 0.0
    %3345 = vmatpush1.msra.mxu0 0.0
    %3346 = vmatprep.subr.mxu0 0.0
    %3347 = vmatpush1.msra.mxu0 0.0
    %3348 = vmatprep.subr.mxu0 0.0
    %3349 = vmatpush1.msra.mxu0 0.0
    %3350 = vmatprep.subr.mxu0 0.0
    %3351 = vmatpush1.msra.mxu0 0.0
    %3352 = vmatprep.subr.mxu0 0.0
    %3353 = vmatpush1.msra.mxu0 0.0
    %3354 = vmatprep.subr.mxu0 0.0
    %3355 = vmatpush1.msra.mxu0 0.0
    %3356 = vmatprep.subr.mxu0 0.0
    %3357 = vmatpush1.msra.mxu0 0.0
    %3358 = vmatprep.subr.mxu0 0.0
    %3359 = vmatpush1.msra.mxu0 0.0
    %3360 = vmatprep.subr.mxu0 0.0
    %3361 = vmatpush1.msra.mxu0 0.0
    %3362 = vmatprep.subr.mxu0 0.0
    %3363 = vmatpush1.msra.mxu0 0.0
    %3364 = vmatprep.subr.mxu0 0.0
    %3365 = vmatpush1.msra.mxu0 0.0
    %3366 = vmatprep.subr.mxu0 0.0
    %3367 = vmatpush1.msra.mxu0 0.0
    %3368 = vmatprep.subr.mxu0 0.0
    %3369 = vmatpush1.msra.mxu0 0.0
    %3370 = vmatprep.subr.mxu0 0.0
    %3371 = vmatpush1.msra.mxu0 0.0
    %3372 = vmatprep.subr.mxu0 0.0
    %3373 = vmatpush1.msra.mxu0 0.0
    %3374 = vmatprep.subr.mxu0 0.0
    %3375 = vmatpush1.msra.mxu0 0.0
    %3376 = vmatprep.subr.mxu0 0.0
    %3377 = vmatpush1.msra.mxu0 0.0
    %3378 = vmatprep.subr.mxu0 0.0
    %3379 = vmatpush1.msra.mxu0 0.0
    %3380 = vmatprep.subr.mxu0 0.0
    %3381 = vmatpush1.msra.mxu0 0.0
    %3382 = vmatprep.subr.mxu0 0.0
    %3383 = vmatpush1.msra.mxu0 0.0
    %3384 = vmatprep.subr.mxu0 0.0
    %3385 = vmatpush1.msra.mxu0 0.0
    %3386 = vmatprep.subr.mxu0 0.0
    %3387 = vmatpush1.msra.mxu0 0.0
    %3388 = vmatprep.subr.mxu0 0.0
    %3389 = vmatpush1.msra.mxu0 0.0
    %3390 = vmatprep.subr.mxu0 0.0
    %3391 = vmatpush1.msra.mxu0 0.0
    %3392 = vmatprep.subr.mxu0 0.0
    %3393 = vmatpush1.msra.mxu0 0.0
    %3394 = vmatprep.mubr.f32.mxu0 0.0
    %3395 = vmatmul.mubr.f32.gmra.mrb[0].mxu0 %v702
    %v3396 = vpop.f32.mrb[0].mxu0
    %v3397 = vadd.f32 0.0, %v3396
    %v3398 = vpop.f32.mrb[0].mxu0
    %3399 = vmatprep.mubr.f32.mxu0 0.0
    %3400 = vmatmul.mubr.f32.gmra.mrb[0].mxu0 %v705
    %v3401 = vpop.f32.mrb[0].mxu0
    %v3402 = vadd.f32 0.0, %v3401
    %v3403 = vpop.f32.mrb[0].mxu0
    %3404 = vdwg.mxu0
    %v3405 = vmul.f32 %v3397, %v613
    %v3406 = vmul.f32 %v3402, %v614
    %v3408 = vsel %vm2923, %v3318, 0
    %v3411 = vsel %vm2923, %v3319, 0
    %v3414 = vsel %vm2923, %v3320, 0
    %v3417 = vsel %vm2923, %v3321, 0
    %v3420 = vsel %vm2923, %v3322, 0
    %v3423 = vsel %vm2923, %v3323, 0
    %v3426 = vsel %vm2923, %v3324, 0
    %v3429 = vsel %vm2923, %v3325, 0
    %v3432 = vsel %vm2980, %v3406, 0
    %3434 = vmatprep.subr.mxu0 0.0
    %3435 = vmatpush1.msra.mxu0 %v3405
    %3436 = vmatprep.subr.mxu0 0.0
    %3437 = vmatpush1.msra.mxu0 %v3432
    %3438 = vmatprep.subr.mxu0 0.0
    %3439 = vmatpush1.msra.mxu0 0.0
    %3440 = vmatprep.subr.mxu0 0.0
    %3441 = vmatpush1.msra.mxu0 0.0
    %3442 = vmatprep.subr.mxu0 0.0
    %3443 = vmatpush1.msra.mxu0 0.0
    %3444 = vmatprep.subr.mxu0 0.0
    %3445 = vmatpush1.msra.mxu0 0.0
    %3446 = vmatprep.subr.mxu0 0.0
    %3447 = vmatpush1.msra.mxu0 0.0
    %3448 = vmatprep.subr.mxu0 0.0
    %3449 = vmatpush1.msra.mxu0 0.0
    %3450 = vmatprep.subr.mxu0 0.0
    %3451 = vmatpush1.msra.mxu0 0.0
    %3452 = vmatprep.subr.mxu0 0.0
    %3453 = vmatpush1.msra.mxu0 0.0
    %3454 = vmatprep.subr.mxu0 0.0
    %3455 = vmatpush1.msra.mxu0 0.0
    %3456 = vmatprep.subr.mxu0 0.0
    %3457 = vmatpush1.msra.mxu0 0.0
    %3458 = vmatprep.subr.mxu0 0.0
    %3459 = vmatpush1.msra.mxu0 0.0
    %3460 = vmatprep.subr.mxu0 0.0
    %3461 = vmatpush1.msra.mxu0 0.0
    %3462 = vmatprep.subr.mxu0 0.0
    %3463 = vmatpush1.msra.mxu0 0.0
    %3464 = vmatprep.subr.mxu0 0.0
    %3465 = vmatpush1.msra.mxu0 0.0
    %3466 = vmatprep.subr.mxu0 0.0
    %3467 = vmatpush1.msra.mxu0 0.0
    %3468 = vmatprep.subr.mxu0 0.0
    %3469 = vmatpush1.msra.mxu0 0.0
    %3470 = vmatprep.subr.mxu0 0.0
    %3471 = vmatpush1.msra.mxu0 0.0
    %3472 = vmatprep.subr.mxu0 0.0
    %3473 = vmatpush1.msra.mxu0 0.0
    %3474 = vmatprep.subr.mxu0 0.0
    %3475 = vmatpush1.msra.mxu0 0.0
    %3476 = vmatprep.subr.mxu0 0.0
    %3477 = vmatpush1.msra.mxu0 0.0
    %3478 = vmatprep.subr.mxu0 0.0
    %3479 = vmatpush1.msra.mxu0 0.0
    %3480 = vmatprep.subr.mxu0 0.0
    %3481 = vmatpush1.msra.mxu0 0.0
    %3482 = vmatprep.subr.mxu0 0.0
    %3483 = vmatpush1.msra.mxu0 0.0
    %3484 = vmatprep.subr.mxu0 0.0
    %3485 = vmatpush1.msra.mxu0 0.0
    %3486 = vmatprep.subr.mxu0 0.0
    %3487 = vmatpush1.msra.mxu0 0.0
    %3488 = vmatprep.subr.mxu0 0.0
    %3489 = vmatpush1.msra.mxu0 0.0
    %3490 = vmatprep.subr.mxu0 0.0
    %3491 = vmatpush1.msra.mxu0 0.0
    %3492 = vmatprep.subr.mxu0 0.0
    %3493 = vmatpush1.msra.mxu0 0.0
    %3494 = vmatprep.subr.mxu0 0.0
    %3495 = vmatpush1.msra.mxu0 0.0
    %3496 = vmatprep.subr.mxu0 0.0
    %3497 = vmatpush1.msra.mxu0 0.0
    %3498 = vmatprep.mubr.f32.mxu0 0.0
    %3499 = vmatmul.mubr.f32.gmra.mrb[0].mxu0 %v3408
    %v3500 = vpop.f32.mrb[0].mxu0
    %v3501 = vadd.f32 0.0, %v3500
    %v3502 = vpop.f32.mrb[0].mxu0
    %3503 = vmatprep.mubr.f32.mxu0 0.0
    %3504 = vmatmul.mubr.f32.gmra.mrb[0].mxu0 %v3411
    %v3505 = vpop.f32.mrb[0].mxu0
    %v3506 = vadd.f32 0.0, %v3505
    %v3507 = vpop.f32.mrb[0].mxu0
    %3508 = vmatprep.mubr.f32.mxu0 0.0
    %3509 = vmatmul.mubr.f32.gmra.mrb[0].mxu0 %v3414
    %v3510 = vpop.f32.mrb[0].mxu0
    %v3511 = vadd.f32 0.0, %v3510
    %v3512 = vpop.f32.mrb[0].mxu0
    %3513 = vmatprep.mubr.f32.mxu0 0.0
    %3514 = vmatmul.mubr.f32.gmra.mrb[0].mxu0 %v3417
    %v3515 = vpop.f32.mrb[0].mxu0
    %v3516 = vadd.f32 0.0, %v3515
    %v3517 = vpop.f32.mrb[0].mxu0
    %3518 = vmatprep.mubr.f32.mxu0 0.0
    %3519 = vmatmul.mubr.f32.gmra.mrb[0].mxu0 %v3420
    %v3520 = vpop.f32.mrb[0].mxu0
    %v3521 = vadd.f32 0.0, %v3520
    %v3522 = vpop.f32.mrb[0].mxu0
    %3523 = vmatprep.mubr.f32.mxu0 0.0
    %3524 = vmatmul.mubr.f32.gmra.mrb[0].mxu0 %v3423
    %v3525 = vpop.f32.mrb[0].mxu0
    %v3526 = vadd.f32 0.0, %v3525
    %v3527 = vpop.f32.mrb[0].mxu0
    %3528 = vmatprep.mubr.f32.mxu0 0.0
    %3529 = vmatmul.mubr.f32.gmra.mrb[0].mxu0 %v3426
    %v3530 = vpop.f32.mrb[0].mxu0
    %v3531 = vadd.f32 0.0, %v3530
    %v3532 = vpop.f32.mrb[0].mxu0
    %3533 = vmatprep.mubr.f32.mxu0 0.0
    %3534 = vmatmul.mubr.f32.gmra.mrb[0].mxu0 %v3429
    %v3535 = vpop.f32.mrb[0].mxu0
    %v3536 = vadd.f32 0.0, %v3535
    %v3537 = vpop.f32.mrb[0].mxu0
    %3538 = vdwg.mxu0
    %v3540 = vsel %vm2923, %v3189, 0
    %v3543 = vsel %vm2923, %v3190, 0
    %v3546 = vsel %vm2923, %v3191, 0
    %v3549 = vsel %vm2923, %v3192, 0
    %v3552 = vsel %vm2923, %v3193, 0
    %v3555 = vsel %vm2923, %v3194, 0
    %v3558 = vsel %vm2923, %v3195, 0
    %v3561 = vsel %vm2923, %v3196, 0
    %v3564 = vsel %vm2980, %v3277, 0
    %3566 = vmatprep.subr.mxu0 0.0
    %3567 = vmatpush1.msra.mxu0 %v3276
    %3568 = vmatprep.subr.mxu0 0.0
    %3569 = vmatpush1.msra.mxu0 %v3564
    %3570 = vmatprep.subr.mxu0 0.0
    %3571 = vmatpush1.msra.mxu0 0.0
    %3572 = vmatprep.subr.mxu0 0.0
    %3573 = vmatpush1.msra.mxu0 0.0
    %3574 = vmatprep.subr.mxu0 0.0
    %3575 = vmatpush1.msra.mxu0 0.0
    %3576 = vmatprep.subr.mxu0 0.0
    %3577 = vmatpush1.msra.mxu0 0.0
    %3578 = vmatprep.subr.mxu0 0.0
    %3579 = vmatpush1.msra.mxu0 0.0
    %3580 = vmatprep.subr.mxu0 0.0
    %3581 = vmatpush1.msra.mxu0 0.0
    %3582 = vmatprep.subr.mxu0 0.0
    %3583 = vmatpush1.msra.mxu0 0.0
    %3584 = vmatprep.subr.mxu0 0.0
    %3585 = vmatpush1.msra.mxu0 0.0
    %3586 = vmatprep.subr.mxu0 0.0
    %3587 = vmatpush1.msra.mxu0 0.0
    %3588 = vmatprep.subr.mxu0 0.0
    %3589 = vmatpush1.msra.mxu0 0.0
    %3590 = vmatprep.subr.mxu0 0.0
    %3591 = vmatpush1.msra.mxu0 0.0
    %3592 = vmatprep.subr.mxu0 0.0
    %3593 = vmatpush1.msra.mxu0 0.0
    %3594 = vmatprep.subr.mxu0 0.0
    %3595 = vmatpush1.msra.mxu0 0.0
    %3596 = vmatprep.subr.mxu0 0.0
    %3597 = vmatpush1.msra.mxu0 0.0
    %3598 = vmatprep.subr.mxu0 0.0
    %3599 = vmatpush1.msra.mxu0 0.0
    %3600 = vmatprep.subr.mxu0 0.0
    %3601 = vmatpush1.msra.mxu0 0.0
    %3602 = vmatprep.subr.mxu0 0.0
    %3603 = vmatpush1.msra.mxu0 0.0
    %3604 = vmatprep.subr.mxu0 0.0
    %3605 = vmatpush1.msra.mxu0 0.0
    %3606 = vmatprep.subr.mxu0 0.0
    %3607 = vmatpush1.msra.mxu0 0.0
    %3608 = vmatprep.subr.mxu0 0.0
    %3609 = vmatpush1.msra.mxu0 0.0
    %3610 = vmatprep.subr.mxu0 0.0
    %3611 = vmatpush1.msra.mxu0 0.0
    %3612 = vmatprep.subr.mxu0 0.0
    %3613 = vmatpush1.msra.mxu0 0.0
    %3614 = vmatprep.subr.mxu0 0.0
    %3615 = vmatpush1.msra.mxu0 0.0
    %3616 = vmatprep.subr.mxu0 0.0
    %3617 = vmatpush1.msra.mxu0 0.0
    %3618 = vmatprep.subr.mxu0 0.0
    %3619 = vmatpush1.msra.mxu0 0.0
    %3620 = vmatprep.subr.mxu0 0.0
    %3621 = vmatpush1.msra.mxu0 0.0
    %3622 = vmatprep.subr.mxu0 0.0
    %3623 = vmatpush1.msra.mxu0 0.0
    %3624 = vmatprep.subr.mxu0 0.0
    %3625 = vmatpush1.msra.mxu0 0.0
    %3626 = vmatprep.subr.mxu0 0.0
    %3627 = vmatpush1.msra.mxu0 0.0
    %3628 = vmatprep.subr.mxu0 0.0
    %3629 = vmatpush1.msra.mxu0 0.0
    %3630 = vmatprep.mubr.f32.mxu0 0.0
    %3631 = vmatmul.mubr.f32.gmra.mrb[0].mxu0 %v3540
    %v3632 = vpop.f32.mrb[0].mxu0
    %v3633 = vadd.f32 %v3501, %v3632
    %v3634 = vpop.f32.mrb[0].mxu0
    %3635 = vmatprep.mubr.f32.mxu0 0.0
    %3636 = vmatmul.mubr.f32.gmra.mrb[0].mxu0 %v3543
    %v3637 = vpop.f32.mrb[0].mxu0
    %v3638 = vadd.f32 %v3506, %v3637
    %v3639 = vpop.f32.mrb[0].mxu0
    %3640 = vmatprep.mubr.f32.mxu0 0.0
    %3641 = vmatmul.mubr.f32.gmra.mrb[0].mxu0 %v3546
    %v3642 = vpop.f32.mrb[0].mxu0
    %v3643 = vadd.f32 %v3511, %v3642
    %v3644 = vpop.f32.mrb[0].mxu0
    %3645 = vmatprep.mubr.f32.mxu0 0.0
    %3646 = vmatmul.mubr.f32.gmra.mrb[0].mxu0 %v3549
    %v3647 = vpop.f32.mrb[0].mxu0
    %v3648 = vadd.f32 %v3516, %v3647
    %v3649 = vpop.f32.mrb[0].mxu0
    %3650 = vmatprep.mubr.f32.mxu0 0.0
    %3651 = vmatmul.mubr.f32.gmra.mrb[0].mxu0 %v3552
    %v3652 = vpop.f32.mrb[0].mxu0
    %v3653 = vadd.f32 %v3521, %v3652
    %v3654 = vpop.f32.mrb[0].mxu0
    %3655 = vmatprep.mubr.f32.mxu0 0.0
    %3656 = vmatmul.mubr.f32.gmra.mrb[0].mxu0 %v3555
    %v3657 = vpop.f32.mrb[0].mxu0
    %v3658 = vadd.f32 %v3526, %v3657
    %v3659 = vpop.f32.mrb[0].mxu0
    %3660 = vmatprep.mubr.f32.mxu0 0.0
    %3661 = vmatmul.mubr.f32.gmra.mrb[0].mxu0 %v3558
    %v3662 = vpop.f32.mrb[0].mxu0
    %v3663 = vadd.f32 %v3531, %v3662
    %v3664 = vpop.f32.mrb[0].mxu0
    %3665 = vmatprep.mubr.f32.mxu0 0.0
    %3666 = vmatmul.mubr.f32.gmra.mrb[0].mxu0 %v3561
    %v3667 = vpop.f32.mrb[0].mxu0
    %v3668 = vadd.f32 %v3536, %v3667
    %v3669 = vpop.f32.mrb[0].mxu0
    %3670 = vdwg.mxu0
    %v3671 = vld [vmem:[#allocation3 + $0x9] sm:$0xff]
    %v3672 = vld [vmem:[#allocation3 + $0x11] sm:$0xff]
    %v3673 = vld [vmem:[#allocation3 + $0x19] sm:$0xff]
    %v3674 = vld [vmem:[#allocation3 + $0x21] sm:$0xff]
    %v3675 = vld [vmem:[#allocation3 + $0x29] sm:$0xff]
    %v3676 = vld [vmem:[#allocation3 + $0x31] sm:$0xff]
    %v3677 = vld [vmem:[#allocation3 + $0x39] sm:$0xff]
    %v3678 = vld [vmem:[#allocation3 + $0x41] sm:$0xff]
    %3679 = vset.pattern.permute.xlu0 2
    %3680 = vperm.xlu0 %3679, %v3141
    %v3681 = vpop.permute.xlu0 %3680
    %3683 = vset.pattern.permute.xlu0 2
    %3684 = vperm.xlu0 %3683, %v3142
    %v3685 = vpop.permute.xlu0 %3684
    %3687 = vset.pattern.permute.xlu0 2
    %3688 = vperm.xlu0 %3687, %v3143
    %v3689 = vpop.permute.xlu0 %3688
    %3691 = vset.pattern.permute.xlu0 2
    %3692 = vperm.xlu0 %3691, %v3144
    %v3693 = vpop.permute.xlu0 %3692
    %3695 = vset.pattern.permute.xlu0 2
    %3696 = vperm.xlu0 %3695, %v3145
    %v3697 = vpop.permute.xlu0 %3696
    %3699 = vset.pattern.permute.xlu0 2
    %3700 = vperm.xlu0 %3699, %v3146
    %v3701 = vpop.permute.xlu0 %3700
    %3703 = vset.pattern.permute.xlu0 2
    %3704 = vperm.xlu0 %3703, %v3147
    %v3705 = vpop.permute.xlu0 %3704
    %3707 = vset.pattern.permute.xlu0 2
    %3708 = vperm.xlu0 %3707, %v3148
    %v3709 = vpop.permute.xlu0 %3708
    %v3711 = vmul.f32 %v3671, %v3681
    %v3712 = vmul.f32 %v3672, %v3685
    %v3713 = vmul.f32 %v3673, %v3689
    %v3714 = vmul.f32 %v3674, %v3693
    %v3715 = vmul.f32 %v3675, %v3697
    %v3716 = vmul.f32 %v3676, %v3701
    %v3717 = vmul.f32 %v3677, %v3705
    %v3718 = vmul.f32 %v3678, %v3709
    %v3719 = vld [vmem:[#allocation5 + $0x12] sm:$0x7]
    %v3721 = vsel %vm707, %v3719, 0
    %3723 = vmatprep.subr.mxu0 0.0
    %3724 = vmatpush1.msra.mxu0 %v3721
    %3725 = vmatprep.subr.mxu0 0.0
    %3726 = vmatpush1.msra.mxu0 0.0
    %3727 = vmatprep.subr.mxu0 0.0
    %3728 = vmatpush1.msra.mxu0 0.0
    %3729 = vmatprep.subr.mxu0 0.0
    %3730 = vmatpush1.msra.mxu0 0.0
    %3731 = vmatprep.subr.mxu0 0.0
    %3732 = vmatpush1.msra.mxu0 0.0
    %3733 = vmatprep.subr.mxu0 0.0
    %3734 = vmatpush1.msra.mxu0 0.0
    %3735 = vmatprep.subr.mxu0 0.0
    %3736 = vmatpush1.msra.mxu0 0.0
    %3737 = vmatprep.subr.mxu0 0.0
    %3738 = vmatpush1.msra.mxu0 0.0
    %3739 = vmatprep.subr.mxu0 0.0
    %3740 = vmatpush1.msra.mxu0 0.0
    %3741 = vmatprep.subr.mxu0 0.0
    %3742 = vmatpush1.msra.mxu0 0.0
    %3743 = vmatprep.subr.mxu0 0.0
    %3744 = vmatpush1.msra.mxu0 0.0
    %3745 = vmatprep.subr.mxu0 0.0
    %3746 = vmatpush1.msra.mxu0 0.0
    %3747 = vmatprep.subr.mxu0 0.0
    %3748 = vmatpush1.msra.mxu0 0.0
    %3749 = vmatprep.subr.mxu0 0.0
    %3750 = vmatpush1.msra.mxu0 0.0
    %3751 = vmatprep.subr.mxu0 0.0
    %3752 = vmatpush1.msra.mxu0 0.0
    %3753 = vmatprep.subr.mxu0 0.0
    %3754 = vmatpush1.msra.mxu0 0.0
    %3755 = vmatprep.subr.mxu0 0.0
    %3756 = vmatpush1.msra.mxu0 0.0
    %3757 = vmatprep.subr.mxu0 0.0
    %3758 = vmatpush1.msra.mxu0 0.0
    %3759 = vmatprep.subr.mxu0 0.0
    %3760 = vmatpush1.msra.mxu0 0.0
    %3761 = vmatprep.subr.mxu0 0.0
    %3762 = vmatpush1.msra.mxu0 0.0
    %3763 = vmatprep.subr.mxu0 0.0
    %3764 = vmatpush1.msra.mxu0 0.0
    %3765 = vmatprep.subr.mxu0 0.0
    %3766 = vmatpush1.msra.mxu0 0.0
    %3767 = vmatprep.subr.mxu0 0.0
    %3768 = vmatpush1.msra.mxu0 0.0
    %3769 = vmatprep.subr.mxu0 0.0
    %3770 = vmatpush1.msra.mxu0 0.0
    %3771 = vmatprep.subr.mxu0 0.0
    %3772 = vmatpush1.msra.mxu0 0.0
    %3773 = vmatprep.subr.mxu0 0.0
    %3774 = vmatpush1.msra.mxu0 0.0
    %3775 = vmatprep.subr.mxu0 0.0
    %3776 = vmatpush1.msra.mxu0 0.0
    %3777 = vmatprep.subr.mxu0 0.0
    %3778 = vmatpush1.msra.mxu0 0.0
    %3779 = vmatprep.subr.mxu0 0.0
    %3780 = vmatpush1.msra.mxu0 0.0
    %3781 = vmatprep.subr.mxu0 0.0
    %3782 = vmatpush1.msra.mxu0 0.0
    %3783 = vmatprep.subr.mxu0 0.0
    %3784 = vmatpush1.msra.mxu0 0.0
    %3785 = vmatprep.subr.mxu0 0.0
    %3786 = vmatpush1.msra.mxu0 0.0
    %3787 = vmatprep.mubr.f32.mxu0 0.0
    %3788 = vmatmul.mubr.f32.gmra.mrb[0].mxu0 %v702
    %v3789 = vpop.f32.mrb[0].mxu0
    %v3790 = vadd.f32 0.0, %v3789
    %v3791 = vpop.f32.mrb[0].mxu0
    %3792 = vmatprep.mubr.f32.mxu0 0.0
    %3793 = vmatmul.mubr.f32.gmra.mrb[0].mxu0 %v705
    %v3794 = vpop.f32.mrb[0].mxu0
    %v3795 = vadd.f32 0.0, %v3794
    %v3796 = vpop.f32.mrb[0].mxu0
    %3797 = vdwg.mxu0
    %v3798 = vmul.f32 %v3790, %v613
    %v3799 = vmul.f32 %v3795, %v614
    %v3801 = vsel %vm2923, %v3711, 0
    %v3804 = vsel %vm2923, %v3712, 0
    %v3807 = vsel %vm2923, %v3713, 0
    %v3810 = vsel %vm2923, %v3714, 0
    %v3813 = vsel %vm2923, %v3715, 0
    %v3816 = vsel %vm2923, %v3716, 0
    %v3819 = vsel %vm2923, %v3717, 0
    %v3822 = vsel %vm2923, %v3718, 0
    %v3825 = vsel %vm2980, %v3799, 0
    %3827 = vmatprep.subr.mxu0 0.0
    %3828 = vmatpush1.msra.mxu0 %v3798
    %3829 = vmatprep.subr.mxu0 0.0
    %3830 = vmatpush1.msra.mxu0 %v3825
    %3831 = vmatprep.subr.mxu0 0.0
    %3832 = vmatpush1.msra.mxu0 0.0
    %3833 = vmatprep.subr.mxu0 0.0
    %3834 = vmatpush1.msra.mxu0 0.0
    %3835 = vmatprep.subr.mxu0 0.0
    %3836 = vmatpush1.msra.mxu0 0.0
    %3837 = vmatprep.subr.mxu0 0.0
    %3838 = vmatpush1.msra.mxu0 0.0
    %3839 = vmatprep.subr.mxu0 0.0
    %3840 = vmatpush1.msra.mxu0 0.0
    %3841 = vmatprep.subr.mxu0 0.0
    %3842 = vmatpush1.msra.mxu0 0.0
    %3843 = vmatprep.subr.mxu0 0.0
    %3844 = vmatpush1.msra.mxu0 0.0
    %3845 = vmatprep.subr.mxu0 0.0
    %3846 = vmatpush1.msra.mxu0 0.0
    %3847 = vmatprep.subr.mxu0 0.0
    %3848 = vmatpush1.msra.mxu0 0.0
    %3849 = vmatprep.subr.mxu0 0.0
    %3850 = vmatpush1.msra.mxu0 0.0
    %3851 = vmatprep.subr.mxu0 0.0
    %3852 = vmatpush1.msra.mxu0 0.0
    %3853 = vmatprep.subr.mxu0 0.0
    %3854 = vmatpush1.msra.mxu0 0.0
    %3855 = vmatprep.subr.mxu0 0.0
    %3856 = vmatpush1.msra.mxu0 0.0
    %3857 = vmatprep.subr.mxu0 0.0
    %3858 = vmatpush1.msra.mxu0 0.0
    %3859 = vmatprep.subr.mxu0 0.0
    %3860 = vmatpush1.msra.mxu0 0.0
    %3861 = vmatprep.subr.mxu0 0.0
    %3862 = vmatpush1.msra.mxu0 0.0
    %3863 = vmatprep.subr.mxu0 0.0
    %3864 = vmatpush1.msra.mxu0 0.0
    %3865 = vmatprep.subr.mxu0 0.0
    %3866 = vmatpush1.msra.mxu0 0.0
    %3867 = vmatprep.subr.mxu0 0.0
    %3868 = vmatpush1.msra.mxu0 0.0
    %3869 = vmatprep.subr.mxu0 0.0
    %3870 = vmatpush1.msra.mxu0 0.0
    %3871 = vmatprep.subr.mxu0 0.0
    %3872 = vmatpush1.msra.mxu0 0.0
    %3873 = vmatprep.subr.mxu0 0.0
    %3874 = vmatpush1.msra.mxu0 0.0
    %3875 = vmatprep.subr.mxu0 0.0
    %3876 = vmatpush1.msra.mxu0 0.0
    %3877 = vmatprep.subr.mxu0 0.0
    %3878 = vmatpush1.msra.mxu0 0.0
    %3879 = vmatprep.subr.mxu0 0.0
    %3880 = vmatpush1.msra.mxu0 0.0
    %3881 = vmatprep.subr.mxu0 0.0
    %3882 = vmatpush1.msra.mxu0 0.0
    %3883 = vmatprep.subr.mxu0 0.0
    %3884 = vmatpush1.msra.mxu0 0.0
    %3885 = vmatprep.subr.mxu0 0.0
    %3886 = vmatpush1.msra.mxu0 0.0
    %3887 = vmatprep.subr.mxu0 0.0
    %3888 = vmatpush1.msra.mxu0 0.0
    %3889 = vmatprep.subr.mxu0 0.0
    %3890 = vmatpush1.msra.mxu0 0.0
    %3891 = vmatprep.mubr.f32.mxu0 0.0
    %3892 = vmatmul.mubr.f32.gmra.mrb[0].mxu0 %v3801
    %v3893 = vpop.f32.mrb[0].mxu0
    %v3894 = vadd.f32 0.0, %v3893
    %v3895 = vpop.f32.mrb[0].mxu0
    %3896 = vmatprep.mubr.f32.mxu0 0.0
    %3897 = vmatmul.mubr.f32.gmra.mrb[0].mxu0 %v3804
    %v3898 = vpop.f32.mrb[0].mxu0
    %v3899 = vadd.f32 0.0, %v3898
    %v3900 = vpop.f32.mrb[0].mxu0
    %3901 = vmatprep.mubr.f32.mxu0 0.0
    %3902 = vmatmul.mubr.f32.gmra.mrb[0].mxu0 %v3807
    %v3903 = vpop.f32.mrb[0].mxu0
    %v3904 = vadd.f32 0.0, %v3903
    %v3905 = vpop.f32.mrb[0].mxu0
    %3906 = vmatprep.mubr.f32.mxu0 0.0
    %3907 = vmatmul.mubr.f32.gmra.mrb[0].mxu0 %v3810
    %v3908 = vpop.f32.mrb[0].mxu0
    %v3909 = vadd.f32 0.0, %v3908
    %v3910 = vpop.f32.mrb[0].mxu0
    %3911 = vmatprep.mubr.f32.mxu0 0.0
    %3912 = vmatmul.mubr.f32.gmra.mrb[0].mxu0 %v3813
    %v3913 = vpop.f32.mrb[0].mxu0
    %v3914 = vadd.f32 0.0, %v3913
    %v3915 = vpop.f32.mrb[0].mxu0
    %3916 = vmatprep.mubr.f32.mxu0 0.0
    %3917 = vmatmul.mubr.f32.gmra.mrb[0].mxu0 %v3816
    %v3918 = vpop.f32.mrb[0].mxu0
    %v3919 = vadd.f32 0.0, %v3918
    %v3920 = vpop.f32.mrb[0].mxu0
    %3921 = vmatprep.mubr.f32.mxu0 0.0
    %3922 = vmatmul.mubr.f32.gmra.mrb[0].mxu0 %v3819
    %v3923 = vpop.f32.mrb[0].mxu0
    %v3924 = vadd.f32 0.0, %v3923
    %v3925 = vpop.f32.mrb[0].mxu0
    %3926 = vmatprep.mubr.f32.mxu0 0.0
    %3927 = vmatmul.mubr.f32.gmra.mrb[0].mxu0 %v3822
    %v3928 = vpop.f32.mrb[0].mxu0
    %v3929 = vadd.f32 0.0, %v3928
    %v3930 = vpop.f32.mrb[0].mxu0
    %3931 = vdwg.mxu0
    %v3932 = vadd.f32 %v3633, %v3894
    %v3933 = vadd.f32 %v3638, %v3899
    %v3934 = vadd.f32 %v3643, %v3904
    %v3935 = vadd.f32 %v3648, %v3909
    %v3936 = vadd.f32 %v3653, %v3914
    %v3937 = vadd.f32 %v3658, %v3919
    %v3938 = vadd.f32 %v3663, %v3924
    %v3939 = vadd.f32 %v3668, %v3929
    %v3940 = vld [vmem:[#allocation3 + $0xf] sm:$0xff]
    %v3941 = vld [vmem:[#allocation3 + $0x17] sm:$0xff]
    %v3942 = vld [vmem:[#allocation3 + $0x1f] sm:$0xff]
    %v3943 = vld [vmem:[#allocation3 + $0x27] sm:$0xff]
    %v3944 = vld [vmem:[#allocation3 + $0x2f] sm:$0xff]
    %v3945 = vld [vmem:[#allocation3 + $0x37] sm:$0xff]
    %v3946 = vld [vmem:[#allocation3 + $0x3f] sm:$0xff]
    %v3947 = vld [vmem:[#allocation3 + $0x47] sm:$0xff]
    %v3948 = vmul.f32 %v3940, %v3152
    %v3949 = vmul.f32 %v3941, %v3157
    %v3950 = vmul.f32 %v3942, %v3162
    %v3951 = vmul.f32 %v3943, %v3167
    %v3952 = vmul.f32 %v3944, %v3172
    %v3953 = vmul.f32 %v3945, %v3177
    %v3954 = vmul.f32 %v3946, %v3182
    %v3955 = vmul.f32 %v3947, %v3187
    %v3956 = vld [vmem:[#allocation5 + $0xf] sm:$0x7]
    %v3958 = vsel %vm707, %v3956, 0
    %3960 = vmatprep.subr.mxu0 0.0
    %3961 = vmatpush1.msra.mxu0 %v3958
    %3962 = vmatprep.subr.mxu0 0.0
    %3963 = vmatpush1.msra.mxu0 0.0
    %3964 = vmatprep.subr.mxu0 0.0
    %3965 = vmatpush1.msra.mxu0 0.0
    %3966 = vmatprep.subr.mxu0 0.0
    %3967 = vmatpush1.msra.mxu0 0.0
    %3968 = vmatprep.subr.mxu0 0.0
    %3969 = vmatpush1.msra.mxu0 0.0
    %3970 = vmatprep.subr.mxu0 0.0
    %3971 = vmatpush1.msra.mxu0 0.0
    %3972 = vmatprep.subr.mxu0 0.0
    %3973 = vmatpush1.msra.mxu0 0.0
    %3974 = vmatprep.subr.mxu0 0.0
    %3975 = vmatpush1.msra.mxu0 0.0
    %3976 = vmatprep.subr.mxu0 0.0
    %3977 = vmatpush1.msra.mxu0 0.0
    %3978 = vmatprep.subr.mxu0 0.0
    %3979 = vmatpush1.msra.mxu0 0.0
    %3980 = vmatprep.subr.mxu0 0.0
    %3981 = vmatpush1.msra.mxu0 0.0
    %3982 = vmatprep.subr.mxu0 0.0
    %3983 = vmatpush1.msra.mxu0 0.0
    %3984 = vmatprep.subr.mxu0 0.0
    %3985 = vmatpush1.msra.mxu0 0.0
    %3986 = vmatprep.subr.mxu0 0.0
    %3987 = vmatpush1.msra.mxu0 0.0
    %3988 = vmatprep.subr.mxu0 0.0
    %3989 = vmatpush1.msra.mxu0 0.0
    %3990 = vmatprep.subr.mxu0 0.0
    %3991 = vmatpush1.msra.mxu0 0.0
    %3992 = vmatprep.subr.mxu0 0.0
    %3993 = vmatpush1.msra.mxu0 0.0
    %3994 = vmatprep.subr.mxu0 0.0
    %3995 = vmatpush1.msra.mxu0 0.0
    %3996 = vmatprep.subr.mxu0 0.0
    %3997 = vmatpush1.msra.mxu0 0.0
    %3998 = vmatprep.subr.mxu0 0.0
    %3999 = vmatpush1.msra.mxu0 0.0
    %4000 = vmatprep.subr.mxu0 0.0
    %4001 = vmatpush1.msra.mxu0 0.0
    %4002 = vmatprep.subr.mxu0 0.0
    %4003 = vmatpush1.msra.mxu0 0.0
    %4004 = vmatprep.subr.mxu0 0.0
    %4005 = vmatpush1.msra.mxu0 0.0
    %4006 = vmatprep.subr.mxu0 0.0
    %4007 = vmatpush1.msra.mxu0 0.0
    %4008 = vmatprep.subr.mxu0 0.0
    %4009 = vmatpush1.msra.mxu0 0.0
    %4010 = vmatprep.subr.mxu0 0.0
    %4011 = vmatpush1.msra.mxu0 0.0
    %4012 = vmatprep.subr.mxu0 0.0
    %4013 = vmatpush1.msra.mxu0 0.0
    %4014 = vmatprep.subr.mxu0 0.0
    %4015 = vmatpush1.msra.mxu0 0.0
    %4016 = vmatprep.subr.mxu0 0.0
    %4017 = vmatpush1.msra.mxu0 0.0
    %4018 = vmatprep.subr.mxu0 0.0
    %4019 = vmatpush1.msra.mxu0 0.0
    %4020 = vmatprep.subr.mxu0 0.0
    %4021 = vmatpush1.msra.mxu0 0.0
    %4022 = vmatprep.subr.mxu0 0.0
    %4023 = vmatpush1.msra.mxu0 0.0
    %4024 = vmatprep.mubr.f32.mxu0 0.0
    %4025 = vmatmul.mubr.f32.gmra.mrb[0].mxu0 %v702
    %v4026 = vpop.f32.mrb[0].mxu0
    %v4027 = vadd.f32 0.0, %v4026
    %v4028 = vpop.f32.mrb[0].mxu0
    %4029 = vmatprep.mubr.f32.mxu0 0.0
    %4030 = vmatmul.mubr.f32.gmra.mrb[0].mxu0 %v705
    %v4031 = vpop.f32.mrb[0].mxu0
    %v4032 = vadd.f32 0.0, %v4031
    %v4033 = vpop.f32.mrb[0].mxu0
    %4034 = vdwg.mxu0
    %v4035 = vmul.f32 %v4027, %v613
    %v4036 = vmul.f32 %v4032, %v614
    %v4038 = vsel %vm2923, %v3948, 0
    %v4041 = vsel %vm2923, %v3949, 0
    %v4044 = vsel %vm2923, %v3950, 0
    %v4047 = vsel %vm2923, %v3951, 0
    %v4050 = vsel %vm2923, %v3952, 0
    %v4053 = vsel %vm2923, %v3953, 0
    %v4056 = vsel %vm2923, %v3954, 0
    %v4059 = vsel %vm2923, %v3955, 0
    %v4062 = vsel %vm2980, %v4036, 0
    %4064 = vmatprep.subr.mxu0 0.0
    %4065 = vmatpush1.msra.mxu0 %v4035
    %4066 = vmatprep.subr.mxu0 0.0
    %4067 = vmatpush1.msra.mxu0 %v4062
    %4068 = vmatprep.subr.mxu0 0.0
    %4069 = vmatpush1.msra.mxu0 0.0
    %4070 = vmatprep.subr.mxu0 0.0
    %4071 = vmatpush1.msra.mxu0 0.0
    %4072 = vmatprep.subr.mxu0 0.0
    %4073 = vmatpush1.msra.mxu0 0.0
    %4074 = vmatprep.subr.mxu0 0.0
    %4075 = vmatpush1.msra.mxu0 0.0
    %4076 = vmatprep.subr.mxu0 0.0
    %4077 = vmatpush1.msra.mxu0 0.0
    %4078 = vmatprep.subr.mxu0 0.0
    %4079 = vmatpush1.msra.mxu0 0.0
    %4080 = vmatprep.subr.mxu0 0.0
    %4081 = vmatpush1.msra.mxu0 0.0
    %4082 = vmatprep.subr.mxu0 0.0
    %4083 = vmatpush1.msra.mxu0 0.0
    %4084 = vmatprep.subr.mxu0 0.0
    %4085 = vmatpush1.msra.mxu0 0.0
    %4086 = vmatprep.subr.mxu0 0.0
    %4087 = vmatpush1.msra.mxu0 0.0
    %4088 = vmatprep.subr.mxu0 0.0
    %4089 = vmatpush1.msra.mxu0 0.0
    %4090 = vmatprep.subr.mxu0 0.0
    %4091 = vmatpush1.msra.mxu0 0.0
    %4092 = vmatprep.subr.mxu0 0.0
    %4093 = vmatpush1.msra.mxu0 0.0
    %4094 = vmatprep.subr.mxu0 0.0
    %4095 = vmatpush1.msra.mxu0 0.0
    %4096 = vmatprep.subr.mxu0 0.0
    %4097 = vmatpush1.msra.mxu0 0.0
    %4098 = vmatprep.subr.mxu0 0.0
    %4099 = vmatpush1.msra.mxu0 0.0
    %4100 = vmatprep.subr.mxu0 0.0
    %4101 = vmatpush1.msra.mxu0 0.0
    %4102 = vmatprep.subr.mxu0 0.0
    %4103 = vmatpush1.msra.mxu0 0.0
    %4104 = vmatprep.subr.mxu0 0.0
    %4105 = vmatpush1.msra.mxu0 0.0
    %4106 = vmatprep.subr.mxu0 0.0
    %4107 = vmatpush1.msra.mxu0 0.0
    %4108 = vmatprep.subr.mxu0 0.0
    %4109 = vmatpush1.msra.mxu0 0.0
    %4110 = vmatprep.subr.mxu0 0.0
    %4111 = vmatpush1.msra.mxu0 0.0
    %4112 = vmatprep.subr.mxu0 0.0
    %4113 = vmatpush1.msra.mxu0 0.0
    %4114 = vmatprep.subr.mxu0 0.0
    %4115 = vmatpush1.msra.mxu0 0.0
    %4116 = vmatprep.subr.mxu0 0.0
    %4117 = vmatpush1.msra.mxu0 0.0
    %4118 = vmatprep.subr.mxu0 0.0
    %4119 = vmatpush1.msra.mxu0 0.0
    %4120 = vmatprep.subr.mxu0 0.0
    %4121 = vmatpush1.msra.mxu0 0.0
    %4122 = vmatprep.subr.mxu0 0.0
    %4123 = vmatpush1.msra.mxu0 0.0
    %4124 = vmatprep.subr.mxu0 0.0
    %4125 = vmatpush1.msra.mxu0 0.0
    %4126 = vmatprep.subr.mxu0 0.0
    %4127 = vmatpush1.msra.mxu0 0.0
    %4128 = vmatprep.mubr.f32.mxu0 0.0
    %4129 = vmatmul.mubr.f32.gmra.mrb[0].mxu0 %v4038
    %v4130 = vpop.f32.mrb[0].mxu0
    %v4131 = vadd.f32 0.0, %v4130
    %v4132 = vpop.f32.mrb[0].mxu0
    %4133 = vmatprep.mubr.f32.mxu0 0.0
    %4134 = vmatmul.mubr.f32.gmra.mrb[0].mxu0 %v4041
    %v4135 = vpop.f32.mrb[0].mxu0
    %v4136 = vadd.f32 0.0, %v4135
    %v4137 = vpop.f32.mrb[0].mxu0
    %4138 = vmatprep.mubr.f32.mxu0 0.0
    %4139 = vmatmul.mubr.f32.gmra.mrb[0].mxu0 %v4044
    %v4140 = vpop.f32.mrb[0].mxu0
    %v4141 = vadd.f32 0.0, %v4140
    %v4142 = vpop.f32.mrb[0].mxu0
    %4143 = vmatprep.mubr.f32.mxu0 0.0
    %4144 = vmatmul.mubr.f32.gmra.mrb[0].mxu0 %v4047
    %v4145 = vpop.f32.mrb[0].mxu0
    %v4146 = vadd.f32 0.0, %v4145
    %v4147 = vpop.f32.mrb[0].mxu0
    %4148 = vmatprep.mubr.f32.mxu0 0.0
    %4149 = vmatmul.mubr.f32.gmra.mrb[0].mxu0 %v4050
    %v4150 = vpop.f32.mrb[0].mxu0
    %v4151 = vadd.f32 0.0, %v4150
    %v4152 = vpop.f32.mrb[0].mxu0
    %4153 = vmatprep.mubr.f32.mxu0 0.0
    %4154 = vmatmul.mubr.f32.gmra.mrb[0].mxu0 %v4053
    %v4155 = vpop.f32.mrb[0].mxu0
    %v4156 = vadd.f32 0.0, %v4155
    %v4157 = vpop.f32.mrb[0].mxu0
    %4158 = vmatprep.mubr.f32.mxu0 0.0
    %4159 = vmatmul.mubr.f32.gmra.mrb[0].mxu0 %v4056
    %v4160 = vpop.f32.mrb[0].mxu0
    %v4161 = vadd.f32 0.0, %v4160
    %v4162 = vpop.f32.mrb[0].mxu0
    %4163 = vmatprep.mubr.f32.mxu0 0.0
    %4164 = vmatmul.mubr.f32.gmra.mrb[0].mxu0 %v4059
    %v4165 = vpop.f32.mrb[0].mxu0
    %v4166 = vadd.f32 0.0, %v4165
    %v4167 = vpop.f32.mrb[0].mxu0
    %4168 = vdwg.mxu0
    %v4169 = vadd.f32 %v3932, %v4131
    %v4170 = vadd.f32 %v3933, %v4136
    %v4171 = vadd.f32 %v3934, %v4141
    %v4172 = vadd.f32 %v3935, %v4146
    %v4173 = vadd.f32 %v3936, %v4151
    %v4174 = vadd.f32 %v3937, %v4156
    %v4175 = vadd.f32 %v3938, %v4161
    %v4176 = vadd.f32 %v3939, %v4166
    %v4177 = vld [vmem:[#allocation3 + $0x10] sm:$0xff]
    %v4178 = vld [vmem:[#allocation3 + $0x18] sm:$0xff]
    %v4179 = vld [vmem:[#allocation3 + $0x20] sm:$0xff]
    %v4180 = vld [vmem:[#allocation3 + $0x28] sm:$0xff]
    %v4181 = vld [vmem:[#allocation3 + $0x30] sm:$0xff]
    %v4182 = vld [vmem:[#allocation3 + $0x38] sm:$0xff]
    %v4183 = vld [vmem:[#allocation3 + $0x40] sm:$0xff]
    %v4184 = vld [vmem:[#allocation3 + $0x48] sm:$0xff]
    %v4185 = vmul.f32 %v4177, %v3288
    %v4186 = vmul.f32 %v4178, %v3292
    %v4187 = vmul.f32 %v4179, %v3296
    %v4188 = vmul.f32 %v4180, %v3300
    %v4189 = vmul.f32 %v4181, %v3304
    %v4190 = vmul.f32 %v4182, %v3308
    %v4191 = vmul.f32 %v4183, %v3312
    %v4192 = vmul.f32 %v4184, %v3316
    %v4193 = vld [vmem:[#allocation5 + $0xc] sm:$0x7]
    %v4195 = vsel %vm707, %v4193, 0
    %4197 = vmatprep.subr.mxu0 0.0
    %4198 = vmatpush1.msra.mxu0 %v4195
    %4199 = vmatprep.subr.mxu0 0.0
    %4200 = vmatpush1.msra.mxu0 0.0
    %4201 = vmatprep.subr.mxu0 0.0
    %4202 = vmatpush1.msra.mxu0 0.0
    %4203 = vmatprep.subr.mxu0 0.0
    %4204 = vmatpush1.msra.mxu0 0.0
    %4205 = vmatprep.subr.mxu0 0.0
    %4206 = vmatpush1.msra.mxu0 0.0
    %4207 = vmatprep.subr.mxu0 0.0
    %4208 = vmatpush1.msra.mxu0 0.0
    %4209 = vmatprep.subr.mxu0 0.0
    %4210 = vmatpush1.msra.mxu0 0.0
    %4211 = vmatprep.subr.mxu0 0.0
    %4212 = vmatpush1.msra.mxu0 0.0
    %4213 = vmatprep.subr.mxu0 0.0
    %4214 = vmatpush1.msra.mxu0 0.0
    %4215 = vmatprep.subr.mxu0 0.0
    %4216 = vmatpush1.msra.mxu0 0.0
    %4217 = vmatprep.subr.mxu0 0.0
    %4218 = vmatpush1.msra.mxu0 0.0
    %4219 = vmatprep.subr.mxu0 0.0
    %4220 = vmatpush1.msra.mxu0 0.0
    %4221 = vmatprep.subr.mxu0 0.0
    %4222 = vmatpush1.msra.mxu0 0.0
    %4223 = vmatprep.subr.mxu0 0.0
    %4224 = vmatpush1.msra.mxu0 0.0
    %4225 = vmatprep.subr.mxu0 0.0
    %4226 = vmatpush1.msra.mxu0 0.0
    %4227 = vmatprep.subr.mxu0 0.0
    %4228 = vmatpush1.msra.mxu0 0.0
    %4229 = vmatprep.subr.mxu0 0.0
    %4230 = vmatpush1.msra.mxu0 0.0
    %4231 = vmatprep.subr.mxu0 0.0
    %4232 = vmatpush1.msra.mxu0 0.0
    %4233 = vmatprep.subr.mxu0 0.0
    %4234 = vmatpush1.msra.mxu0 0.0
    %4235 = vmatprep.subr.mxu0 0.0
    %4236 = vmatpush1.msra.mxu0 0.0
    %4237 = vmatprep.subr.mxu0 0.0
    %4238 = vmatpush1.msra.mxu0 0.0
    %4239 = vmatprep.subr.mxu0 0.0
    %4240 = vmatpush1.msra.mxu0 0.0
    %4241 = vmatprep.subr.mxu0 0.0
    %4242 = vmatpush1.msra.mxu0 0.0
    %4243 = vmatprep.subr.mxu0 0.0
    %4244 = vmatpush1.msra.mxu0 0.0
    %4245 = vmatprep.subr.mxu0 0.0
    %4246 = vmatpush1.msra.mxu0 0.0
    %4247 = vmatprep.subr.mxu0 0.0
    %4248 = vmatpush1.msra.mxu0 0.0
    %4249 = vmatprep.subr.mxu0 0.0
    %4250 = vmatpush1.msra.mxu0 0.0
    %4251 = vmatprep.subr.mxu0 0.0
    %4252 = vmatpush1.msra.mxu0 0.0
    %4253 = vmatprep.subr.mxu0 0.0
    %4254 = vmatpush1.msra.mxu0 0.0
    %4255 = vmatprep.subr.mxu0 0.0
    %4256 = vmatpush1.msra.mxu0 0.0
    %4257 = vmatprep.subr.mxu0 0.0
    %4258 = vmatpush1.msra.mxu0 0.0
    %4259 = vmatprep.subr.mxu0 0.0
    %4260 = vmatpush1.msra.mxu0 0.0
    %4261 = vmatprep.mubr.f32.mxu0 0.0
    %4262 = vmatmul.mubr.f32.gmra.mrb[0].mxu0 %v702
    %v4263 = vpop.f32.mrb[0].mxu0
    %v4264 = vadd.f32 0.0, %v4263
    %v4265 = vpop.f32.mrb[0].mxu0
    %4266 = vmatprep.mubr.f32.mxu0 0.0
    %4267 = vmatmul.mubr.f32.gmra.mrb[0].mxu0 %v705
    %v4268 = vpop.f32.mrb[0].mxu0
    %v4269 = vadd.f32 0.0, %v4268
    %v4270 = vpop.f32.mrb[0].mxu0
    %4271 = vdwg.mxu0
    %v4272 = vmul.f32 %v4264, %v613
    %v4273 = vmul.f32 %v4269, %v614
    %v4275 = vsel %vm2923, %v4185, 0
    %v4278 = vsel %vm2923, %v4186, 0
    %v4281 = vsel %vm2923, %v4187, 0
    %v4284 = vsel %vm2923, %v4188, 0
    %v4287 = vsel %vm2923, %v4189, 0
    %v4290 = vsel %vm2923, %v4190, 0
    %v4293 = vsel %vm2923, %v4191, 0
    %v4296 = vsel %vm2923, %v4192, 0
    %v4299 = vsel %vm2980, %v4273, 0
    %4301 = vmatprep.subr.mxu0 0.0
    %4302 = vmatpush1.msra.mxu0 %v4272
    %4303 = vmatprep.subr.mxu0 0.0
    %4304 = vmatpush1.msra.mxu0 %v4299
    %4305 = vmatprep.subr.mxu0 0.0
    %4306 = vmatpush1.msra.mxu0 0.0
    %4307 = vmatprep.subr.mxu0 0.0
    %4308 = vmatpush1.msra.mxu0 0.0
    %4309 = vmatprep.subr.mxu0 0.0
    %4310 = vmatpush1.msra.mxu0 0.0
    %4311 = vmatprep.subr.mxu0 0.0
    %4312 = vmatpush1.msra.mxu0 0.0
    %4313 = vmatprep.subr.mxu0 0.0
    %4314 = vmatpush1.msra.mxu0 0.0
    %4315 = vmatprep.subr.mxu0 0.0
    %4316 = vmatpush1.msra.mxu0 0.0
    %4317 = vmatprep.subr.mxu0 0.0
    %4318 = vmatpush1.msra.mxu0 0.0
    %4319 = vmatprep.subr.mxu0 0.0
    %4320 = vmatpush1.msra.mxu0 0.0
    %4321 = vmatprep.subr.mxu0 0.0
    %4322 = vmatpush1.msra.mxu0 0.0
    %4323 = vmatprep.subr.mxu0 0.0
    %4324 = vmatpush1.msra.mxu0 0.0
    %4325 = vmatprep.subr.mxu0 0.0
    %4326 = vmatpush1.msra.mxu0 0.0
    %4327 = vmatprep.subr.mxu0 0.0
    %4328 = vmatpush1.msra.mxu0 0.0
    %4329 = vmatprep.subr.mxu0 0.0
    %4330 = vmatpush1.msra.mxu0 0.0
    %4331 = vmatprep.subr.mxu0 0.0
    %4332 = vmatpush1.msra.mxu0 0.0
    %4333 = vmatprep.subr.mxu0 0.0
    %4334 = vmatpush1.msra.mxu0 0.0
    %4335 = vmatprep.subr.mxu0 0.0
    %4336 = vmatpush1.msra.mxu0 0.0
    %4337 = vmatprep.subr.mxu0 0.0
    %4338 = vmatpush1.msra.mxu0 0.0
    %4339 = vmatprep.subr.mxu0 0.0
    %4340 = vmatpush1.msra.mxu0 0.0
    %4341 = vmatprep.subr.mxu0 0.0
    %4342 = vmatpush1.msra.mxu0 0.0
    %4343 = vmatprep.subr.mxu0 0.0
    %4344 = vmatpush1.msra.mxu0 0.0
    %4345 = vmatprep.subr.mxu0 0.0
    %4346 = vmatpush1.msra.mxu0 0.0
    %4347 = vmatprep.subr.mxu0 0.0
    %4348 = vmatpush1.msra.mxu0 0.0
    %4349 = vmatprep.subr.mxu0 0.0
    %4350 = vmatpush1.msra.mxu0 0.0
    %4351 = vmatprep.subr.mxu0 0.0
    %4352 = vmatpush1.msra.mxu0 0.0
    %4353 = vmatprep.subr.mxu0 0.0
    %4354 = vmatpush1.msra.mxu0 0.0
    %4355 = vmatprep.subr.mxu0 0.0
    %4356 = vmatpush1.msra.mxu0 0.0
    %4357 = vmatprep.subr.mxu0 0.0
    %4358 = vmatpush1.msra.mxu0 0.0
    %4359 = vmatprep.subr.mxu0 0.0
    %4360 = vmatpush1.msra.mxu0 0.0
    %4361 = vmatprep.subr.mxu0 0.0
    %4362 = vmatpush1.msra.mxu0 0.0
    %4363 = vmatprep.subr.mxu0 0.0
    %4364 = vmatpush1.msra.mxu0 0.0
    %4365 = vmatprep.mubr.f32.mxu0 0.0
    %4366 = vmatmul.mubr.f32.gmra.mrb[0].mxu0 %v4275
    %v4367 = vpop.f32.mrb[0].mxu0
    %v4368 = vadd.f32 0.0, %v4367
    %v4369 = vpop.f32.mrb[0].mxu0
    %4370 = vmatprep.mubr.f32.mxu0 0.0
    %4371 = vmatmul.mubr.f32.gmra.mrb[0].mxu0 %v4278
    %v4372 = vpop.f32.mrb[0].mxu0
    %v4373 = vadd.f32 0.0, %v4372
    %v4374 = vpop.f32.mrb[0].mxu0
    %4375 = vmatprep.mubr.f32.mxu0 0.0
    %4376 = vmatmul.mubr.f32.gmra.mrb[0].mxu0 %v4281
    %v4377 = vpop.f32.mrb[0].mxu0
    %v4378 = vadd.f32 0.0, %v4377
    %v4379 = vpop.f32.mrb[0].mxu0
    %4380 = vmatprep.mubr.f32.mxu0 0.0
    %4381 = vmatmul.mubr.f32.gmra.mrb[0].mxu0 %v4284
    %v4382 = vpop.f32.mrb[0].mxu0
    %v4383 = vadd.f32 0.0, %v4382
    %v4384 = vpop.f32.mrb[0].mxu0
    %4385 = vmatprep.mubr.f32.mxu0 0.0
    %4386 = vmatmul.mubr.f32.gmra.mrb[0].mxu0 %v4287
    %v4387 = vpop.f32.mrb[0].mxu0
    %v4388 = vadd.f32 0.0, %v4387
    %v4389 = vpop.f32.mrb[0].mxu0
    %4390 = vmatprep.mubr.f32.mxu0 0.0
    %4391 = vmatmul.mubr.f32.gmra.mrb[0].mxu0 %v4290
    %v4392 = vpop.f32.mrb[0].mxu0
    %v4393 = vadd.f32 0.0, %v4392
    %v4394 = vpop.f32.mrb[0].mxu0
    %4395 = vmatprep.mubr.f32.mxu0 0.0
    %4396 = vmatmul.mubr.f32.gmra.mrb[0].mxu0 %v4293
    %v4397 = vpop.f32.mrb[0].mxu0
    %v4398 = vadd.f32 0.0, %v4397
    %v4399 = vpop.f32.mrb[0].mxu0
    %4400 = vmatprep.mubr.f32.mxu0 0.0
    %4401 = vmatmul.mubr.f32.gmra.mrb[0].mxu0 %v4296
    %v4402 = vpop.f32.mrb[0].mxu0
    %v4403 = vadd.f32 0.0, %v4402
    %v4404 = vpop.f32.mrb[0].mxu0
    %4405 = vdwg.mxu0
    %v4406 = vadd.f32 %v4169, %v4368
    %v4407 = vadd.f32 %v4170, %v4373
    %v4408 = vadd.f32 %v4171, %v4378
    %v4409 = vadd.f32 %v4172, %v4383
    %v4410 = vadd.f32 %v4173, %v4388
    %v4411 = vadd.f32 %v4174, %v4393
    %v4412 = vadd.f32 %v4175, %v4398
    %v4413 = vadd.f32 %v4176, %v4403
    %v4414 = vld [vmem:[#allocation3 + $0x11] sm:$0xff]
    %v4415 = vld [vmem:[#allocation3 + $0x19] sm:$0xff]
    %v4416 = vld [vmem:[#allocation3 + $0x21] sm:$0xff]
    %v4417 = vld [vmem:[#allocation3 + $0x29] sm:$0xff]
    %v4418 = vld [vmem:[#allocation3 + $0x31] sm:$0xff]
    %v4419 = vld [vmem:[#allocation3 + $0x39] sm:$0xff]
    %v4420 = vld [vmem:[#allocation3 + $0x41] sm:$0xff]
    %v4421 = vld [vmem:[#allocation3 + $0x49] sm:$0xff]
    %v4422 = vmul.f32 %v4414, %v3681
    %v4423 = vmul.f32 %v4415, %v3685
    %v4424 = vmul.f32 %v4416, %v3689
    %v4425 = vmul.f32 %v4417, %v3693
    %v4426 = vmul.f32 %v4418, %v3697
    %v4427 = vmul.f32 %v4419, %v3701
    %v4428 = vmul.f32 %v4420, %v3705
    %v4429 = vmul.f32 %v4421, %v3709
    %v4430 = vld [vmem:[#allocation5 + $0x9] sm:$0x7]
    %v4432 = vsel %vm707, %v4430, 0
    %4434 = vmatprep.subr.mxu0 0.0
    %4435 = vmatpush1.msra.mxu0 %v4432
    %4436 = vmatprep.subr.mxu0 0.0
    %4437 = vmatpush1.msra.mxu0 0.0
    %4438 = vmatprep.subr.mxu0 0.0
    %4439 = vmatpush1.msra.mxu0 0.0
    %4440 = vmatprep.subr.mxu0 0.0
    %4441 = vmatpush1.msra.mxu0 0.0
    %4442 = vmatprep.subr.mxu0 0.0
    %4443 = vmatpush1.msra.mxu0 0.0
    %4444 = vmatprep.subr.mxu0 0.0
    %4445 = vmatpush1.msra.mxu0 0.0
    %4446 = vmatprep.subr.mxu0 0.0
    %4447 = vmatpush1.msra.mxu0 0.0
    %4448 = vmatprep.subr.mxu0 0.0
    %4449 = vmatpush1.msra.mxu0 0.0
    %4450 = vmatprep.subr.mxu0 0.0
    %4451 = vmatpush1.msra.mxu0 0.0
    %4452 = vmatprep.subr.mxu0 0.0
    %4453 = vmatpush1.msra.mxu0 0.0
    %4454 = vmatprep.subr.mxu0 0.0
    %4455 = vmatpush1.msra.mxu0 0.0
    %4456 = vmatprep.subr.mxu0 0.0
    %4457 = vmatpush1.msra.mxu0 0.0
    %4458 = vmatprep.subr.mxu0 0.0
    %4459 = vmatpush1.msra.mxu0 0.0
    %4460 = vmatprep.subr.mxu0 0.0
    %4461 = vmatpush1.msra.mxu0 0.0
    %4462 = vmatprep.subr.mxu0 0.0
    %4463 = vmatpush1.msra.mxu0 0.0
    %4464 = vmatprep.subr.mxu0 0.0
    %4465 = vmatpush1.msra.mxu0 0.0
    %4466 = vmatprep.subr.mxu0 0.0
    %4467 = vmatpush1.msra.mxu0 0.0
    %4468 = vmatprep.subr.mxu0 0.0
    %4469 = vmatpush1.msra.mxu0 0.0
    %4470 = vmatprep.subr.mxu0 0.0
    %4471 = vmatpush1.msra.mxu0 0.0
    %4472 = vmatprep.subr.mxu0 0.0
    %4473 = vmatpush1.msra.mxu0 0.0
    %4474 = vmatprep.subr.mxu0 0.0
    %4475 = vmatpush1.msra.mxu0 0.0
    %4476 = vmatprep.subr.mxu0 0.0
    %4477 = vmatpush1.msra.mxu0 0.0
    %4478 = vmatprep.subr.mxu0 0.0
    %4479 = vmatpush1.msra.mxu0 0.0
    %4480 = vmatprep.subr.mxu0 0.0
    %4481 = vmatpush1.msra.mxu0 0.0
    %4482 = vmatprep.subr.mxu0 0.0
    %4483 = vmatpush1.msra.mxu0 0.0
    %4484 = vmatprep.subr.mxu0 0.0
    %4485 = vmatpush1.msra.mxu0 0.0
    %4486 = vmatprep.subr.mxu0 0.0
    %4487 = vmatpush1.msra.mxu0 0.0
    %4488 = vmatprep.subr.mxu0 0.0
    %4489 = vmatpush1.msra.mxu0 0.0
    %4490 = vmatprep.subr.mxu0 0.0
    %4491 = vmatpush1.msra.mxu0 0.0
    %4492 = vmatprep.subr.mxu0 0.0
    %4493 = vmatpush1.msra.mxu0 0.0
    %4494 = vmatprep.subr.mxu0 0.0
    %4495 = vmatpush1.msra.mxu0 0.0
    %4496 = vmatprep.subr.mxu0 0.0
    %4497 = vmatpush1.msra.mxu0 0.0
    %4498 = vmatprep.mubr.f32.mxu0 0.0
    %4499 = vmatmul.mubr.f32.gmra.mrb[0].mxu0 %v702
    %v4500 = vpop.f32.mrb[0].mxu0
    %v4501 = vadd.f32 0.0, %v4500
    %v4502 = vpop.f32.mrb[0].mxu0
    %4503 = vmatprep.mubr.f32.mxu0 0.0
    %4504 = vmatmul.mubr.f32.gmra.mrb[0].mxu0 %v705
    %v4505 = vpop.f32.mrb[0].mxu0
    %v4506 = vadd.f32 0.0, %v4505
    %v4507 = vpop.f32.mrb[0].mxu0
    %4508 = vdwg.mxu0
    %v4509 = vmul.f32 %v4501, %v613
    %v4510 = vmul.f32 %v4506, %v614
    %v4512 = vsel %vm2923, %v4422, 0
    %v4515 = vsel %vm2923, %v4423, 0
    %v4518 = vsel %vm2923, %v4424, 0
    %v4521 = vsel %vm2923, %v4425, 0
    %v4524 = vsel %vm2923, %v4426, 0
    %v4527 = vsel %vm2923, %v4427, 0
    %v4530 = vsel %vm2923, %v4428, 0
    %v4533 = vsel %vm2923, %v4429, 0
    %v4536 = vsel %vm2980, %v4510, 0
    %4538 = vmatprep.subr.mxu0 0.0
    %4539 = vmatpush1.msra.mxu0 %v4509
    %4540 = vmatprep.subr.mxu0 0.0
    %4541 = vmatpush1.msra.mxu0 %v4536
    %4542 = vmatprep.subr.mxu0 0.0
    %4543 = vmatpush1.msra.mxu0 0.0
    %4544 = vmatprep.subr.mxu0 0.0
    %4545 = vmatpush1.msra.mxu0 0.0
    %4546 = vmatprep.subr.mxu0 0.0
    %4547 = vmatpush1.msra.mxu0 0.0
    %4548 = vmatprep.subr.mxu0 0.0
    %4549 = vmatpush1.msra.mxu0 0.0
    %4550 = vmatprep.subr.mxu0 0.0
    %4551 = vmatpush1.msra.mxu0 0.0
    %4552 = vmatprep.subr.mxu0 0.0
    %4553 = vmatpush1.msra.mxu0 0.0
    %4554 = vmatprep.subr.mxu0 0.0
    %4555 = vmatpush1.msra.mxu0 0.0
    %4556 = vmatprep.subr.mxu0 0.0
    %4557 = vmatpush1.msra.mxu0 0.0
    %4558 = vmatprep.subr.mxu0 0.0
    %4559 = vmatpush1.msra.mxu0 0.0
    %4560 = vmatprep.subr.mxu0 0.0
    %4561 = vmatpush1.msra.mxu0 0.0
    %4562 = vmatprep.subr.mxu0 0.0
    %4563 = vmatpush1.msra.mxu0 0.0
    %4564 = vmatprep.subr.mxu0 0.0
    %4565 = vmatpush1.msra.mxu0 0.0
    %4566 = vmatprep.subr.mxu0 0.0
    %4567 = vmatpush1.msra.mxu0 0.0
    %4568 = vmatprep.subr.mxu0 0.0
    %4569 = vmatpush1.msra.mxu0 0.0
    %4570 = vmatprep.subr.mxu0 0.0
    %4571 = vmatpush1.msra.mxu0 0.0
    %4572 = vmatprep.subr.mxu0 0.0
    %4573 = vmatpush1.msra.mxu0 0.0
    %4574 = vmatprep.subr.mxu0 0.0
    %4575 = vmatpush1.msra.mxu0 0.0
    %4576 = vmatprep.subr.mxu0 0.0
    %4577 = vmatpush1.msra.mxu0 0.0
    %4578 = vmatprep.subr.mxu0 0.0
    %4579 = vmatpush1.msra.mxu0 0.0
    %4580 = vmatprep.subr.mxu0 0.0
    %4581 = vmatpush1.msra.mxu0 0.0
    %4582 = vmatprep.subr.mxu0 0.0
    %4583 = vmatpush1.msra.mxu0 0.0
    %4584 = vmatprep.subr.mxu0 0.0
    %4585 = vmatpush1.msra.mxu0 0.0
    %4586 = vmatprep.subr.mxu0 0.0
    %4587 = vmatpush1.msra.mxu0 0.0
    %4588 = vmatprep.subr.mxu0 0.0
    %4589 = vmatpush1.msra.mxu0 0.0
    %4590 = vmatprep.subr.mxu0 0.0
    %4591 = vmatpush1.msra.mxu0 0.0
    %4592 = vmatprep.subr.mxu0 0.0
    %4593 = vmatpush1.msra.mxu0 0.0
    %4594 = vmatprep.subr.mxu0 0.0
    %4595 = vmatpush1.msra.mxu0 0.0
    %4596 = vmatprep.subr.mxu0 0.0
    %4597 = vmatpush1.msra.mxu0 0.0
    %4598 = vmatprep.subr.mxu0 0.0
    %4599 = vmatpush1.msra.mxu0 0.0
    %4600 = vmatprep.subr.mxu0 0.0
    %4601 = vmatpush1.msra.mxu0 0.0
    %4602 = vmatprep.mubr.f32.mxu0 0.0
    %4603 = vmatmul.mubr.f32.gmra.mrb[0].mxu0 %v4512
    %v4604 = vpop.f32.mrb[0].mxu0
    %v4605 = vadd.f32 0.0, %v4604
    %v4606 = vpop.f32.mrb[0].mxu0
    %4607 = vmatprep.mubr.f32.mxu0 0.0
    %4608 = vmatmul.mubr.f32.gmra.mrb[0].mxu0 %v4515
    %v4609 = vpop.f32.mrb[0].mxu0
    %v4610 = vadd.f32 0.0, %v4609
    %v4611 = vpop.f32.mrb[0].mxu0
    %4612 = vmatprep.mubr.f32.mxu0 0.0
    %4613 = vmatmul.mubr.f32.gmra.mrb[0].mxu0 %v4518
    %v4614 = vpop.f32.mrb[0].mxu0
    %v4615 = vadd.f32 0.0, %v4614
    %v4616 = vpop.f32.mrb[0].mxu0
    %4617 = vmatprep.mubr.f32.mxu0 0.0
    %4618 = vmatmul.mubr.f32.gmra.mrb[0].mxu0 %v4521
    %v4619 = vpop.f32.mrb[0].mxu0
    %v4620 = vadd.f32 0.0, %v4619
    %v4621 = vpop.f32.mrb[0].mxu0
    %4622 = vmatprep.mubr.f32.mxu0 0.0
    %4623 = vmatmul.mubr.f32.gmra.mrb[0].mxu0 %v4524
    %v4624 = vpop.f32.mrb[0].mxu0
    %v4625 = vadd.f32 0.0, %v4624
    %v4626 = vpop.f32.mrb[0].mxu0
    %4627 = vmatprep.mubr.f32.mxu0 0.0
    %4628 = vmatmul.mubr.f32.gmra.mrb[0].mxu0 %v4527
    %v4629 = vpop.f32.mrb[0].mxu0
    %v4630 = vadd.f32 0.0, %v4629
    %v4631 = vpop.f32.mrb[0].mxu0
    %4632 = vmatprep.mubr.f32.mxu0 0.0
    %4633 = vmatmul.mubr.f32.gmra.mrb[0].mxu0 %v4530
    %v4634 = vpop.f32.mrb[0].mxu0
    %v4635 = vadd.f32 0.0, %v4634
    %v4636 = vpop.f32.mrb[0].mxu0
    %4637 = vmatprep.mubr.f32.mxu0 0.0
    %4638 = vmatmul.mubr.f32.gmra.mrb[0].mxu0 %v4533
    %v4639 = vpop.f32.mrb[0].mxu0
    %v4640 = vadd.f32 0.0, %v4639
    %v4641 = vpop.f32.mrb[0].mxu0
    %4642 = vdwg.mxu0
    %v4643 = vadd.f32 %v4406, %v4605
    %v4644 = vadd.f32 %v4407, %v4610
    %v4645 = vadd.f32 %v4408, %v4615
    %v4646 = vadd.f32 %v4409, %v4620
    %v4647 = vadd.f32 %v4410, %v4625
    %v4648 = vadd.f32 %v4411, %v4630
    %v4649 = vadd.f32 %v4412, %v4635
    %v4650 = vadd.f32 %v4413, %v4640
    %v4651 = vld [vmem:[#allocation3 + $0x17] sm:$0xff]
    %v4652 = vld [vmem:[#allocation3 + $0x1f] sm:$0xff]
    %v4653 = vld [vmem:[#allocation3 + $0x27] sm:$0xff]
    %v4654 = vld [vmem:[#allocation3 + $0x2f] sm:$0xff]
    %v4655 = vld [vmem:[#allocation3 + $0x37] sm:$0xff]
    %v4656 = vld [vmem:[#allocation3 + $0x3f] sm:$0xff]
    %v4657 = vld [vmem:[#allocation3 + $0x47] sm:$0xff]
    %v4658 = vld [vmem:[#allocation3 + $0x4f] sm:$0xff]
    %v4659 = vmul.f32 %v4651, %v3152
    %v4660 = vmul.f32 %v4652, %v3157
    %v4661 = vmul.f32 %v4653, %v3162
    %v4662 = vmul.f32 %v4654, %v3167
    %v4663 = vmul.f32 %v4655, %v3172
    %v4664 = vmul.f32 %v4656, %v3177
    %v4665 = vmul.f32 %v4657, %v3182
    %v4666 = vmul.f32 %v4658, %v3187
    %v4667 = vld [vmem:[#allocation5 + $0x6] sm:$0x7]
    %v4669 = vsel %vm707, %v4667, 0
    %4671 = vmatprep.subr.mxu0 0.0
    %4672 = vmatpush1.msra.mxu0 %v4669
    %4673 = vmatprep.subr.mxu0 0.0
    %4674 = vmatpush1.msra.mxu0 0.0
    %4675 = vmatprep.subr.mxu0 0.0
    %4676 = vmatpush1.msra.mxu0 0.0
    %4677 = vmatprep.subr.mxu0 0.0
    %4678 = vmatpush1.msra.mxu0 0.0
    %4679 = vmatprep.subr.mxu0 0.0
    %4680 = vmatpush1.msra.mxu0 0.0
    %4681 = vmatprep.subr.mxu0 0.0
    %4682 = vmatpush1.msra.mxu0 0.0
    %4683 = vmatprep.subr.mxu0 0.0
    %4684 = vmatpush1.msra.mxu0 0.0
    %4685 = vmatprep.subr.mxu0 0.0
    %4686 = vmatpush1.msra.mxu0 0.0
    %4687 = vmatprep.subr.mxu0 0.0
    %4688 = vmatpush1.msra.mxu0 0.0
    %4689 = vmatprep.subr.mxu0 0.0
    %4690 = vmatpush1.msra.mxu0 0.0
    %4691 = vmatprep.subr.mxu0 0.0
    %4692 = vmatpush1.msra.mxu0 0.0
    %4693 = vmatprep.subr.mxu0 0.0
    %4694 = vmatpush1.msra.mxu0 0.0
    %4695 = vmatprep.subr.mxu0 0.0
    %4696 = vmatpush1.msra.mxu0 0.0
    %4697 = vmatprep.subr.mxu0 0.0
    %4698 = vmatpush1.msra.mxu0 0.0
    %4699 = vmatprep.subr.mxu0 0.0
    %4700 = vmatpush1.msra.mxu0 0.0
    %4701 = vmatprep.subr.mxu0 0.0
    %4702 = vmatpush1.msra.mxu0 0.0
    %4703 = vmatprep.subr.mxu0 0.0
    %4704 = vmatpush1.msra.mxu0 0.0
    %4705 = vmatprep.subr.mxu0 0.0
    %4706 = vmatpush1.msra.mxu0 0.0
    %4707 = vmatprep.subr.mxu0 0.0
    %4708 = vmatpush1.msra.mxu0 0.0
    %4709 = vmatprep.subr.mxu0 0.0
    %4710 = vmatpush1.msra.mxu0 0.0
    %4711 = vmatprep.subr.mxu0 0.0
    %4712 = vmatpush1.msra.mxu0 0.0
    %4713 = vmatprep.subr.mxu0 0.0
    %4714 = vmatpush1.msra.mxu0 0.0
    %4715 = vmatprep.subr.mxu0 0.0
    %4716 = vmatpush1.msra.mxu0 0.0
    %4717 = vmatprep.subr.mxu0 0.0
    %4718 = vmatpush1.msra.mxu0 0.0
    %4719 = vmatprep.subr.mxu0 0.0
    %4720 = vmatpush1.msra.mxu0 0.0
    %4721 = vmatprep.subr.mxu0 0.0
    %4722 = vmatpush1.msra.mxu0 0.0
    %4723 = vmatprep.subr.mxu0 0.0
    %4724 = vmatpush1.msra.mxu0 0.0
    %4725 = vmatprep.subr.mxu0 0.0
    %4726 = vmatpush1.msra.mxu0 0.0
    %4727 = vmatprep.subr.mxu0 0.0
    %4728 = vmatpush1.msra.mxu0 0.0
    %4729 = vmatprep.subr.mxu0 0.0
    %4730 = vmatpush1.msra.mxu0 0.0
    %4731 = vmatprep.subr.mxu0 0.0
    %4732 = vmatpush1.msra.mxu0 0.0
    %4733 = vmatprep.subr.mxu0 0.0
    %4734 = vmatpush1.msra.mxu0 0.0
    %4735 = vmatprep.mubr.f32.mxu0 0.0
    %4736 = vmatmul.mubr.f32.gmra.mrb[0].mxu0 %v702
    %v4737 = vpop.f32.mrb[0].mxu0
    %v4738 = vadd.f32 0.0, %v4737
    %v4739 = vpop.f32.mrb[0].mxu0
    %4740 = vmatprep.mubr.f32.mxu0 0.0
    %4741 = vmatmul.mubr.f32.gmra.mrb[0].mxu0 %v705
    %v4742 = vpop.f32.mrb[0].mxu0
    %v4743 = vadd.f32 0.0, %v4742
    %v4744 = vpop.f32.mrb[0].mxu0
    %4745 = vdwg.mxu0
    %v4746 = vmul.f32 %v4738, %v613
    %v4747 = vmul.f32 %v4743, %v614
    %v4749 = vsel %vm2923, %v4659, 0
    %v4752 = vsel %vm2923, %v4660, 0
    %v4755 = vsel %vm2923, %v4661, 0
    %v4758 = vsel %vm2923, %v4662, 0
    %v4761 = vsel %vm2923, %v4663, 0
    %v4764 = vsel %vm2923, %v4664, 0
    %v4767 = vsel %vm2923, %v4665, 0
    %v4770 = vsel %vm2923, %v4666, 0
    %v4773 = vsel %vm2980, %v4747, 0
    %4775 = vmatprep.subr.mxu0 0.0
    %4776 = vmatpush1.msra.mxu0 %v4746
    %4777 = vmatprep.subr.mxu0 0.0
    %4778 = vmatpush1.msra.mxu0 %v4773
    %4779 = vmatprep.subr.mxu0 0.0
    %4780 = vmatpush1.msra.mxu0 0.0
    %4781 = vmatprep.subr.mxu0 0.0
    %4782 = vmatpush1.msra.mxu0 0.0
    %4783 = vmatprep.subr.mxu0 0.0
    %4784 = vmatpush1.msra.mxu0 0.0
    %4785 = vmatprep.subr.mxu0 0.0
    %4786 = vmatpush1.msra.mxu0 0.0
    %4787 = vmatprep.subr.mxu0 0.0
    %4788 = vmatpush1.msra.mxu0 0.0
    %4789 = vmatprep.subr.mxu0 0.0
    %4790 = vmatpush1.msra.mxu0 0.0
    %4791 = vmatprep.subr.mxu0 0.0
    %4792 = vmatpush1.msra.mxu0 0.0
    %4793 = vmatprep.subr.mxu0 0.0
    %4794 = vmatpush1.msra.mxu0 0.0
    %4795 = vmatprep.subr.mxu0 0.0
    %4796 = vmatpush1.msra.mxu0 0.0
    %4797 = vmatprep.subr.mxu0 0.0
    %4798 = vmatpush1.msra.mxu0 0.0
    %4799 = vmatprep.subr.mxu0 0.0
    %4800 = vmatpush1.msra.mxu0 0.0
    %4801 = vmatprep.subr.mxu0 0.0
    %4802 = vmatpush1.msra.mxu0 0.0
    %4803 = vmatprep.subr.mxu0 0.0
    %4804 = vmatpush1.msra.mxu0 0.0
    %4805 = vmatprep.subr.mxu0 0.0
    %4806 = vmatpush1.msra.mxu0 0.0
    %4807 = vmatprep.subr.mxu0 0.0
    %4808 = vmatpush1.msra.mxu0 0.0
    %4809 = vmatprep.subr.mxu0 0.0
    %4810 = vmatpush1.msra.mxu0 0.0
    %4811 = vmatprep.subr.mxu0 0.0
    %4812 = vmatpush1.msra.mxu0 0.0
    %4813 = vmatprep.subr.mxu0 0.0
    %4814 = vmatpush1.msra.mxu0 0.0
    %4815 = vmatprep.subr.mxu0 0.0
    %4816 = vmatpush1.msra.mxu0 0.0
    %4817 = vmatprep.subr.mxu0 0.0
    %4818 = vmatpush1.msra.mxu0 0.0
    %4819 = vmatprep.subr.mxu0 0.0
    %4820 = vmatpush1.msra.mxu0 0.0
    %4821 = vmatprep.subr.mxu0 0.0
    %4822 = vmatpush1.msra.mxu0 0.0
    %4823 = vmatprep.subr.mxu0 0.0
    %4824 = vmatpush1.msra.mxu0 0.0
    %4825 = vmatprep.subr.mxu0 0.0
    %4826 = vmatpush1.msra.mxu0 0.0
    %4827 = vmatprep.subr.mxu0 0.0
    %4828 = vmatpush1.msra.mxu0 0.0
    %4829 = vmatprep.subr.mxu0 0.0
    %4830 = vmatpush1.msra.mxu0 0.0
    %4831 = vmatprep.subr.mxu0 0.0
    %4832 = vmatpush1.msra.mxu0 0.0
    %4833 = vmatprep.subr.mxu0 0.0
    %4834 = vmatpush1.msra.mxu0 0.0
    %4835 = vmatprep.subr.mxu0 0.0
    %4836 = vmatpush1.msra.mxu0 0.0
    %4837 = vmatprep.subr.mxu0 0.0
    %4838 = vmatpush1.msra.mxu0 0.0
    %4839 = vmatprep.mubr.f32.mxu0 0.0
    %4840 = vmatmul.mubr.f32.gmra.mrb[0].mxu0 %v4749
    %v4841 = vpop.f32.mrb[0].mxu0
    %v4842 = vadd.f32 0.0, %v4841
    %v4843 = vpop.f32.mrb[0].mxu0
    %4844 = vmatprep.mubr.f32.mxu0 0.0
    %4845 = vmatmul.mubr.f32.gmra.mrb[0].mxu0 %v4752
    %v4846 = vpop.f32.mrb[0].mxu0
    %v4847 = vadd.f32 0.0, %v4846
    %v4848 = vpop.f32.mrb[0].mxu0
    %4849 = vmatprep.mubr.f32.mxu0 0.0
    %4850 = vmatmul.mubr.f32.gmra.mrb[0].mxu0 %v4755
    %v4851 = vpop.f32.mrb[0].mxu0
    %v4852 = vadd.f32 0.0, %v4851
    %v4853 = vpop.f32.mrb[0].mxu0
    %4854 = vmatprep.mubr.f32.mxu0 0.0
    %4855 = vmatmul.mubr.f32.gmra.mrb[0].mxu0 %v4758
    %v4856 = vpop.f32.mrb[0].mxu0
    %v4857 = vadd.f32 0.0, %v4856
    %v4858 = vpop.f32.mrb[0].mxu0
    %4859 = vmatprep.mubr.f32.mxu0 0.0
    %4860 = vmatmul.mubr.f32.gmra.mrb[0].mxu0 %v4761
    %v4861 = vpop.f32.mrb[0].mxu0
    %v4862 = vadd.f32 0.0, %v4861
    %v4863 = vpop.f32.mrb[0].mxu0
    %4864 = vmatprep.mubr.f32.mxu0 0.0
    %4865 = vmatmul.mubr.f32.gmra.mrb[0].mxu0 %v4764
    %v4866 = vpop.f32.mrb[0].mxu0
    %v4867 = vadd.f32 0.0, %v4866
    %v4868 = vpop.f32.mrb[0].mxu0
    %4869 = vmatprep.mubr.f32.mxu0 0.0
    %4870 = vmatmul.mubr.f32.gmra.mrb[0].mxu0 %v4767
    %v4871 = vpop.f32.mrb[0].mxu0
    %v4872 = vadd.f32 0.0, %v4871
    %v4873 = vpop.f32.mrb[0].mxu0
    %4874 = vmatprep.mubr.f32.mxu0 0.0
    %4875 = vmatmul.mubr.f32.gmra.mrb[0].mxu0 %v4770
    %v4876 = vpop.f32.mrb[0].mxu0
    %v4877 = vadd.f32 0.0, %v4876
    %v4878 = vpop.f32.mrb[0].mxu0
    %4879 = vdwg.mxu0
    %v4880 = vadd.f32 %v4643, %v4842
    %v4881 = vadd.f32 %v4644, %v4847
    %v4882 = vadd.f32 %v4645, %v4852
    %v4883 = vadd.f32 %v4646, %v4857
    %v4884 = vadd.f32 %v4647, %v4862
    %v4885 = vadd.f32 %v4648, %v4867
    %v4886 = vadd.f32 %v4649, %v4872
    %v4887 = vadd.f32 %v4650, %v4877
    %v4888 = vld [vmem:[#allocation3 + $0x18] sm:$0xff]
    %v4889 = vld [vmem:[#allocation3 + $0x20] sm:$0xff]
    %v4890 = vld [vmem:[#allocation3 + $0x28] sm:$0xff]
    %v4891 = vld [vmem:[#allocation3 + $0x30] sm:$0xff]
    %v4892 = vld [vmem:[#allocation3 + $0x38] sm:$0xff]
    %v4893 = vld [vmem:[#allocation3 + $0x40] sm:$0xff]
    %v4894 = vld [vmem:[#allocation3 + $0x48] sm:$0xff]
    %v4895 = vld [vmem:[#allocation3 + $0x50] sm:$0xff]
    %v4896 = vmul.f32 %v4888, %v3288
    %v4897 = vmul.f32 %v4889, %v3292
    %v4898 = vmul.f32 %v4890, %v3296
    %v4899 = vmul.f32 %v4891, %v3300
    %v4900 = vmul.f32 %v4892, %v3304
    %v4901 = vmul.f32 %v4893, %v3308
    %v4902 = vmul.f32 %v4894, %v3312
    %v4903 = vmul.f32 %v4895, %v3316
    %v4904 = vld [vmem:[#allocation5 + $0x3] sm:$0x7]
    %v4906 = vsel %vm707, %v4904, 0
    %4908 = vmatprep.subr.mxu0 0.0
    %4909 = vmatpush1.msra.mxu0 %v4906
    %4910 = vmatprep.subr.mxu0 0.0
    %4911 = vmatpush1.msra.mxu0 0.0
    %4912 = vmatprep.subr.mxu0 0.0
    %4913 = vmatpush1.msra.mxu0 0.0
    %4914 = vmatprep.subr.mxu0 0.0
    %4915 = vmatpush1.msra.mxu0 0.0
    %4916 = vmatprep.subr.mxu0 0.0
    %4917 = vmatpush1.msra.mxu0 0.0
    %4918 = vmatprep.subr.mxu0 0.0
    %4919 = vmatpush1.msra.mxu0 0.0
    %4920 = vmatprep.subr.mxu0 0.0
    %4921 = vmatpush1.msra.mxu0 0.0
    %4922 = vmatprep.subr.mxu0 0.0
    %4923 = vmatpush1.msra.mxu0 0.0
    %4924 = vmatprep.subr.mxu0 0.0
    %4925 = vmatpush1.msra.mxu0 0.0
    %4926 = vmatprep.subr.mxu0 0.0
    %4927 = vmatpush1.msra.mxu0 0.0
    %4928 = vmatprep.subr.mxu0 0.0
    %4929 = vmatpush1.msra.mxu0 0.0
    %4930 = vmatprep.subr.mxu0 0.0
    %4931 = vmatpush1.msra.mxu0 0.0
    %4932 = vmatprep.subr.mxu0 0.0
    %4933 = vmatpush1.msra.mxu0 0.0
    %4934 = vmatprep.subr.mxu0 0.0
    %4935 = vmatpush1.msra.mxu0 0.0
    %4936 = vmatprep.subr.mxu0 0.0
    %4937 = vmatpush1.msra.mxu0 0.0
    %4938 = vmatprep.subr.mxu0 0.0
    %4939 = vmatpush1.msra.mxu0 0.0
    %4940 = vmatprep.subr.mxu0 0.0
    %4941 = vmatpush1.msra.mxu0 0.0
    %4942 = vmatprep.subr.mxu0 0.0
    %4943 = vmatpush1.msra.mxu0 0.0
    %4944 = vmatprep.subr.mxu0 0.0
    %4945 = vmatpush1.msra.mxu0 0.0
    %4946 = vmatprep.subr.mxu0 0.0
    %4947 = vmatpush1.msra.mxu0 0.0
    %4948 = vmatprep.subr.mxu0 0.0
    %4949 = vmatpush1.msra.mxu0 0.0
    %4950 = vmatprep.subr.mxu0 0.0
    %4951 = vmatpush1.msra.mxu0 0.0
    %4952 = vmatprep.subr.mxu0 0.0
    %4953 = vmatpush1.msra.mxu0 0.0
    %4954 = vmatprep.subr.mxu0 0.0
    %4955 = vmatpush1.msra.mxu0 0.0
    %4956 = vmatprep.subr.mxu0 0.0
    %4957 = vmatpush1.msra.mxu0 0.0
    %4958 = vmatprep.subr.mxu0 0.0
    %4959 = vmatpush1.msra.mxu0 0.0
    %4960 = vmatprep.subr.mxu0 0.0
    %4961 = vmatpush1.msra.mxu0 0.0
    %4962 = vmatprep.subr.mxu0 0.0
    %4963 = vmatpush1.msra.mxu0 0.0
    %4964 = vmatprep.subr.mxu0 0.0
    %4965 = vmatpush1.msra.mxu0 0.0
    %4966 = vmatprep.subr.mxu0 0.0
    %4967 = vmatpush1.msra.mxu0 0.0
    %4968 = vmatprep.subr.mxu0 0.0
    %4969 = vmatpush1.msra.mxu0 0.0
    %4970 = vmatprep.subr.mxu0 0.0
    %4971 = vmatpush1.msra.mxu0 0.0
    %4972 = vmatprep.mubr.f32.mxu0 0.0
    %4973 = vmatmul.mubr.f32.gmra.mrb[0].mxu0 %v702
    %v4974 = vpop.f32.mrb[0].mxu0
    %v4975 = vadd.f32 0.0, %v4974
    %v4976 = vpop.f32.mrb[0].mxu0
    %4977 = vmatprep.mubr.f32.mxu0 0.0
    %4978 = vmatmul.mubr.f32.gmra.mrb[0].mxu0 %v705
    %v4979 = vpop.f32.mrb[0].mxu0
    %v4980 = vadd.f32 0.0, %v4979
    %v4981 = vpop.f32.mrb[0].mxu0
    %4982 = vdwg.mxu0
    %v4983 = vmul.f32 %v4975, %v613
    %v4984 = vmul.f32 %v4980, %v614
    %v4986 = vsel %vm2923, %v4896, 0
    %v4989 = vsel %vm2923, %v4897, 0
    %v4992 = vsel %vm2923, %v4898, 0
    %v4995 = vsel %vm2923, %v4899, 0
    %v4998 = vsel %vm2923, %v4900, 0
    %v5001 = vsel %vm2923, %v4901, 0
    %v5004 = vsel %vm2923, %v4902, 0
    %v5007 = vsel %vm2923, %v4903, 0
    %v5010 = vsel %vm2980, %v4984, 0
    %5012 = vmatprep.subr.mxu0 0.0
    %5013 = vmatpush1.msra.mxu0 %v4983
    %5014 = vmatprep.subr.mxu0 0.0
    %5015 = vmatpush1.msra.mxu0 %v5010
    %5016 = vmatprep.subr.mxu0 0.0
    %5017 = vmatpush1.msra.mxu0 0.0
    %5018 = vmatprep.subr.mxu0 0.0
    %5019 = vmatpush1.msra.mxu0 0.0
    %5020 = vmatprep.subr.mxu0 0.0
    %5021 = vmatpush1.msra.mxu0 0.0
    %5022 = vmatprep.subr.mxu0 0.0
    %5023 = vmatpush1.msra.mxu0 0.0
    %5024 = vmatprep.subr.mxu0 0.0
    %5025 = vmatpush1.msra.mxu0 0.0
    %5026 = vmatprep.subr.mxu0 0.0
    %5027 = vmatpush1.msra.mxu0 0.0
    %5028 = vmatprep.subr.mxu0 0.0
    %5029 = vmatpush1.msra.mxu0 0.0
    %5030 = vmatprep.subr.mxu0 0.0
    %5031 = vmatpush1.msra.mxu0 0.0
    %5032 = vmatprep.subr.mxu0 0.0
    %5033 = vmatpush1.msra.mxu0 0.0
    %5034 = vmatprep.subr.mxu0 0.0
    %5035 = vmatpush1.msra.mxu0 0.0
    %5036 = vmatprep.subr.mxu0 0.0
    %5037 = vmatpush1.msra.mxu0 0.0
    %5038 = vmatprep.subr.mxu0 0.0
    %5039 = vmatpush1.msra.mxu0 0.0
    %5040 = vmatprep.subr.mxu0 0.0
    %5041 = vmatpush1.msra.mxu0 0.0
    %5042 = vmatprep.subr.mxu0 0.0
    %5043 = vmatpush1.msra.mxu0 0.0
    %5044 = vmatprep.subr.mxu0 0.0
    %5045 = vmatpush1.msra.mxu0 0.0
    %5046 = vmatprep.subr.mxu0 0.0
    %5047 = vmatpush1.msra.mxu0 0.0
    %5048 = vmatprep.subr.mxu0 0.0
    %5049 = vmatpush1.msra.mxu0 0.0
    %5050 = vmatprep.subr.mxu0 0.0
    %5051 = vmatpush1.msra.mxu0 0.0
    %5052 = vmatprep.subr.mxu0 0.0
    %5053 = vmatpush1.msra.mxu0 0.0
    %5054 = vmatprep.subr.mxu0 0.0
    %5055 = vmatpush1.msra.mxu0 0.0
    %5056 = vmatprep.subr.mxu0 0.0
    %5057 = vmatpush1.msra.mxu0 0.0
    %5058 = vmatprep.subr.mxu0 0.0
    %5059 = vmatpush1.msra.mxu0 0.0
    %5060 = vmatprep.subr.mxu0 0.0
    %5061 = vmatpush1.msra.mxu0 0.0
    %5062 = vmatprep.subr.mxu0 0.0
    %5063 = vmatpush1.msra.mxu0 0.0
    %5064 = vmatprep.subr.mxu0 0.0
    %5065 = vmatpush1.msra.mxu0 0.0
    %5066 = vmatprep.subr.mxu0 0.0
    %5067 = vmatpush1.msra.mxu0 0.0
    %5068 = vmatprep.subr.mxu0 0.0
    %5069 = vmatpush1.msra.mxu0 0.0
    %5070 = vmatprep.subr.mxu0 0.0
    %5071 = vmatpush1.msra.mxu0 0.0
    %5072 = vmatprep.subr.mxu0 0.0
    %5073 = vmatpush1.msra.mxu0 0.0
    %5074 = vmatprep.subr.mxu0 0.0
    %5075 = vmatpush1.msra.mxu0 0.0
    %5076 = vmatprep.mubr.f32.mxu0 0.0
    %5077 = vmatmul.mubr.f32.gmra.mrb[0].mxu0 %v4986
    %v5078 = vpop.f32.mrb[0].mxu0
    %v5079 = vadd.f32 0.0, %v5078
    %v5080 = vpop.f32.mrb[0].mxu0
    %5081 = vmatprep.mubr.f32.mxu0 0.0
    %5082 = vmatmul.mubr.f32.gmra.mrb[0].mxu0 %v4989
    %v5083 = vpop.f32.mrb[0].mxu0
    %v5084 = vadd.f32 0.0, %v5083
    %v5085 = vpop.f32.mrb[0].mxu0
    %5086 = vmatprep.mubr.f32.mxu0 0.0
    %5087 = vmatmul.mubr.f32.gmra.mrb[0].mxu0 %v4992
    %v5088 = vpop.f32.mrb[0].mxu0
    %v5089 = vadd.f32 0.0, %v5088
    %v5090 = vpop.f32.mrb[0].mxu0
    %5091 = vmatprep.mubr.f32.mxu0 0.0
    %5092 = vmatmul.mubr.f32.gmra.mrb[0].mxu0 %v4995
    %v5093 = vpop.f32.mrb[0].mxu0
    %v5094 = vadd.f32 0.0, %v5093
    %v5095 = vpop.f32.mrb[0].mxu0
    %5096 = vmatprep.mubr.f32.mxu0 0.0
    %5097 = vmatmul.mubr.f32.gmra.mrb[0].mxu0 %v4998
    %v5098 = vpop.f32.mrb[0].mxu0
    %v5099 = vadd.f32 0.0, %v5098
    %v5100 = vpop.f32.mrb[0].mxu0
    %5101 = vmatprep.mubr.f32.mxu0 0.0
    %5102 = vmatmul.mubr.f32.gmra.mrb[0].mxu0 %v5001
    %v5103 = vpop.f32.mrb[0].mxu0
    %v5104 = vadd.f32 0.0, %v5103
    %v5105 = vpop.f32.mrb[0].mxu0
    %5106 = vmatprep.mubr.f32.mxu0 0.0
    %5107 = vmatmul.mubr.f32.gmra.mrb[0].mxu0 %v5004
    %v5108 = vpop.f32.mrb[0].mxu0
    %v5109 = vadd.f32 0.0, %v5108
    %v5110 = vpop.f32.mrb[0].mxu0
    %5111 = vmatprep.mubr.f32.mxu0 0.0
    %5112 = vmatmul.mubr.f32.gmra.mrb[0].mxu0 %v5007
    %v5113 = vpop.f32.mrb[0].mxu0
    %v5114 = vadd.f32 0.0, %v5113
    %v5115 = vpop.f32.mrb[0].mxu0
    %5116 = vdwg.mxu0
    %v5117 = vadd.f32 %v4880, %v5079
    %v5118 = vadd.f32 %v4881, %v5084
    %v5119 = vadd.f32 %v4882, %v5089
    %v5120 = vadd.f32 %v4883, %v5094
    %v5121 = vadd.f32 %v4884, %v5099
    %v5122 = vadd.f32 %v4885, %v5104
    %v5123 = vadd.f32 %v4886, %v5109
    %v5124 = vadd.f32 %v4887, %v5114
    %v5125 = vld [vmem:[#allocation3 + $0x19] sm:$0xff]
    %v5126 = vld [vmem:[#allocation3 + $0x21] sm:$0xff]
    %v5127 = vld [vmem:[#allocation3 + $0x29] sm:$0xff]
    %v5128 = vld [vmem:[#allocation3 + $0x31] sm:$0xff]
    %v5129 = vld [vmem:[#allocation3 + $0x39] sm:$0xff]
    %v5130 = vld [vmem:[#allocation3 + $0x41] sm:$0xff]
    %v5131 = vld [vmem:[#allocation3 + $0x49] sm:$0xff]
    %v5132 = vld [vmem:[#allocation3 + $0x51] sm:$0xff]
    %v5133 = vmul.f32 %v5125, %v3681
    %v5134 = vmul.f32 %v5126, %v3685
    %v5135 = vmul.f32 %v5127, %v3689
    %v5136 = vmul.f32 %v5128, %v3693
    %v5137 = vmul.f32 %v5129, %v3697
    %v5138 = vmul.f32 %v5130, %v3701
    %v5139 = vmul.f32 %v5131, %v3705
    %v5140 = vmul.f32 %v5132, %v3709
    %v5141 = vld [vmem:[#allocation5] sm:$0x7]
    %v5143 = vsel %vm707, %v5141, 0
    %5145 = vmatprep.subr.mxu0 0.0
    %5146 = vmatpush1.msra.mxu0 %v5143
    %5147 = vmatprep.subr.mxu0 0.0
    %5148 = vmatpush1.msra.mxu0 0.0
    %5149 = vmatprep.subr.mxu0 0.0
    %5150 = vmatpush1.msra.mxu0 0.0
    %5151 = vmatprep.subr.mxu0 0.0
    %5152 = vmatpush1.msra.mxu0 0.0
    %5153 = vmatprep.subr.mxu0 0.0
    %5154 = vmatpush1.msra.mxu0 0.0
    %5155 = vmatprep.subr.mxu0 0.0
    %5156 = vmatpush1.msra.mxu0 0.0
    %5157 = vmatprep.subr.mxu0 0.0
    %5158 = vmatpush1.msra.mxu0 0.0
    %5159 = vmatprep.subr.mxu0 0.0
    %5160 = vmatpush1.msra.mxu0 0.0
    %5161 = vmatprep.subr.mxu0 0.0
    %5162 = vmatpush1.msra.mxu0 0.0
    %5163 = vmatprep.subr.mxu0 0.0
    %5164 = vmatpush1.msra.mxu0 0.0
    %5165 = vmatprep.subr.mxu0 0.0
    %5166 = vmatpush1.msra.mxu0 0.0
    %5167 = vmatprep.subr.mxu0 0.0
    %5168 = vmatpush1.msra.mxu0 0.0
    %5169 = vmatprep.subr.mxu0 0.0
    %5170 = vmatpush1.msra.mxu0 0.0
    %5171 = vmatprep.subr.mxu0 0.0
    %5172 = vmatpush1.msra.mxu0 0.0
    %5173 = vmatprep.subr.mxu0 0.0
    %5174 = vmatpush1.msra.mxu0 0.0
    %5175 = vmatprep.subr.mxu0 0.0
    %5176 = vmatpush1.msra.mxu0 0.0
    %5177 = vmatprep.subr.mxu0 0.0
    %5178 = vmatpush1.msra.mxu0 0.0
    %5179 = vmatprep.subr.mxu0 0.0
    %5180 = vmatpush1.msra.mxu0 0.0
    %5181 = vmatprep.subr.mxu0 0.0
    %5182 = vmatpush1.msra.mxu0 0.0
    %5183 = vmatprep.subr.mxu0 0.0
    %5184 = vmatpush1.msra.mxu0 0.0
    %5185 = vmatprep.subr.mxu0 0.0
    %5186 = vmatpush1.msra.mxu0 0.0
    %5187 = vmatprep.subr.mxu0 0.0
    %5188 = vmatpush1.msra.mxu0 0.0
    %5189 = vmatprep.subr.mxu0 0.0
    %5190 = vmatpush1.msra.mxu0 0.0
    %5191 = vmatprep.subr.mxu0 0.0
    %5192 = vmatpush1.msra.mxu0 0.0
    %5193 = vmatprep.subr.mxu0 0.0
    %5194 = vmatpush1.msra.mxu0 0.0
    %5195 = vmatprep.subr.mxu0 0.0
    %5196 = vmatpush1.msra.mxu0 0.0
    %5197 = vmatprep.subr.mxu0 0.0
    %5198 = vmatpush1.msra.mxu0 0.0
    %5199 = vmatprep.subr.mxu0 0.0
    %5200 = vmatpush1.msra.mxu0 0.0
    %5201 = vmatprep.subr.mxu0 0.0
    %5202 = vmatpush1.msra.mxu0 0.0
    %5203 = vmatprep.subr.mxu0 0.0
    %5204 = vmatpush1.msra.mxu0 0.0
    %5205 = vmatprep.subr.mxu0 0.0
    %5206 = vmatpush1.msra.mxu0 0.0
    %5207 = vmatprep.subr.mxu0 0.0
    %5208 = vmatpush1.msra.mxu0 0.0
    %5209 = vmatprep.mubr.f32.mxu0 0.0
    %5210 = vmatmul.mubr.f32.gmra.mrb[0].mxu0 %v702
    %v5211 = vpop.f32.mrb[0].mxu0
    %v5212 = vadd.f32 0.0, %v5211
    %v5213 = vpop.f32.mrb[0].mxu0
    %5214 = vmatprep.mubr.f32.mxu0 0.0
    %5215 = vmatmul.mubr.f32.gmra.mrb[0].mxu0 %v705
    %v5216 = vpop.f32.mrb[0].mxu0
    %v5217 = vadd.f32 0.0, %v5216
    %v5218 = vpop.f32.mrb[0].mxu0
    %5219 = vdwg.mxu0
    %v5220 = vmul.f32 %v5212, %v613
    %v5221 = vmul.f32 %v5217, %v614
    %v5223 = vsel %vm2923, %v5133, 0
    %v5226 = vsel %vm2923, %v5134, 0
    %v5229 = vsel %vm2923, %v5135, 0
    %v5232 = vsel %vm2923, %v5136, 0
    %v5235 = vsel %vm2923, %v5137, 0
    %v5238 = vsel %vm2923, %v5138, 0
    %v5241 = vsel %vm2923, %v5139, 0
    %v5244 = vsel %vm2923, %v5140, 0
    %v5247 = vsel %vm2980, %v5221, 0
    %5249 = vmatprep.subr.mxu0 0.0
    %5250 = vmatpush1.msra.mxu0 %v5220
    %5251 = vmatprep.subr.mxu0 0.0
    %5252 = vmatpush1.msra.mxu0 %v5247
    %5253 = vmatprep.subr.mxu0 0.0
    %5254 = vmatpush1.msra.mxu0 0.0
    %5255 = vmatprep.subr.mxu0 0.0
    %5256 = vmatpush1.msra.mxu0 0.0
    %5257 = vmatprep.subr.mxu0 0.0
    %5258 = vmatpush1.msra.mxu0 0.0
    %5259 = vmatprep.subr.mxu0 0.0
    %5260 = vmatpush1.msra.mxu0 0.0
    %5261 = vmatprep.subr.mxu0 0.0
    %5262 = vmatpush1.msra.mxu0 0.0
    %5263 = vmatprep.subr.mxu0 0.0
    %5264 = vmatpush1.msra.mxu0 0.0
    %5265 = vmatprep.subr.mxu0 0.0
    %5266 = vmatpush1.msra.mxu0 0.0
    %5267 = vmatprep.subr.mxu0 0.0
    %5268 = vmatpush1.msra.mxu0 0.0
    %5269 = vmatprep.subr.mxu0 0.0
    %5270 = vmatpush1.msra.mxu0 0.0
    %5271 = vmatprep.subr.mxu0 0.0
    %5272 = vmatpush1.msra.mxu0 0.0
    %5273 = vmatprep.subr.mxu0 0.0
    %5274 = vmatpush1.msra.mxu0 0.0
    %5275 = vmatprep.subr.mxu0 0.0
    %5276 = vmatpush1.msra.mxu0 0.0
    %5277 = vmatprep.subr.mxu0 0.0
    %5278 = vmatpush1.msra.mxu0 0.0
    %5279 = vmatprep.subr.mxu0 0.0
    %5280 = vmatpush1.msra.mxu0 0.0
    %5281 = vmatprep.subr.mxu0 0.0
    %5282 = vmatpush1.msra.mxu0 0.0
    %5283 = vmatprep.subr.mxu0 0.0
    %5284 = vmatpush1.msra.mxu0 0.0
    %5285 = vmatprep.subr.mxu0 0.0
    %5286 = vmatpush1.msra.mxu0 0.0
    %5287 = vmatprep.subr.mxu0 0.0
    %5288 = vmatpush1.msra.mxu0 0.0
    %5289 = vmatprep.subr.mxu0 0.0
    %5290 = vmatpush1.msra.mxu0 0.0
    %5291 = vmatprep.subr.mxu0 0.0
    %5292 = vmatpush1.msra.mxu0 0.0
    %5293 = vmatprep.subr.mxu0 0.0
    %5294 = vmatpush1.msra.mxu0 0.0
    %5295 = vmatprep.subr.mxu0 0.0
    %5296 = vmatpush1.msra.mxu0 0.0
    %5297 = vmatprep.subr.mxu0 0.0
    %5298 = vmatpush1.msra.mxu0 0.0
    %5299 = vmatprep.subr.mxu0 0.0
    %5300 = vmatpush1.msra.mxu0 0.0
    %5301 = vmatprep.subr.mxu0 0.0
    %5302 = vmatpush1.msra.mxu0 0.0
    %5303 = vmatprep.subr.mxu0 0.0
    %5304 = vmatpush1.msra.mxu0 0.0
    %5305 = vmatprep.subr.mxu0 0.0
    %5306 = vmatpush1.msra.mxu0 0.0
    %5307 = vmatprep.subr.mxu0 0.0
    %5308 = vmatpush1.msra.mxu0 0.0
    %5309 = vmatprep.subr.mxu0 0.0
    %5310 = vmatpush1.msra.mxu0 0.0
    %5311 = vmatprep.subr.mxu0 0.0
    %5312 = vmatpush1.msra.mxu0 0.0
    %5313 = vmatprep.mubr.f32.mxu0 0.0
    %5314 = vmatmul.mubr.f32.gmra.mrb[0].mxu0 %v5223
    %v5315 = vpop.f32.mrb[0].mxu0
    %v5316 = vadd.f32 0.0, %v5315
    %v5317 = vpop.f32.mrb[0].mxu0
    %5318 = vmatprep.mubr.f32.mxu0 0.0
    %5319 = vmatmul.mubr.f32.gmra.mrb[0].mxu0 %v5226
    %v5320 = vpop.f32.mrb[0].mxu0
    %v5321 = vadd.f32 0.0, %v5320
    %v5322 = vpop.f32.mrb[0].mxu0
    %5323 = vmatprep.mubr.f32.mxu0 0.0
    %5324 = vmatmul.mubr.f32.gmra.mrb[0].mxu0 %v5229
    %v5325 = vpop.f32.mrb[0].mxu0
    %v5326 = vadd.f32 0.0, %v5325
    %v5327 = vpop.f32.mrb[0].mxu0
    %5328 = vmatprep.mubr.f32.mxu0 0.0
    %5329 = vmatmul.mubr.f32.gmra.mrb[0].mxu0 %v5232
    %v5330 = vpop.f32.mrb[0].mxu0
    %v5331 = vadd.f32 0.0, %v5330
    %v5332 = vpop.f32.mrb[0].mxu0
    %5333 = vmatprep.mubr.f32.mxu0 0.0
    %5334 = vmatmul.mubr.f32.gmra.mrb[0].mxu0 %v5235
    %v5335 = vpop.f32.mrb[0].mxu0
    %v5336 = vadd.f32 0.0, %v5335
    %v5337 = vpop.f32.mrb[0].mxu0
    %5338 = vmatprep.mubr.f32.mxu0 0.0
    %5339 = vmatmul.mubr.f32.gmra.mrb[0].mxu0 %v5238
    %v5340 = vpop.f32.mrb[0].mxu0
    %v5341 = vadd.f32 0.0, %v5340
    %v5342 = vpop.f32.mrb[0].mxu0
    %5343 = vmatprep.mubr.f32.mxu0 0.0
    %5344 = vmatmul.mubr.f32.gmra.mrb[0].mxu0 %v5241
    %v5345 = vpop.f32.mrb[0].mxu0
    %v5346 = vadd.f32 0.0, %v5345
    %v5347 = vpop.f32.mrb[0].mxu0
    %5348 = vmatprep.mubr.f32.mxu0 0.0
    %5349 = vmatmul.mubr.f32.gmra.mrb[0].mxu0 %v5244
    %v5350 = vpop.f32.mrb[0].mxu0
    %v5351 = vadd.f32 0.0, %v5350
    %v5352 = vpop.f32.mrb[0].mxu0
    %5353 = vdwg.mxu0
    %v5354 = vadd.f32 %v5117, %v5316
    %v5355 = vadd.f32 %v5118, %v5321
    %v5356 = vadd.f32 %v5119, %v5326
    %v5357 = vadd.f32 %v5120, %v5331
    %v5358 = vadd.f32 %v5121, %v5336
    %v5359 = vadd.f32 %v5122, %v5341
    %v5360 = vadd.f32 %v5123, %v5346
    %v5361 = vadd.f32 %v5124, %v5351
    %v5362 = vld [vmem:[%s7] sm:$0xff]
    %v5363 = vld [vmem:[%s7 + $0x8] sm:$0xff]
    %v5364 = vld [vmem:[%s8] sm:$0x1]
    %v5366 = vlaneseq
    %v5367 = vshrl.u32 %v5366, 7
    %v5368 = vsub.s32 0, %v5367
    %v5369 = vrot.slane %v5364, %v5368
    %v5372 = vsel %vm62, %v5354, 0
    %v5375 = vsel %vm62, %v5355, 0
    %v5378 = vsel %vm62, %v5356, 0
    %v5381 = vsel %vm62, %v5357, 0
    %v5384 = vsel %vm62, %v5358, 0
    %v5387 = vsel %vm62, %v5359, 0
    %v5390 = vsel %vm62, %v5360, 0
    %v5393 = vsel %vm62, %v5361, 0
    %v5396 = vsel %vm62, %v5362, 0
    %v5399 = vsel %vm62, %v5363, 0
    %5401 = vmatprep.subr.mxu0 0.0
    %5402 = vmatpush1.xpose.msra.mxu0 %v5396
    %5403 = vmatprep.subr.mxu0 0.0
    %5404 = vmatpush1.xpose.msra.mxu0 %v5399
    %5405 = vmatprep.subr.mxu0 0.0
    %5406 = vmatpush1.xpose.msra.mxu0 0.0
    %5407 = vmatprep.subr.mxu0 0.0
    %5408 = vmatpush1.xpose.msra.mxu0 0.0
    %5409 = vmatprep.subr.mxu0 0.0
    %5410 = vmatpush1.xpose.msra.mxu0 0.0
    %5411 = vmatprep.subr.mxu0 0.0
    %5412 = vmatpush1.xpose.msra.mxu0 0.0
    %5413 = vmatprep.subr.mxu0 0.0
    %5414 = vmatpush1.xpose.msra.mxu0 0.0
    %5415 = vmatprep.subr.mxu0 0.0
    %5416 = vmatpush1.xpose.msra.mxu0 0.0
    %5417 = vmatprep.subr.mxu0 0.0
    %5418 = vmatpush1.xpose.msra.mxu0 0.0
    %5419 = vmatprep.subr.mxu0 0.0
    %5420 = vmatpush1.xpose.msra.mxu0 0.0
    %5421 = vmatprep.subr.mxu0 0.0
    %5422 = vmatpush1.xpose.msra.mxu0 0.0
    %5423 = vmatprep.subr.mxu0 0.0
    %5424 = vmatpush1.xpose.msra.mxu0 0.0
    %5425 = vmatprep.subr.mxu0 0.0
    %5426 = vmatpush1.xpose.msra.mxu0 0.0
    %5427 = vmatprep.subr.mxu0 0.0
    %5428 = vmatpush1.xpose.msra.mxu0 0.0
    %5429 = vmatprep.subr.mxu0 0.0
    %5430 = vmatpush1.xpose.msra.mxu0 0.0
    %5431 = vmatprep.subr.mxu0 0.0
    %5432 = vmatpush1.xpose.msra.mxu0 0.0
    %5433 = vmatprep.subr.mxu0 0.0
    %5434 = vmatpush1.xpose.msra.mxu0 0.0
    %5435 = vmatprep.subr.mxu0 0.0
    %5436 = vmatpush1.xpose.msra.mxu0 0.0
    %5437 = vmatprep.subr.mxu0 0.0
    %5438 = vmatpush1.xpose.msra.mxu0 0.0
    %5439 = vmatprep.subr.mxu0 0.0
    %5440 = vmatpush1.xpose.msra.mxu0 0.0
    %5441 = vmatprep.subr.mxu0 0.0
    %5442 = vmatpush1.xpose.msra.mxu0 0.0
    %5443 = vmatprep.subr.mxu0 0.0
    %5444 = vmatpush1.xpose.msra.mxu0 0.0
    %5445 = vmatprep.subr.mxu0 0.0
    %5446 = vmatpush1.xpose.msra.mxu0 0.0
    %5447 = vmatprep.subr.mxu0 0.0
    %5448 = vmatpush1.xpose.msra.mxu0 0.0
    %5449 = vmatprep.subr.mxu0 0.0
    %5450 = vmatpush1.xpose.msra.mxu0 0.0
    %5451 = vmatprep.subr.mxu0 0.0
    %5452 = vmatpush1.xpose.msra.mxu0 0.0
    %5453 = vmatprep.subr.mxu0 0.0
    %5454 = vmatpush1.xpose.msra.mxu0 0.0
    %5455 = vmatprep.subr.mxu0 0.0
    %5456 = vmatpush1.xpose.msra.mxu0 0.0
    %5457 = vmatprep.subr.mxu0 0.0
    %5458 = vmatpush1.xpose.msra.mxu0 0.0
    %5459 = vmatprep.subr.mxu0 0.0
    %5460 = vmatpush1.xpose.msra.mxu0 0.0
    %5461 = vmatprep.subr.mxu0 0.0
    %5462 = vmatpush1.xpose.msra.mxu0 0.0
    %5463 = vmatprep.subr.mxu0 0.0
    %5464 = vmatpush1.xpose.msra.mxu0 0.0
    %5465 = vmatprep.mubr.f32.mxu0 0.0
    %5466 = vmatmul.mubr.f32.gmra.mrb[0].mxu0 %v5372
    %v5467 = vpop.f32.mrb[0].mxu0
    %v5468 = vadd.f32 %v5369, %v5467
    %v5469 = vpop.f32.mrb[0].mxu0
    %5470 = vmatprep.mubr.f32.mxu0 0.0
    %5471 = vmatmul.mubr.f32.gmra.mrb[0].mxu0 %v5375
    %v5472 = vpop.f32.mrb[0].mxu0
    %v5473 = vadd.f32 %v5369, %v5472
    %v5474 = vpop.f32.mrb[0].mxu0
    %5475 = vmatprep.mubr.f32.mxu0 0.0
    %5476 = vmatmul.mubr.f32.gmra.mrb[0].mxu0 %v5378
    %v5477 = vpop.f32.mrb[0].mxu0
    %v5478 = vadd.f32 %v5369, %v5477
    %v5479 = vpop.f32.mrb[0].mxu0
    %5480 = vmatprep.mubr.f32.mxu0 0.0
    %5481 = vmatmul.mubr.f32.gmra.mrb[0].mxu0 %v5381
    %v5482 = vpop.f32.mrb[0].mxu0
    %v5483 = vadd.f32 %v5369, %v5482
    %v5484 = vpop.f32.mrb[0].mxu0
    %5485 = vmatprep.mubr.f32.mxu0 0.0
    %5486 = vmatmul.mubr.f32.gmra.mrb[0].mxu0 %v5384
    %v5487 = vpop.f32.mrb[0].mxu0
    %v5488 = vadd.f32 %v5369, %v5487
    %v5489 = vpop.f32.mrb[0].mxu0
    %5490 = vmatprep.mubr.f32.mxu0 0.0
    %5491 = vmatmul.mubr.f32.gmra.mrb[0].mxu0 %v5387
    %v5492 = vpop.f32.mrb[0].mxu0
    %v5493 = vadd.f32 %v5369, %v5492
    %v5494 = vpop.f32.mrb[0].mxu0
    %5495 = vmatprep.mubr.f32.mxu0 0.0
    %5496 = vmatmul.mubr.f32.gmra.mrb[0].mxu0 %v5390
    %v5497 = vpop.f32.mrb[0].mxu0
    %v5498 = vadd.f32 %v5369, %v5497
    %v5499 = vpop.f32.mrb[0].mxu0
    %5500 = vmatprep.mubr.f32.mxu0 0.0
    %5501 = vmatmul.mubr.f32.gmra.mrb[0].mxu0 %v5393
    %v5502 = vpop.f32.mrb[0].mxu0
    %v5503 = vadd.f32 %v5369, %v5502
    %v5504 = vpop.f32.mrb[0].mxu0
    %5505 = vdwg.mxu0
    %5506 = vst.msk [vmem:[#allocation6] sm:$0xff] %vm62, %v5468
    %5507 = vst.msk [vmem:[#allocation6 + $0x8] sm:$0xff] %vm62, %v5473
    %5508 = vst.msk [vmem:[#allocation6 + $0x10] sm:$0xff] %vm62, %v5478
    %5509 = vst.msk [vmem:[#allocation6 + $0x18] sm:$0xff] %vm62, %v5483
    %5510 = vst.msk [vmem:[#allocation6 + $0x20] sm:$0xff] %vm62, %v5488
    %5511 = vst.msk [vmem:[#allocation6 + $0x28] sm:$0xff] %vm62, %v5493
    %5512 = vst.msk [vmem:[#allocation6 + $0x30] sm:$0xff] %vm62, %v5498
    %5513 = vst.msk [vmem:[#allocation6 + $0x38] sm:$0xff] %vm62, %v5503
    // Predicated region
    $region54: #{similarity_weighted_aggregation.1} parent=1 // pred_check
      _
    $region55: #{similarity_weighted_aggregation.1} parent=1 // pred_check_branch
      %5515 = sbr.rel (0) target = $region57
    $region56: #{similarity_weighted_aggregation.1} parent=1 // pred_region
      %s5517 = ssub.s32 1024, 1024
      %5518 = vsyncadd [#allocation7], %s5517
      %s5519 = sshll.u32 [#allocation6], 4
      %s5520 = int_to_ptr.vmem [resolvable:$true] %s5519
      %5525 = dma.vmem_to_hbm [thread:$0]  %s5520, 1024, %s13, [#allocation7], 128, 128, 8
    $region57: #{similarity_weighted_aggregation.1} parent=1 // pred_fallthru
      _
    // Predicated region
    $region58: #{similarity_weighted_aggregation.1} parent=1 // pred_check
      _
    $region59: #{similarity_weighted_aggregation.1} parent=1 // pred_check_branch
      %5527 = sbr.rel (0) target = $region61
    $region60: #{similarity_weighted_aggregation.1} parent=1 // pred_region
      %5528 = dma.done [#allocation7], 1024
    $region61: #{similarity_weighted_aggregation.1} parent=1 // pred_fallthru
      _
    %5529 = vsyncpa [#allocation7], 1

</llo_original>
